<compile_context>
chip_gen: v7x
topology: tpu7x:2x2x1
jax: 0.10.0
libtpu: 0.0.40
codegen_flags: <defaults>
</compile_context>

<pallas_src>
import numpy as np
import jax
import jax.numpy as jnp
from jax.experimental import pallas as pl
from jax.experimental.pallas import tpu as pltpu

D = 32          # model size
H = 4           # attention heads
DK = D // H     # per-head dim
FF = 64         # feed-forward hidden size
K = 7           # depthwise conv kernel size
PAD = (K - 1) // 2
EPS_LN = 1e-12  # torch LayerNorm eps used by the module
EPS_BN = 1e-5   # torch BatchNorm1d default eps
PH = jax.lax.Precision.HIGHEST

# bf16 MXU operands (f32 accumulate).  Set to jnp.float32 for tighter numerics.
MXU_DTYPE = jnp.bfloat16


# --------------------------------------------------------------------------- #
# Kernel
# --------------------------------------------------------------------------- #
def _encoder_layer_kernel(
    x_ref, mask_ref, ln_ref,
    ffm_w1_ref, ffm_b1_ref, ffm_w2_ref, ffm_b2_ref,
    ff_w1_ref, ff_b1_ref, ff_w2_ref, ff_b2_ref,
    wqkv_ref, bqkv_ref, wo_ref, bo_ref,
    pw1_w_ref, pw1_b_ref, dw_ref, bnp_ref, pw2_w_ref, pw2_b_ref,
    o_ref,
):
    BB, T, _ = x_ref.shape        # batches per block, time
    M = BB * T                    # flattened rows
    N = H * BB                    # attention batch (head-major)

    x = x_ref[...].reshape(M, D)  # (M, D) f32; row m = b*T + t
    ln = ln_ref[...]              # (5, 2, D)  [gamma, beta] x 5 LayerNorms

    def layer_norm(v, idx):
        g = ln[idx, 0:1, :]
        b = ln[idx, 1:2, :]
        mu = jnp.mean(v, axis=-1, keepdims=True)
        var = jnp.mean((v - mu) ** 2, axis=-1, keepdims=True)
        return (v - mu) * jax.lax.rsqrt(var + EPS_LN) * g + b

    def swish(v):
        return v * jax.nn.sigmoid(v)

    def mm(a, w_ref, b_ref):
        # bf16 MXU operands, f32 accumulation, f32 bias add.
        return jnp.dot(a.astype(MXU_DTYPE), w_ref[...],
                       preferred_element_type=jnp.float32) + b_ref[...]

    def ffn(v, w1_ref, b1_ref, w2_ref, b2_ref):
        return mm(swish(mm(v, w1_ref, b1_ref)), w2_ref, b2_ref)

    # ---------- macaron feed-forward: x = x + 0.5 * FF(LN(x)) ----------
    x = x + 0.5 * ffn(layer_norm(x, 0), ffm_w1_ref, ffm_b1_ref,
                      ffm_w2_ref, ffm_b2_ref)

    # ---------- multi-headed self-attention: x = x + Wo(MHA(LN(x))) ----------
    xn = layer_norm(x, 1)
    qkv = mm(xn, wqkv_ref, bqkv_ref)          # (M, 3D); Q pre-scaled by 1/sqrt(dk)

    def split_heads(z):                       # (M, D) -> (H*BB, T, DK); n = h*BB + b
        zs = jnp.stack([z[:, h * DK:(h + 1) * DK] for h in range(H)], axis=0)
        return zs.reshape(N, T, DK)

    q = split_heads(qkv[:, 0 * D:1 * D])
    k = split_heads(qkv[:, 1 * D:2 * D])
    v = split_heads(qkv[:, 2 * D:3 * D])

    # hoisted key mask, broadcast once to the head-major batch layout
    kmask = (jnp.broadcast_to(mask_ref[...][None], (H, BB, 1, T))
             .reshape(N, 1, T) > 0.0)

    s = jnp.einsum("ntd,nsd->nts", q, k, preferred_element_type=jnp.float32)
    s = jnp.where(kmask, s, jnp.finfo(jnp.float32).min)
    s = s - jnp.max(s, axis=-1, keepdims=True)
    p = jnp.exp(s)
    p = p * pl.reciprocal(jnp.sum(p, axis=-1, keepdims=True), approx=True)
    p = jnp.where(kmask, p, 0.0)              # matches torch MHA post-softmax mask
    ctx = jnp.einsum("nts,nsd->ntd", p, v, preferred_element_type=jnp.float32)
    ctx = ctx.reshape(H, M, DK)
    att = jnp.concatenate([ctx[h] for h in range(H)], axis=-1)   # (M, D)
    x = x + mm(att, wo_ref, bo_ref)

    # ---------- conformer convolution module: x = x + Conv(LN(x)) ----------
    xn = layer_norm(x, 2)
    y = mm(xn, pw1_w_ref, pw1_b_ref)          # pointwise conv1 -> (M, 2D)
    y = y[:, :D] * jax.nn.sigmoid(y[:, D:])   # GLU

    dw = dw_ref[...]                          # (K+1, D): taps 0..K-1, bias row K
    tpos = jax.lax.broadcasted_iota(jnp.int32, (BB, T, 1), 1).reshape(M, 1)
    acc = y * dw[PAD:PAD + 1, :]              # centre tap (offset 0)
    for kk in range(K):                       # depthwise conv along time via rolls
        off = kk - PAD
        if off == 0:
            continue
        shifted = pltpu.roll(y, shift=(-off) % M, axis=0)   # shifted[r] = y[r+off]
        valid = (tpos + off >= 0) & (tpos + off < T)        # zero edge / cross-batch wrap
        acc = acc + jnp.where(valid, shifted, 0.0) * dw[kk:kk + 1, :]
    y = acc + dw[K:K + 1, :]

    bnp = bnp_ref[...]                        # (2, D): folded eval BatchNorm scale/shift
    y = swish(y * bnp[0:1, :] + bnp[1:2, :])
    x = x + mm(y, pw2_w_ref, pw2_b_ref)       # pointwise conv2

    # ---------- feed-forward: x = x + 0.5 * FF(LN(x)) ----------
    x = x + 0.5 * ffn(layer_norm(x, 3), ff_w1_ref, ff_b1_ref, ff_w2_ref, ff_b2_ref)

    # ---------- final LayerNorm (conv_module is not None) ----------
    o_ref[...] = layer_norm(x, 4).reshape(BB, T, D)


# --------------------------------------------------------------------------- #
# Wrapper
# --------------------------------------------------------------------------- #
def _prepare_weights(p):
    """Fuse / fold / cast the raw (PyTorch-layout) params for the kernel."""
    inv = jnp.float32(1.0 / np.sqrt(DK))
    # fused QKV with 1/sqrt(dk) folded into the query projection
    wqkv = jnp.concatenate([p["wqkv"][0] * inv, p["wqkv"][1], p["wqkv"][2]], axis=-1)
    bqkv = jnp.concatenate([p["bqkv"][0] * inv, p["bqkv"][1], p["bqkv"][2]], axis=-1)
    # depthwise taps + bias packed into one array
    dw = jnp.concatenate([p["dw_w"], p["dw_b"]], axis=0)
    # eval-mode BatchNorm folded into scale/shift
    bn_scale = p["bn"][0] * jax.lax.rsqrt(p["bn"][3] + EPS_BN)
    bn_shift = p["bn"][1] - p["bn"][2] * bn_scale
    bnp = jnp.stack([bn_scale, bn_shift], axis=0)

    c = lambda w: w.astype(MXU_DTYPE)         # MXU operands in bf16
    return [
        p["ln"],
        c(p["ffm_w1"]), p["ffm_b1"], c(p["ffm_w2"]), p["ffm_b2"],
        c(p["ff_w1"]), p["ff_b1"], c(p["ff_w2"]), p["ff_b2"],
        c(wqkv), bqkv, c(p["wo"]), p["bo"],
        c(p["pw1_w"]), p["pw1_b"], dw, bnp, c(p["pw2_w"]), p["pw2_b"],
    ]


def _rep_spec(a):
    nd = a.ndim
    return pl.BlockSpec(a.shape, lambda i, nd=nd: (0,) * nd)


def _pick_grid(B):
    # Keep >= 2 grid steps (v7x has 2 TensorCores) while packing as many batch
    # rows per step as divisibility allows.
    if B < 2:
        return 1
    nb = 2
    while B % nb:
        nb += 1
    return nb


def encoder_layer_forward(x, mask, params):
    """x: (B, T, D) f32, mask: (B, 1, T) f32 {0,1} -> ((B, T, D) f32, mask)."""
    B, T, _ = x.shape
    nb = _pick_grid(B)
    BB = B // nb
    weights = _prepare_weights(params)
    in_specs = [
        pl.BlockSpec((BB, T, D), lambda i: (i, 0, 0)),
        pl.BlockSpec((BB, 1, T), lambda i: (i, 0, 0)),
    ] + [_rep_spec(w) for w in weights]
    out = pl.pallas_call(
        _encoder_layer_kernel,
        out_shape=jax.ShapeDtypeStruct((B, T, D), jnp.float32),
        grid=(nb,),
        in_specs=in_specs,
        out_specs=pl.BlockSpec((BB, T, D), lambda i: (i, 0, 0)),
        compiler_params=pltpu.CompilerParams(dimension_semantics=("parallel",)),
    )(x, mask, *weights)
    return out, mask


# --------------------------------------------------------------------------- #
# Raw (PyTorch-layout) parameters + pure-JAX reference
# --------------------------------------------------------------------------- #
def init_params(key):
    ks = iter(jax.random.split(key, 40))
    n = lambda shape, s: jax.random.normal(next(ks), shape, jnp.float32) * s

    p = {}
    # 5 LayerNorms: [ff_macaron, mha, conv, ff, final] ; [gamma, beta]
    p["ln"] = jnp.stack([
        jnp.stack([1.0 + n((D,), 0.05), n((D,), 0.05)]) for _ in range(5)
    ])
    # macaron FFN
    p["ffm_w1"] = n((D, FF), 1.0 / np.sqrt(D)); p["ffm_b1"] = n((1, FF), 0.02)
    p["ffm_w2"] = n((FF, D), 1.0 / np.sqrt(FF)); p["ffm_b2"] = n((1, D), 0.02)
    # FFN
    p["ff_w1"] = n((D, FF), 1.0 / np.sqrt(D)); p["ff_b1"] = n((1, FF), 0.02)
    p["ff_w2"] = n((FF, D), 1.0 / np.sqrt(FF)); p["ff_b2"] = n((1, D), 0.02)
    # MHA
    p["wqkv"] = n((3, D, D), 1.0 / np.sqrt(D)); p["bqkv"] = n((3, 1, D), 0.02)
    p["wo"] = n((D, D), 1.0 / np.sqrt(D)); p["bo"] = n((1, D), 0.02)
    # Conv module
    p["pw1_w"] = n((D, 2 * D), 1.0 / np.sqrt(D)); p["pw1_b"] = n((1, 2 * D), 0.02)
    p["dw_w"] = n((K, D), 1.0 / np.sqrt(K)); p["dw_b"] = n((1, D), 0.02)
    p["bn"] = jnp.stack([
        1.0 + n((D,), 0.05),                 # gamma
        n((D,), 0.05),                       # beta
        n((D,), 0.05),                       # running mean
        1.0 + 0.1 * jnp.abs(n((D,), 1.0)),   # running var (positive)
    ])
    p["pw2_w"] = n((D, D), 1.0 / np.sqrt(D)); p["pw2_b"] = n((1, D), 0.02)
    return p


def reference_forward(x, mask, p):
    """Pure-JAX f32 mirror of the PyTorch forward (eval, pre-norm, no cache)."""
    def ln(v, idx):
        g, b = p["ln"][idx, 0], p["ln"][idx, 1]
        mu = v.mean(-1, keepdims=True)
        var = ((v - mu) ** 2).mean(-1, keepdims=True)
        return (v - mu) / jnp.sqrt(var + EPS_LN) * g + b

    swish = lambda v: v * jax.nn.sigmoid(v)

    def ffn(v, w1, b1, w2, b2):
        h = swish(jnp.einsum("btd,df->btf", v, w1, precision=PH) + b1)
        return jnp.einsum("btf,fd->btd", h, w2, precision=PH) + b2

    B, T, _ = x.shape
    # macaron FFN
    x = x + 0.5 * ffn(ln(x, 0), p["ffm_w1"], p["ffm_b1"], p["ffm_w2"], p["ffm_b2"])
    # MHA
    xn = ln(x, 1)
    q = jnp.einsum("btd,de->bte", xn, p["wqkv"][0], precision=PH) + p["bqkv"][0]
    k = jnp.einsum("btd,de->bte", xn, p["wqkv"][1], precision=PH) + p["bqkv"][1]
    v = jnp.einsum("btd,de->bte", xn, p["wqkv"][2], precision=PH) + p["bqkv"][2]
    rs = lambda a: a.reshape(B, T, H, DK).transpose(0, 2, 1, 3)
    q, k, v = rs(q), rs(k), rs(v)
    s = jnp.einsum("bhqd,bhkd->bhqk", q, k, precision=PH) / np.sqrt(DK)
    mk = mask[:, :, None, :] > 0.0                       # (B,1,1,T)
    s = jnp.where(mk, s, jnp.finfo(jnp.float32).min)
    a = jax.nn.softmax(s, axis=-1)
    a = jnp.where(mk, a, 0.0)
    o = jnp.einsum("bhqk,bhkd->bhqd", a, v, precision=PH)
    o = o.transpose(0, 2, 1, 3).reshape(B, T, D)
    x = x + jnp.einsum("btd,de->bte", o, p["wo"], precision=PH) + p["bo"]
    # Conv module
    xn = ln(x, 2)
    y = jnp.einsum("btd,de->bte", xn, p["pw1_w"], precision=PH) + p["pw1_b"]
    y = y[..., :D] * jax.nn.sigmoid(y[..., D:])
    yp = jnp.pad(y, ((0, 0), (PAD, PAD), (0, 0)))
    acc = jnp.zeros_like(y)
    for kk in range(K):
        acc = acc + yp[:, kk:kk + T, :] * p["dw_w"][kk]
    y = acc + p["dw_b"]
    bn = p["bn"]
    y = (y - bn[2]) / jnp.sqrt(bn[3] + EPS_BN) * bn[0] + bn[1]
    y = swish(y)
    x = x + jnp.einsum("btd,de->bte", y, p["pw2_w"], precision=PH) + p["pw2_b"]
    # FFN
    x = x + 0.5 * ffn(ln(x, 3), p["ff_w1"], p["ff_b1"], p["ff_w2"], p["ff_b2"])
    # final norm
    return ln(x, 4)


if __name__ == "__main__":
    key = jax.random.PRNGKey(0)
    kx, kp = jax.random.split(key)
    B, T = 4, 16
    x = jax.random.normal(kx, (B, T, D), jnp.float32)
    # padding mask: 1 = valid frame, 0 = padded frame (per batch)
    lengths = [T, T - 3, T - 6, T - 1]
    mask = jnp.stack([
        (jnp.arange(T) < L).astype(jnp.float32).reshape(1, T) for L in lengths
    ])

    params = init_params(kp)
    out, out_mask = encoder_layer_forward(x, mask, params)
    out = jax.block_until_ready(out)

    ref = reference_forward(x, mask, params)
    # tolerance sized for bf16 MXU operands (f32 accumulation) per perf guidance
    tol = 3e-2 if MXU_DTYPE == jnp.bfloat16 else 2e-2
    np.testing.assert_allclose(np.asarray(out), np.asarray(ref), atol=tol, rtol=tol)
    assert out.shape == (B, T, D) and out_mask.shape == (B, 1, T)
    print("KERNEL_OK")
</pallas_src>

<mosaic_0001>
module attributes {stable_mosaic.version = 11 : i64} {
  func.func @_encoder_layer_kernel(%arg0: i32, %arg1: memref<2x16x32xf32, #tpu.memory_space<vmem>>, %arg2: memref<2x1x16xf32, #tpu.memory_space<vmem>>, %arg3: memref<5x2x32xf32, #tpu.memory_space<vmem>>, %arg4: memref<32x64xbf16, #tpu.memory_space<vmem>>, %arg5: memref<1x64xf32, #tpu.memory_space<vmem>>, %arg6: memref<64x32xbf16, #tpu.memory_space<vmem>>, %arg7: memref<1x32xf32, #tpu.memory_space<vmem>>, %arg8: memref<32x64xbf16, #tpu.memory_space<vmem>>, %arg9: memref<1x64xf32, #tpu.memory_space<vmem>>, %arg10: memref<64x32xbf16, #tpu.memory_space<vmem>>, %arg11: memref<1x32xf32, #tpu.memory_space<vmem>>, %arg12: memref<32x96xbf16, #tpu.memory_space<vmem>>, %arg13: memref<1x96xf32, #tpu.memory_space<vmem>>, %arg14: memref<32x32xbf16, #tpu.memory_space<vmem>>, %arg15: memref<1x32xf32, #tpu.memory_space<vmem>>, %arg16: memref<32x64xbf16, #tpu.memory_space<vmem>>, %arg17: memref<1x64xf32, #tpu.memory_space<vmem>>, %arg18: memref<8x32xf32, #tpu.memory_space<vmem>>, %arg19: memref<2x32xf32, #tpu.memory_space<vmem>>, %arg20: memref<32x32xbf16, #tpu.memory_space<vmem>>, %arg21: memref<1x32xf32, #tpu.memory_space<vmem>>, %arg22: memref<2x16x32xf32, #tpu.memory_space<vmem>>) attributes {dimension_semantics = [#tpu.dimension_semantics<parallel>], iteration_bounds = array<i64: 2>, scalar_prefetch = 0 : i64, scratch_operands = 0 : i64, tpu.core_type = #tpu.core_type<tc>, window_params = [{transform_indices = @transform_0, window_bounds = array<i64: 2, 16, 32>}, {transform_indices = @transform_1, window_bounds = array<i64: 2, 1, 16>}, {pipeline_mode = #tpu.pipeline_mode<synchronous>, transform_indices = @transform_2, window_bounds = array<i64: 5, 2, 32>}, {pipeline_mode = #tpu.pipeline_mode<synchronous>, transform_indices = @transform_3, window_bounds = array<i64: 32, 64>}, {pipeline_mode = #tpu.pipeline_mode<synchronous>, transform_indices = @transform_4, window_bounds = array<i64: 1, 64>}, {pipeline_mode = #tpu.pipeline_mode<synchronous>, transform_indices = @transform_5, window_bounds = array<i64: 64, 32>}, {pipeline_mode = #tpu.pipeline_mode<synchronous>, transform_indices = @transform_6, window_bounds = array<i64: 1, 32>}, {pipeline_mode = #tpu.pipeline_mode<synchronous>, transform_indices = @transform_7, window_bounds = array<i64: 32, 64>}, {pipeline_mode = #tpu.pipeline_mode<synchronous>, transform_indices = @transform_8, window_bounds = array<i64: 1, 64>}, {pipeline_mode = #tpu.pipeline_mode<synchronous>, transform_indices = @transform_9, window_bounds = array<i64: 64, 32>}, {pipeline_mode = #tpu.pipeline_mode<synchronous>, transform_indices = @transform_10, window_bounds = array<i64: 1, 32>}, {pipeline_mode = #tpu.pipeline_mode<synchronous>, transform_indices = @transform_11, window_bounds = array<i64: 32, 96>}, {pipeline_mode = #tpu.pipeline_mode<synchronous>, transform_indices = @transform_12, window_bounds = array<i64: 1, 96>}, {pipeline_mode = #tpu.pipeline_mode<synchronous>, transform_indices = @transform_13, window_bounds = array<i64: 32, 32>}, {pipeline_mode = #tpu.pipeline_mode<synchronous>, transform_indices = @transform_14, window_bounds = array<i64: 1, 32>}, {pipeline_mode = #tpu.pipeline_mode<synchronous>, transform_indices = @transform_15, window_bounds = array<i64: 32, 64>}, {pipeline_mode = #tpu.pipeline_mode<synchronous>, transform_indices = @transform_16, window_bounds = array<i64: 1, 64>}, {pipeline_mode = #tpu.pipeline_mode<synchronous>, transform_indices = @transform_17, window_bounds = array<i64: 8, 32>}, {pipeline_mode = #tpu.pipeline_mode<synchronous>, transform_indices = @transform_18, window_bounds = array<i64: 2, 32>}, {pipeline_mode = #tpu.pipeline_mode<synchronous>, transform_indices = @transform_19, window_bounds = array<i64: 32, 32>}, {pipeline_mode = #tpu.pipeline_mode<synchronous>, transform_indices = @transform_20, window_bounds = array<i64: 1, 32>}, {transform_indices = @transform_21, window_bounds = array<i64: 2, 16, 32>}]} {
    %c0 = arith.constant 0 : index
    %c0_0 = arith.constant 0 : index
    %c0_1 = arith.constant 0 : index
    %0 = vector.load %arg1[%c0, %c0_0, %c0_1] : memref<2x16x32xf32, #tpu.memory_space<vmem>>, vector<2x16x32xf32>
    %1 = vector.shape_cast %0 : vector<2x16x32xf32> to vector<32x32xf32>
    %c0_2 = arith.constant 0 : index
    %c0_3 = arith.constant 0 : index
    %c0_4 = arith.constant 0 : index
    %2 = vector.load %arg3[%c0_2, %c0_3, %c0_4] : memref<5x2x32xf32, #tpu.memory_space<vmem>>, vector<5x2x32xf32>
    %3 = vector.extract_strided_slice %2 {offsets = [0, 0, 0], sizes = [1, 1, 32], strides = [1, 1, 1]} : vector<5x2x32xf32> to vector<1x1x32xf32>
    %4 = vector.shape_cast %3 : vector<1x1x32xf32> to vector<1x32xf32>
    %5 = vector.extract_strided_slice %2 {offsets = [0, 1, 0], sizes = [1, 1, 32], strides = [1, 1, 1]} : vector<5x2x32xf32> to vector<1x1x32xf32>
    %6 = vector.shape_cast %5 : vector<1x1x32xf32> to vector<1x32xf32>
    %cst = arith.constant dense<0.000000e+00> : vector<32xf32>
    %7 = vector.multi_reduction <add>, %1, %cst [1] : vector<32x32xf32> to vector<32xf32>
    %8 = vector.shape_cast %7 : vector<32xf32> to vector<32x1xf32>
    %cst_5 = arith.constant 3.200000e+01 : f32
    %9 = vector.broadcast %cst_5 : f32 to vector<32x1xf32>
    %10 = arith.divf %8, %9 : vector<32x1xf32>
    %11 = vector.broadcast %10 : vector<32x1xf32> to vector<32x32xf32>
    %12 = arith.subf %1, %11 : vector<32x32xf32>
    %13 = arith.mulf %12, %12 : vector<32x32xf32>
    %cst_6 = arith.constant dense<0.000000e+00> : vector<32xf32>
    %14 = vector.multi_reduction <add>, %13, %cst_6 [1] : vector<32x32xf32> to vector<32xf32>
    %15 = vector.shape_cast %14 : vector<32xf32> to vector<32x1xf32>
    %cst_7 = arith.constant 3.200000e+01 : f32
    %16 = vector.broadcast %cst_7 : f32 to vector<32x1xf32>
    %17 = arith.divf %15, %16 : vector<32x1xf32>
    %18 = vector.broadcast %10 : vector<32x1xf32> to vector<32x32xf32>
    %19 = arith.subf %1, %18 : vector<32x32xf32>
    %cst_8 = arith.constant 9.99999996E-13 : f32
    %20 = vector.broadcast %cst_8 : f32 to vector<32x1xf32>
    %21 = arith.addf %17, %20 : vector<32x1xf32>
    %22 = math.rsqrt %21 : vector<32x1xf32>
    %23 = vector.broadcast %22 : vector<32x1xf32> to vector<32x32xf32>
    %24 = arith.mulf %19, %23 : vector<32x32xf32>
    %25 = vector.broadcast %4 : vector<1x32xf32> to vector<32x32xf32>
    %26 = arith.mulf %24, %25 : vector<32x32xf32>
    %27 = vector.broadcast %6 : vector<1x32xf32> to vector<32x32xf32>
    %28 = arith.addf %26, %27 : vector<32x32xf32>
    %29 = arith.truncf %28 : vector<32x32xf32> to vector<32x32xbf16>
    %c0_9 = arith.constant 0 : index
    %c0_10 = arith.constant 0 : index
    %30 = vector.load %arg4[%c0_9, %c0_10] : memref<32x64xbf16, #tpu.memory_space<vmem>>, vector<32x64xbf16>
    %cst_11 = arith.constant dense<0.000000e+00> : vector<32x64xf32>
    %31 = tpu.matmul %29, %30, %cst_11 {dimension_numbers = #tpu.dot_dimension_numbers<[1], [0], [0], [1], [0, 0, 1, 1], [], []>} : vector<32x32xbf16>, vector<32x64xbf16>, vector<32x64xf32> -> vector<32x64xf32>
    %c0_12 = arith.constant 0 : index
    %c0_13 = arith.constant 0 : index
    %32 = vector.load %arg5[%c0_12, %c0_13] : memref<1x64xf32, #tpu.memory_space<vmem>>, vector<1x64xf32>
    %33 = vector.broadcast %32 : vector<1x64xf32> to vector<32x64xf32>
    %34 = arith.addf %31, %33 : vector<32x64xf32>
    %35 = arith.negf %34 : vector<32x64xf32>
    %36 = math.exp %35 : vector<32x64xf32>
    %cst_14 = arith.constant 1.000000e+00 : f32
    %37 = vector.broadcast %cst_14 : f32 to vector<32x64xf32>
    %38 = arith.addf %37, %36 : vector<32x64xf32>
    %39 = arith.divf %37, %38 : vector<32x64xf32>
    %40 = arith.mulf %34, %39 : vector<32x64xf32>
    %41 = arith.truncf %40 : vector<32x64xf32> to vector<32x64xbf16>
    %c0_15 = arith.constant 0 : index
    %c0_16 = arith.constant 0 : index
    %42 = vector.load %arg6[%c0_15, %c0_16] : memref<64x32xbf16, #tpu.memory_space<vmem>>, vector<64x32xbf16>
    %cst_17 = arith.constant dense<0.000000e+00> : vector<32x32xf32>
    %43 = tpu.matmul %41, %42, %cst_17 {dimension_numbers = #tpu.dot_dimension_numbers<[1], [0], [0], [1], [0, 0, 1, 1], [], []>} : vector<32x64xbf16>, vector<64x32xbf16>, vector<32x32xf32> -> vector<32x32xf32>
    %c0_18 = arith.constant 0 : index
    %c0_19 = arith.constant 0 : index
    %44 = vector.load %arg7[%c0_18, %c0_19] : memref<1x32xf32, #tpu.memory_space<vmem>>, vector<1x32xf32>
    %45 = vector.broadcast %44 : vector<1x32xf32> to vector<32x32xf32>
    %46 = arith.addf %43, %45 : vector<32x32xf32>
    %cst_20 = arith.constant 5.000000e-01 : f32
    %47 = vector.broadcast %cst_20 : f32 to vector<32x32xf32>
    %48 = arith.mulf %47, %46 : vector<32x32xf32>
    %49 = arith.addf %1, %48 : vector<32x32xf32>
    %50 = vector.extract_strided_slice %2 {offsets = [1, 0, 0], sizes = [1, 1, 32], strides = [1, 1, 1]} : vector<5x2x32xf32> to vector<1x1x32xf32>
    %51 = vector.shape_cast %50 : vector<1x1x32xf32> to vector<1x32xf32>
    %52 = vector.extract_strided_slice %2 {offsets = [1, 1, 0], sizes = [1, 1, 32], strides = [1, 1, 1]} : vector<5x2x32xf32> to vector<1x1x32xf32>
    %53 = vector.shape_cast %52 : vector<1x1x32xf32> to vector<1x32xf32>
    %cst_21 = arith.constant dense<0.000000e+00> : vector<32xf32>
    %54 = vector.multi_reduction <add>, %49, %cst_21 [1] : vector<32x32xf32> to vector<32xf32>
    %55 = vector.shape_cast %54 : vector<32xf32> to vector<32x1xf32>
    %cst_22 = arith.constant 3.200000e+01 : f32
    %56 = vector.broadcast %cst_22 : f32 to vector<32x1xf32>
    %57 = arith.divf %55, %56 : vector<32x1xf32>
    %58 = vector.broadcast %57 : vector<32x1xf32> to vector<32x32xf32>
    %59 = arith.subf %49, %58 : vector<32x32xf32>
    %60 = arith.mulf %59, %59 : vector<32x32xf32>
    %cst_23 = arith.constant dense<0.000000e+00> : vector<32xf32>
    %61 = vector.multi_reduction <add>, %60, %cst_23 [1] : vector<32x32xf32> to vector<32xf32>
    %62 = vector.shape_cast %61 : vector<32xf32> to vector<32x1xf32>
    %cst_24 = arith.constant 3.200000e+01 : f32
    %63 = vector.broadcast %cst_24 : f32 to vector<32x1xf32>
    %64 = arith.divf %62, %63 : vector<32x1xf32>
    %65 = vector.broadcast %57 : vector<32x1xf32> to vector<32x32xf32>
    %66 = arith.subf %49, %65 : vector<32x32xf32>
    %cst_25 = arith.constant 9.99999996E-13 : f32
    %67 = vector.broadcast %cst_25 : f32 to vector<32x1xf32>
    %68 = arith.addf %64, %67 : vector<32x1xf32>
    %69 = math.rsqrt %68 : vector<32x1xf32>
    %70 = vector.broadcast %69 : vector<32x1xf32> to vector<32x32xf32>
    %71 = arith.mulf %66, %70 : vector<32x32xf32>
    %72 = vector.broadcast %51 : vector<1x32xf32> to vector<32x32xf32>
    %73 = arith.mulf %71, %72 : vector<32x32xf32>
    %74 = vector.broadcast %53 : vector<1x32xf32> to vector<32x32xf32>
    %75 = arith.addf %73, %74 : vector<32x32xf32>
    %76 = arith.truncf %75 : vector<32x32xf32> to vector<32x32xbf16>
    %c0_26 = arith.constant 0 : index
    %c0_27 = arith.constant 0 : index
    %77 = vector.load %arg12[%c0_26, %c0_27] : memref<32x96xbf16, #tpu.memory_space<vmem>>, vector<32x96xbf16>
    %cst_28 = arith.constant dense<0.000000e+00> : vector<32x96xf32>
    %78 = tpu.matmul %76, %77, %cst_28 {dimension_numbers = #tpu.dot_dimension_numbers<[1], [0], [0], [1], [0, 0, 1, 1], [], []>} : vector<32x32xbf16>, vector<32x96xbf16>, vector<32x96xf32> -> vector<32x96xf32>
    %c0_29 = arith.constant 0 : index
    %c0_30 = arith.constant 0 : index
    %79 = vector.load %arg13[%c0_29, %c0_30] : memref<1x96xf32, #tpu.memory_space<vmem>>, vector<1x96xf32>
    %80 = vector.broadcast %79 : vector<1x96xf32> to vector<32x96xf32>
    %81 = arith.addf %78, %80 : vector<32x96xf32>
    %82 = vector.extract_strided_slice %81 {offsets = [0, 0], sizes = [32, 32], strides = [1, 1]} : vector<32x96xf32> to vector<32x32xf32>
    %83 = vector.extract_strided_slice %82 {offsets = [0, 0], sizes = [32, 8], strides = [1, 1]} : vector<32x32xf32> to vector<32x8xf32>
    %84 = vector.extract_strided_slice %82 {offsets = [0, 8], sizes = [32, 8], strides = [1, 1]} : vector<32x32xf32> to vector<32x8xf32>
    %85 = vector.extract_strided_slice %82 {offsets = [0, 16], sizes = [32, 8], strides = [1, 1]} : vector<32x32xf32> to vector<32x8xf32>
    %86 = vector.extract_strided_slice %82 {offsets = [0, 24], sizes = [32, 8], strides = [1, 1]} : vector<32x32xf32> to vector<32x8xf32>
    %87 = vector.shape_cast %83 : vector<32x8xf32> to vector<1x32x8xf32>
    %88 = vector.shape_cast %84 : vector<32x8xf32> to vector<1x32x8xf32>
    %89 = vector.shape_cast %85 : vector<32x8xf32> to vector<1x32x8xf32>
    %90 = vector.shape_cast %86 : vector<32x8xf32> to vector<1x32x8xf32>
    %91 = tpu.concatenate %87, %88, %89, %90 in 0 : vector<1x32x8xf32>, vector<1x32x8xf32>, vector<1x32x8xf32>, vector<1x32x8xf32> -> vector<4x32x8xf32>
    %92 = vector.shape_cast %91 : vector<4x32x8xf32> to vector<8x16x8xf32>
    %93 = vector.extract_strided_slice %81 {offsets = [0, 32], sizes = [32, 32], strides = [1, 1]} : vector<32x96xf32> to vector<32x32xf32>
    %94 = vector.extract_strided_slice %93 {offsets = [0, 0], sizes = [32, 8], strides = [1, 1]} : vector<32x32xf32> to vector<32x8xf32>
    %95 = vector.extract_strided_slice %93 {offsets = [0, 8], sizes = [32, 8], strides = [1, 1]} : vector<32x32xf32> to vector<32x8xf32>
    %96 = vector.extract_strided_slice %93 {offsets = [0, 16], sizes = [32, 8], strides = [1, 1]} : vector<32x32xf32> to vector<32x8xf32>
    %97 = vector.extract_strided_slice %93 {offsets = [0, 24], sizes = [32, 8], strides = [1, 1]} : vector<32x32xf32> to vector<32x8xf32>
    %98 = vector.shape_cast %94 : vector<32x8xf32> to vector<1x32x8xf32>
    %99 = vector.shape_cast %95 : vector<32x8xf32> to vector<1x32x8xf32>
    %100 = vector.shape_cast %96 : vector<32x8xf32> to vector<1x32x8xf32>
    %101 = vector.shape_cast %97 : vector<32x8xf32> to vector<1x32x8xf32>
    %102 = tpu.concatenate %98, %99, %100, %101 in 0 : vector<1x32x8xf32>, vector<1x32x8xf32>, vector<1x32x8xf32>, vector<1x32x8xf32> -> vector<4x32x8xf32>
    %103 = vector.shape_cast %102 : vector<4x32x8xf32> to vector<8x16x8xf32>
    %104 = vector.extract_strided_slice %81 {offsets = [0, 64], sizes = [32, 32], strides = [1, 1]} : vector<32x96xf32> to vector<32x32xf32>
    %105 = vector.extract_strided_slice %104 {offsets = [0, 0], sizes = [32, 8], strides = [1, 1]} : vector<32x32xf32> to vector<32x8xf32>
    %106 = vector.extract_strided_slice %104 {offsets = [0, 8], sizes = [32, 8], strides = [1, 1]} : vector<32x32xf32> to vector<32x8xf32>
    %107 = vector.extract_strided_slice %104 {offsets = [0, 16], sizes = [32, 8], strides = [1, 1]} : vector<32x32xf32> to vector<32x8xf32>
    %108 = vector.extract_strided_slice %104 {offsets = [0, 24], sizes = [32, 8], strides = [1, 1]} : vector<32x32xf32> to vector<32x8xf32>
    %109 = vector.shape_cast %105 : vector<32x8xf32> to vector<1x32x8xf32>
    %110 = vector.shape_cast %106 : vector<32x8xf32> to vector<1x32x8xf32>
    %111 = vector.shape_cast %107 : vector<32x8xf32> to vector<1x32x8xf32>
    %112 = vector.shape_cast %108 : vector<32x8xf32> to vector<1x32x8xf32>
    %113 = tpu.concatenate %109, %110, %111, %112 in 0 : vector<1x32x8xf32>, vector<1x32x8xf32>, vector<1x32x8xf32>, vector<1x32x8xf32> -> vector<4x32x8xf32>
    %114 = vector.shape_cast %113 : vector<4x32x8xf32> to vector<8x16x8xf32>
    %c0_31 = arith.constant 0 : index
    %c0_32 = arith.constant 0 : index
    %c0_33 = arith.constant 0 : index
    %115 = vector.load %arg2[%c0_31, %c0_32, %c0_33] : memref<2x1x16xf32, #tpu.memory_space<vmem>>, vector<2x1x16xf32>
    %116 = vector.shape_cast %115 : vector<2x1x16xf32> to vector<1x2x1x16xf32>
    %117 = vector.shape_cast %116 : vector<1x2x1x16xf32> to vector<1x2x1x16xf32>
    %118 = vector.broadcast %117 : vector<1x2x1x16xf32> to vector<4x2x1x16xf32>
    %119 = vector.shape_cast %118 : vector<4x2x1x16xf32> to vector<8x1x16xf32>
    %cst_34 = arith.constant 0.000000e+00 : f32
    %120 = vector.broadcast %cst_34 : f32 to vector<8x1x16xf32>
    %121 = arith.cmpf ogt, %119, %120 : vector<8x1x16xf32>
    "tpu.trace_start"() <{level = 10 : i32, message = "ntd,nsd->nts"}> : () -> ()
    %cst_35 = arith.constant dense<0.000000e+00> : vector<8x16x16xf32>
    %122 = tpu.matmul %92, %103, %cst_35 {dimension_numbers = #tpu.dot_dimension_numbers<[2], [2], [1], [1], [0, 0, 0, 1, 1, 1], [0], [0]>} : vector<8x16x8xf32>, vector<8x16x8xf32>, vector<8x16x16xf32> -> vector<8x16x16xf32>
    %cst_36 = arith.constant -3.40282347E+38 : f32
    "tpu.trace_stop"() : () -> ()
    %123 = vector.shape_cast %121 : vector<8x1x16xi1> to vector<8x1x16xi1>
    %124 = vector.broadcast %123 : vector<8x1x16xi1> to vector<8x16x16xi1>
    %125 = vector.broadcast %cst_36 : f32 to vector<8x16x16xf32>
    %126 = arith.select %124, %122, %125 : vector<8x16x16xi1>, vector<8x16x16xf32>
    %cst_37 = arith.constant dense<0xFF800000> : vector<8x16xf32>
    %127 = vector.multi_reduction <maximumf>, %126, %cst_37 [2] : vector<8x16x16xf32> to vector<8x16xf32>
    %128 = vector.shape_cast %127 : vector<8x16xf32> to vector<8x16x1xf32>
    %129 = vector.broadcast %128 : vector<8x16x1xf32> to vector<8x16x16xf32>
    %130 = arith.subf %126, %129 : vector<8x16x16xf32>
    %131 = math.exp %130 : vector<8x16x16xf32>
    %cst_38 = arith.constant dense<0.000000e+00> : vector<8x16xf32>
    %132 = vector.multi_reduction <add>, %131, %cst_38 [2] : vector<8x16x16xf32> to vector<8x16xf32>
    %133 = vector.shape_cast %132 : vector<8x16xf32> to vector<8x16x1xf32>
    %134 = tpu.reciprocal %133 {approx = true} : vector<8x16x1xf32> -> vector<8x16x1xf32>
    %135 = vector.broadcast %134 : vector<8x16x1xf32> to vector<8x16x16xf32>
    %136 = arith.mulf %131, %135 : vector<8x16x16xf32>
    %cst_39 = arith.constant 0.000000e+00 : f32
    %137 = vector.shape_cast %121 : vector<8x1x16xi1> to vector<8x1x16xi1>
    %138 = vector.broadcast %137 : vector<8x1x16xi1> to vector<8x16x16xi1>
    %139 = vector.broadcast %cst_39 : f32 to vector<8x16x16xf32>
    %140 = arith.select %138, %136, %139 : vector<8x16x16xi1>, vector<8x16x16xf32>
    "tpu.trace_start"() <{level = 10 : i32, message = "nts,nsd->ntd"}> : () -> ()
    %cst_40 = arith.constant dense<0.000000e+00> : vector<8x16x8xf32>
    %141 = tpu.matmul %140, %114, %cst_40 {dimension_numbers = #tpu.dot_dimension_numbers<[2], [1], [1], [2], [0, 0, 0, 1, 1, 2], [0], [0]>} : vector<8x16x16xf32>, vector<8x16x8xf32>, vector<8x16x8xf32> -> vector<8x16x8xf32>
    "tpu.trace_stop"() : () -> ()
    %142 = vector.shape_cast %141 : vector<8x16x8xf32> to vector<4x32x8xf32>
    %143 = vector.extract_strided_slice %142 {offsets = [0, 0, 0], sizes = [1, 32, 8], strides = [1, 1, 1]} : vector<4x32x8xf32> to vector<1x32x8xf32>
    %144 = vector.shape_cast %143 : vector<1x32x8xf32> to vector<32x8xf32>
    %145 = vector.extract_strided_slice %142 {offsets = [1, 0, 0], sizes = [1, 32, 8], strides = [1, 1, 1]} : vector<4x32x8xf32> to vector<1x32x8xf32>
    %146 = vector.shape_cast %145 : vector<1x32x8xf32> to vector<32x8xf32>
    %147 = vector.extract_strided_slice %142 {offsets = [2, 0, 0], sizes = [1, 32, 8], strides = [1, 1, 1]} : vector<4x32x8xf32> to vector<1x32x8xf32>
    %148 = vector.shape_cast %147 : vector<1x32x8xf32> to vector<32x8xf32>
    %149 = vector.extract_strided_slice %142 {offsets = [3, 0, 0], sizes = [1, 32, 8], strides = [1, 1, 1]} : vector<4x32x8xf32> to vector<1x32x8xf32>
    %150 = vector.shape_cast %149 : vector<1x32x8xf32> to vector<32x8xf32>
    %151 = tpu.concatenate %144, %146, %148, %150 in 1 : vector<32x8xf32>, vector<32x8xf32>, vector<32x8xf32>, vector<32x8xf32> -> vector<32x32xf32>
    %152 = arith.truncf %151 : vector<32x32xf32> to vector<32x32xbf16>
    %c0_41 = arith.constant 0 : index
    %c0_42 = arith.constant 0 : index
    %153 = vector.load %arg14[%c0_41, %c0_42] : memref<32x32xbf16, #tpu.memory_space<vmem>>, vector<32x32xbf16>
    %cst_43 = arith.constant dense<0.000000e+00> : vector<32x32xf32>
    %154 = tpu.matmul %152, %153, %cst_43 {dimension_numbers = #tpu.dot_dimension_numbers<[1], [0], [0], [1], [0, 0, 1, 1], [], []>} : vector<32x32xbf16>, vector<32x32xbf16>, vector<32x32xf32> -> vector<32x32xf32>
    %c0_44 = arith.constant 0 : index
    %c0_45 = arith.constant 0 : index
    %155 = vector.load %arg15[%c0_44, %c0_45] : memref<1x32xf32, #tpu.memory_space<vmem>>, vector<1x32xf32>
    %156 = vector.broadcast %155 : vector<1x32xf32> to vector<32x32xf32>
    %157 = arith.addf %154, %156 : vector<32x32xf32>
    %158 = arith.addf %49, %157 : vector<32x32xf32>
    %159 = vector.extract_strided_slice %2 {offsets = [2, 0, 0], sizes = [1, 1, 32], strides = [1, 1, 1]} : vector<5x2x32xf32> to vector<1x1x32xf32>
    %160 = vector.shape_cast %159 : vector<1x1x32xf32> to vector<1x32xf32>
    %161 = vector.extract_strided_slice %2 {offsets = [2, 1, 0], sizes = [1, 1, 32], strides = [1, 1, 1]} : vector<5x2x32xf32> to vector<1x1x32xf32>
    %162 = vector.shape_cast %161 : vector<1x1x32xf32> to vector<1x32xf32>
    %cst_46 = arith.constant dense<0.000000e+00> : vector<32xf32>
    %163 = vector.multi_reduction <add>, %158, %cst_46 [1] : vector<32x32xf32> to vector<32xf32>
    %164 = vector.shape_cast %163 : vector<32xf32> to vector<32x1xf32>
    %cst_47 = arith.constant 3.200000e+01 : f32
    %165 = vector.broadcast %cst_47 : f32 to vector<32x1xf32>
    %166 = arith.divf %164, %165 : vector<32x1xf32>
    %167 = vector.broadcast %166 : vector<32x1xf32> to vector<32x32xf32>
    %168 = arith.subf %158, %167 : vector<32x32xf32>
    %169 = arith.mulf %168, %168 : vector<32x32xf32>
    %cst_48 = arith.constant dense<0.000000e+00> : vector<32xf32>
    %170 = vector.multi_reduction <add>, %169, %cst_48 [1] : vector<32x32xf32> to vector<32xf32>
    %171 = vector.shape_cast %170 : vector<32xf32> to vector<32x1xf32>
    %cst_49 = arith.constant 3.200000e+01 : f32
    %172 = vector.broadcast %cst_49 : f32 to vector<32x1xf32>
    %173 = arith.divf %171, %172 : vector<32x1xf32>
    %174 = vector.broadcast %166 : vector<32x1xf32> to vector<32x32xf32>
    %175 = arith.subf %158, %174 : vector<32x32xf32>
    %cst_50 = arith.constant 9.99999996E-13 : f32
    %176 = vector.broadcast %cst_50 : f32 to vector<32x1xf32>
    %177 = arith.addf %173, %176 : vector<32x1xf32>
    %178 = math.rsqrt %177 : vector<32x1xf32>
    %179 = vector.broadcast %178 : vector<32x1xf32> to vector<32x32xf32>
    %180 = arith.mulf %175, %179 : vector<32x32xf32>
    %181 = vector.broadcast %160 : vector<1x32xf32> to vector<32x32xf32>
    %182 = arith.mulf %180, %181 : vector<32x32xf32>
    %183 = vector.broadcast %162 : vector<1x32xf32> to vector<32x32xf32>
    %184 = arith.addf %182, %183 : vector<32x32xf32>
    %185 = arith.truncf %184 : vector<32x32xf32> to vector<32x32xbf16>
    %c0_51 = arith.constant 0 : index
    %c0_52 = arith.constant 0 : index
    %186 = vector.load %arg16[%c0_51, %c0_52] : memref<32x64xbf16, #tpu.memory_space<vmem>>, vector<32x64xbf16>
    %cst_53 = arith.constant dense<0.000000e+00> : vector<32x64xf32>
    %187 = tpu.matmul %185, %186, %cst_53 {dimension_numbers = #tpu.dot_dimension_numbers<[1], [0], [0], [1], [0, 0, 1, 1], [], []>} : vector<32x32xbf16>, vector<32x64xbf16>, vector<32x64xf32> -> vector<32x64xf32>
    %c0_54 = arith.constant 0 : index
    %c0_55 = arith.constant 0 : index
    %188 = vector.load %arg17[%c0_54, %c0_55] : memref<1x64xf32, #tpu.memory_space<vmem>>, vector<1x64xf32>
    %189 = vector.broadcast %188 : vector<1x64xf32> to vector<32x64xf32>
    %190 = arith.addf %187, %189 : vector<32x64xf32>
    %191 = vector.extract_strided_slice %190 {offsets = [0, 0], sizes = [32, 32], strides = [1, 1]} : vector<32x64xf32> to vector<32x32xf32>
    %192 = vector.extract_strided_slice %190 {offsets = [0, 32], sizes = [32, 32], strides = [1, 1]} : vector<32x64xf32> to vector<32x32xf32>
    %193 = arith.negf %192 : vector<32x32xf32>
    %194 = math.exp %193 : vector<32x32xf32>
    %cst_56 = arith.constant 1.000000e+00 : f32
    %195 = vector.broadcast %cst_56 : f32 to vector<32x32xf32>
    %196 = arith.addf %195, %194 : vector<32x32xf32>
    %197 = arith.divf %195, %196 : vector<32x32xf32>
    %198 = arith.mulf %191, %197 : vector<32x32xf32>
    %c0_57 = arith.constant 0 : index
    %c0_58 = arith.constant 0 : index
    %199 = vector.load %arg18[%c0_57, %c0_58] : memref<8x32xf32, #tpu.memory_space<vmem>>, vector<8x32xf32>
    %200 = tpu.iota {dimensions = array<i32: 1>} : vector<2x16x1xi32>
    %201 = vector.shape_cast %200 : vector<2x16x1xi32> to vector<32x1xi32>
    %202 = vector.extract_strided_slice %199 {offsets = [3, 0], sizes = [1, 32], strides = [1, 1]} : vector<8x32xf32> to vector<1x32xf32>
    %203 = vector.broadcast %202 : vector<1x32xf32> to vector<32x32xf32>
    %204 = arith.mulf %198, %203 : vector<32x32xf32>
    %c3_i32 = arith.constant 3 : i32
    %205 = tpu.dynamic_rotate %198 by %c3_i32 dim 0 : vector<32x32xf32>, i32 -> vector<32x32xf32>
    %c-3_i32 = arith.constant -3 : i32
    %206 = vector.broadcast %c-3_i32 : i32 to vector<32x1xi32>
    %207 = arith.addi %201, %206 : vector<32x1xi32>
    %c0_i32 = arith.constant 0 : i32
    %208 = vector.broadcast %c0_i32 : i32 to vector<32x1xi32>
    %209 = arith.cmpi sge, %207, %208 : vector<32x1xi32>
    %c-3_i32_59 = arith.constant -3 : i32
    %210 = vector.broadcast %c-3_i32_59 : i32 to vector<32x1xi32>
    %211 = arith.addi %201, %210 : vector<32x1xi32>
    %c16_i32 = arith.constant 16 : i32
    %212 = vector.broadcast %c16_i32 : i32 to vector<32x1xi32>
    %213 = arith.cmpi slt, %211, %212 : vector<32x1xi32>
    %214 = arith.andi %209, %213 : vector<32x1xi1>
    %cst_60 = arith.constant 0.000000e+00 : f32
    %215 = vector.shape_cast %214 : vector<32x1xi1> to vector<32x1xi1>
    %216 = vector.broadcast %215 : vector<32x1xi1> to vector<32x32xi1>
    %217 = vector.broadcast %cst_60 : f32 to vector<32x32xf32>
    %218 = arith.select %216, %205, %217 : vector<32x32xi1>, vector<32x32xf32>
    %219 = vector.extract_strided_slice %199 {offsets = [0, 0], sizes = [1, 32], strides = [1, 1]} : vector<8x32xf32> to vector<1x32xf32>
    %220 = vector.broadcast %219 : vector<1x32xf32> to vector<32x32xf32>
    %221 = arith.mulf %218, %220 : vector<32x32xf32>
    %222 = arith.addf %204, %221 : vector<32x32xf32>
    %c2_i32 = arith.constant 2 : i32
    %223 = tpu.dynamic_rotate %198 by %c2_i32 dim 0 : vector<32x32xf32>, i32 -> vector<32x32xf32>
    %c-2_i32 = arith.constant -2 : i32
    %224 = vector.broadcast %c-2_i32 : i32 to vector<32x1xi32>
    %225 = arith.addi %201, %224 : vector<32x1xi32>
    %c0_i32_61 = arith.constant 0 : i32
    %226 = vector.broadcast %c0_i32_61 : i32 to vector<32x1xi32>
    %227 = arith.cmpi sge, %225, %226 : vector<32x1xi32>
    %c-2_i32_62 = arith.constant -2 : i32
    %228 = vector.broadcast %c-2_i32_62 : i32 to vector<32x1xi32>
    %229 = arith.addi %201, %228 : vector<32x1xi32>
    %c16_i32_63 = arith.constant 16 : i32
    %230 = vector.broadcast %c16_i32_63 : i32 to vector<32x1xi32>
    %231 = arith.cmpi slt, %229, %230 : vector<32x1xi32>
    %232 = arith.andi %227, %231 : vector<32x1xi1>
    %cst_64 = arith.constant 0.000000e+00 : f32
    %233 = vector.shape_cast %232 : vector<32x1xi1> to vector<32x1xi1>
    %234 = vector.broadcast %233 : vector<32x1xi1> to vector<32x32xi1>
    %235 = vector.broadcast %cst_64 : f32 to vector<32x32xf32>
    %236 = arith.select %234, %223, %235 : vector<32x32xi1>, vector<32x32xf32>
    %237 = vector.extract_strided_slice %199 {offsets = [1, 0], sizes = [1, 32], strides = [1, 1]} : vector<8x32xf32> to vector<1x32xf32>
    %238 = vector.broadcast %237 : vector<1x32xf32> to vector<32x32xf32>
    %239 = arith.mulf %236, %238 : vector<32x32xf32>
    %240 = arith.addf %222, %239 : vector<32x32xf32>
    %c1_i32 = arith.constant 1 : i32
    %241 = tpu.dynamic_rotate %198 by %c1_i32 dim 0 : vector<32x32xf32>, i32 -> vector<32x32xf32>
    %c-1_i32 = arith.constant -1 : i32
    %242 = vector.broadcast %c-1_i32 : i32 to vector<32x1xi32>
    %243 = arith.addi %201, %242 : vector<32x1xi32>
    %c0_i32_65 = arith.constant 0 : i32
    %244 = vector.broadcast %c0_i32_65 : i32 to vector<32x1xi32>
    %245 = arith.cmpi sge, %243, %244 : vector<32x1xi32>
    %c-1_i32_66 = arith.constant -1 : i32
    %246 = vector.broadcast %c-1_i32_66 : i32 to vector<32x1xi32>
    %247 = arith.addi %201, %246 : vector<32x1xi32>
    %c16_i32_67 = arith.constant 16 : i32
    %248 = vector.broadcast %c16_i32_67 : i32 to vector<32x1xi32>
    %249 = arith.cmpi slt, %247, %248 : vector<32x1xi32>
    %250 = arith.andi %245, %249 : vector<32x1xi1>
    %cst_68 = arith.constant 0.000000e+00 : f32
    %251 = vector.shape_cast %250 : vector<32x1xi1> to vector<32x1xi1>
    %252 = vector.broadcast %251 : vector<32x1xi1> to vector<32x32xi1>
    %253 = vector.broadcast %cst_68 : f32 to vector<32x32xf32>
    %254 = arith.select %252, %241, %253 : vector<32x32xi1>, vector<32x32xf32>
    %255 = vector.extract_strided_slice %199 {offsets = [2, 0], sizes = [1, 32], strides = [1, 1]} : vector<8x32xf32> to vector<1x32xf32>
    %256 = vector.broadcast %255 : vector<1x32xf32> to vector<32x32xf32>
    %257 = arith.mulf %254, %256 : vector<32x32xf32>
    %258 = arith.addf %240, %257 : vector<32x32xf32>
    %c31_i32 = arith.constant 31 : i32
    %259 = tpu.dynamic_rotate %198 by %c31_i32 dim 0 : vector<32x32xf32>, i32 -> vector<32x32xf32>
    %c1_i32_69 = arith.constant 1 : i32
    %260 = vector.broadcast %c1_i32_69 : i32 to vector<32x1xi32>
    %261 = arith.addi %201, %260 : vector<32x1xi32>
    %c0_i32_70 = arith.constant 0 : i32
    %262 = vector.broadcast %c0_i32_70 : i32 to vector<32x1xi32>
    %263 = arith.cmpi sge, %261, %262 : vector<32x1xi32>
    %c1_i32_71 = arith.constant 1 : i32
    %264 = vector.broadcast %c1_i32_71 : i32 to vector<32x1xi32>
    %265 = arith.addi %201, %264 : vector<32x1xi32>
    %c16_i32_72 = arith.constant 16 : i32
    %266 = vector.broadcast %c16_i32_72 : i32 to vector<32x1xi32>
    %267 = arith.cmpi slt, %265, %266 : vector<32x1xi32>
    %268 = arith.andi %263, %267 : vector<32x1xi1>
    %cst_73 = arith.constant 0.000000e+00 : f32
    %269 = vector.shape_cast %268 : vector<32x1xi1> to vector<32x1xi1>
    %270 = vector.broadcast %269 : vector<32x1xi1> to vector<32x32xi1>
    %271 = vector.broadcast %cst_73 : f32 to vector<32x32xf32>
    %272 = arith.select %270, %259, %271 : vector<32x32xi1>, vector<32x32xf32>
    %273 = vector.extract_strided_slice %199 {offsets = [4, 0], sizes = [1, 32], strides = [1, 1]} : vector<8x32xf32> to vector<1x32xf32>
    %274 = vector.broadcast %273 : vector<1x32xf32> to vector<32x32xf32>
    %275 = arith.mulf %272, %274 : vector<32x32xf32>
    %276 = arith.addf %258, %275 : vector<32x32xf32>
    %c30_i32 = arith.constant 30 : i32
    %277 = tpu.dynamic_rotate %198 by %c30_i32 dim 0 : vector<32x32xf32>, i32 -> vector<32x32xf32>
    %c2_i32_74 = arith.constant 2 : i32
    %278 = vector.broadcast %c2_i32_74 : i32 to vector<32x1xi32>
    %279 = arith.addi %201, %278 : vector<32x1xi32>
    %c0_i32_75 = arith.constant 0 : i32
    %280 = vector.broadcast %c0_i32_75 : i32 to vector<32x1xi32>
    %281 = arith.cmpi sge, %279, %280 : vector<32x1xi32>
    %c2_i32_76 = arith.constant 2 : i32
    %282 = vector.broadcast %c2_i32_76 : i32 to vector<32x1xi32>
    %283 = arith.addi %201, %282 : vector<32x1xi32>
    %c16_i32_77 = arith.constant 16 : i32
    %284 = vector.broadcast %c16_i32_77 : i32 to vector<32x1xi32>
    %285 = arith.cmpi slt, %283, %284 : vector<32x1xi32>
    %286 = arith.andi %281, %285 : vector<32x1xi1>
    %cst_78 = arith.constant 0.000000e+00 : f32
    %287 = vector.shape_cast %286 : vector<32x1xi1> to vector<32x1xi1>
    %288 = vector.broadcast %287 : vector<32x1xi1> to vector<32x32xi1>
    %289 = vector.broadcast %cst_78 : f32 to vector<32x32xf32>
    %290 = arith.select %288, %277, %289 : vector<32x32xi1>, vector<32x32xf32>
    %291 = vector.extract_strided_slice %199 {offsets = [5, 0], sizes = [1, 32], strides = [1, 1]} : vector<8x32xf32> to vector<1x32xf32>
    %292 = vector.broadcast %291 : vector<1x32xf32> to vector<32x32xf32>
    %293 = arith.mulf %290, %292 : vector<32x32xf32>
    %294 = arith.addf %276, %293 : vector<32x32xf32>
    %c29_i32 = arith.constant 29 : i32
    %295 = tpu.dynamic_rotate %198 by %c29_i32 dim 0 : vector<32x32xf32>, i32 -> vector<32x32xf32>
    %c3_i32_79 = arith.constant 3 : i32
    %296 = vector.broadcast %c3_i32_79 : i32 to vector<32x1xi32>
    %297 = arith.addi %201, %296 : vector<32x1xi32>
    %c0_i32_80 = arith.constant 0 : i32
    %298 = vector.broadcast %c0_i32_80 : i32 to vector<32x1xi32>
    %299 = arith.cmpi sge, %297, %298 : vector<32x1xi32>
    %c3_i32_81 = arith.constant 3 : i32
    %300 = vector.broadcast %c3_i32_81 : i32 to vector<32x1xi32>
    %301 = arith.addi %201, %300 : vector<32x1xi32>
    %c16_i32_82 = arith.constant 16 : i32
    %302 = vector.broadcast %c16_i32_82 : i32 to vector<32x1xi32>
    %303 = arith.cmpi slt, %301, %302 : vector<32x1xi32>
    %304 = arith.andi %299, %303 : vector<32x1xi1>
    %cst_83 = arith.constant 0.000000e+00 : f32
    %305 = vector.shape_cast %304 : vector<32x1xi1> to vector<32x1xi1>
    %306 = vector.broadcast %305 : vector<32x1xi1> to vector<32x32xi1>
    %307 = vector.broadcast %cst_83 : f32 to vector<32x32xf32>
    %308 = arith.select %306, %295, %307 : vector<32x32xi1>, vector<32x32xf32>
    %309 = vector.extract_strided_slice %199 {offsets = [6, 0], sizes = [1, 32], strides = [1, 1]} : vector<8x32xf32> to vector<1x32xf32>
    %310 = vector.broadcast %309 : vector<1x32xf32> to vector<32x32xf32>
    %311 = arith.mulf %308, %310 : vector<32x32xf32>
    %312 = arith.addf %294, %311 : vector<32x32xf32>
    %313 = vector.extract_strided_slice %199 {offsets = [7, 0], sizes = [1, 32], strides = [1, 1]} : vector<8x32xf32> to vector<1x32xf32>
    %314 = vector.broadcast %313 : vector<1x32xf32> to vector<32x32xf32>
    %315 = arith.addf %312, %314 : vector<32x32xf32>
    %c0_84 = arith.constant 0 : index
    %c0_85 = arith.constant 0 : index
    %316 = vector.load %arg19[%c0_84, %c0_85] : memref<2x32xf32, #tpu.memory_space<vmem>>, vector<2x32xf32>
    %317 = vector.extract_strided_slice %316 {offsets = [0, 0], sizes = [1, 32], strides = [1, 1]} : vector<2x32xf32> to vector<1x32xf32>
    %318 = vector.broadcast %317 : vector<1x32xf32> to vector<32x32xf32>
    %319 = arith.mulf %315, %318 : vector<32x32xf32>
    %320 = vector.extract_strided_slice %316 {offsets = [1, 0], sizes = [1, 32], strides = [1, 1]} : vector<2x32xf32> to vector<1x32xf32>
    %321 = vector.broadcast %320 : vector<1x32xf32> to vector<32x32xf32>
    %322 = arith.addf %319, %321 : vector<32x32xf32>
    %323 = arith.negf %322 : vector<32x32xf32>
    %324 = math.exp %323 : vector<32x32xf32>
    %cst_86 = arith.constant 1.000000e+00 : f32
    %325 = vector.broadcast %cst_86 : f32 to vector<32x32xf32>
    %326 = arith.addf %325, %324 : vector<32x32xf32>
    %327 = arith.divf %325, %326 : vector<32x32xf32>
    %328 = arith.mulf %322, %327 : vector<32x32xf32>
    %329 = arith.truncf %328 : vector<32x32xf32> to vector<32x32xbf16>
    %c0_87 = arith.constant 0 : index
    %c0_88 = arith.constant 0 : index
    %330 = vector.load %arg20[%c0_87, %c0_88] : memref<32x32xbf16, #tpu.memory_space<vmem>>, vector<32x32xbf16>
    %cst_89 = arith.constant dense<0.000000e+00> : vector<32x32xf32>
    %331 = tpu.matmul %329, %330, %cst_89 {dimension_numbers = #tpu.dot_dimension_numbers<[1], [0], [0], [1], [0, 0, 1, 1], [], []>} : vector<32x32xbf16>, vector<32x32xbf16>, vector<32x32xf32> -> vector<32x32xf32>
    %c0_90 = arith.constant 0 : index
    %c0_91 = arith.constant 0 : index
    %332 = vector.load %arg21[%c0_90, %c0_91] : memref<1x32xf32, #tpu.memory_space<vmem>>, vector<1x32xf32>
    %333 = vector.broadcast %332 : vector<1x32xf32> to vector<32x32xf32>
    %334 = arith.addf %331, %333 : vector<32x32xf32>
    %335 = arith.addf %158, %334 : vector<32x32xf32>
    %336 = vector.extract_strided_slice %2 {offsets = [3, 0, 0], sizes = [1, 1, 32], strides = [1, 1, 1]} : vector<5x2x32xf32> to vector<1x1x32xf32>
    %337 = vector.shape_cast %336 : vector<1x1x32xf32> to vector<1x32xf32>
    %338 = vector.extract_strided_slice %2 {offsets = [3, 1, 0], sizes = [1, 1, 32], strides = [1, 1, 1]} : vector<5x2x32xf32> to vector<1x1x32xf32>
    %339 = vector.shape_cast %338 : vector<1x1x32xf32> to vector<1x32xf32>
    %cst_92 = arith.constant dense<0.000000e+00> : vector<32xf32>
    %340 = vector.multi_reduction <add>, %335, %cst_92 [1] : vector<32x32xf32> to vector<32xf32>
    %341 = vector.shape_cast %340 : vector<32xf32> to vector<32x1xf32>
    %cst_93 = arith.constant 3.200000e+01 : f32
    %342 = vector.broadcast %cst_93 : f32 to vector<32x1xf32>
    %343 = arith.divf %341, %342 : vector<32x1xf32>
    %344 = vector.broadcast %343 : vector<32x1xf32> to vector<32x32xf32>
    %345 = arith.subf %335, %344 : vector<32x32xf32>
    %346 = arith.mulf %345, %345 : vector<32x32xf32>
    %cst_94 = arith.constant dense<0.000000e+00> : vector<32xf32>
    %347 = vector.multi_reduction <add>, %346, %cst_94 [1] : vector<32x32xf32> to vector<32xf32>
    %348 = vector.shape_cast %347 : vector<32xf32> to vector<32x1xf32>
    %cst_95 = arith.constant 3.200000e+01 : f32
    %349 = vector.broadcast %cst_95 : f32 to vector<32x1xf32>
    %350 = arith.divf %348, %349 : vector<32x1xf32>
    %351 = vector.broadcast %343 : vector<32x1xf32> to vector<32x32xf32>
    %352 = arith.subf %335, %351 : vector<32x32xf32>
    %cst_96 = arith.constant 9.99999996E-13 : f32
    %353 = vector.broadcast %cst_96 : f32 to vector<32x1xf32>
    %354 = arith.addf %350, %353 : vector<32x1xf32>
    %355 = math.rsqrt %354 : vector<32x1xf32>
    %356 = vector.broadcast %355 : vector<32x1xf32> to vector<32x32xf32>
    %357 = arith.mulf %352, %356 : vector<32x32xf32>
    %358 = vector.broadcast %337 : vector<1x32xf32> to vector<32x32xf32>
    %359 = arith.mulf %357, %358 : vector<32x32xf32>
    %360 = vector.broadcast %339 : vector<1x32xf32> to vector<32x32xf32>
    %361 = arith.addf %359, %360 : vector<32x32xf32>
    %362 = arith.truncf %361 : vector<32x32xf32> to vector<32x32xbf16>
    %c0_97 = arith.constant 0 : index
    %c0_98 = arith.constant 0 : index
    %363 = vector.load %arg8[%c0_97, %c0_98] : memref<32x64xbf16, #tpu.memory_space<vmem>>, vector<32x64xbf16>
    %cst_99 = arith.constant dense<0.000000e+00> : vector<32x64xf32>
    %364 = tpu.matmul %362, %363, %cst_99 {dimension_numbers = #tpu.dot_dimension_numbers<[1], [0], [0], [1], [0, 0, 1, 1], [], []>} : vector<32x32xbf16>, vector<32x64xbf16>, vector<32x64xf32> -> vector<32x64xf32>
    %c0_100 = arith.constant 0 : index
    %c0_101 = arith.constant 0 : index
    %365 = vector.load %arg9[%c0_100, %c0_101] : memref<1x64xf32, #tpu.memory_space<vmem>>, vector<1x64xf32>
    %366 = vector.broadcast %365 : vector<1x64xf32> to vector<32x64xf32>
    %367 = arith.addf %364, %366 : vector<32x64xf32>
    %368 = arith.negf %367 : vector<32x64xf32>
    %369 = math.exp %368 : vector<32x64xf32>
    %cst_102 = arith.constant 1.000000e+00 : f32
    %370 = vector.broadcast %cst_102 : f32 to vector<32x64xf32>
    %371 = arith.addf %370, %369 : vector<32x64xf32>
    %372 = arith.divf %370, %371 : vector<32x64xf32>
    %373 = arith.mulf %367, %372 : vector<32x64xf32>
    %374 = arith.truncf %373 : vector<32x64xf32> to vector<32x64xbf16>
    %c0_103 = arith.constant 0 : index
    %c0_104 = arith.constant 0 : index
    %375 = vector.load %arg10[%c0_103, %c0_104] : memref<64x32xbf16, #tpu.memory_space<vmem>>, vector<64x32xbf16>
    %cst_105 = arith.constant dense<0.000000e+00> : vector<32x32xf32>
    %376 = tpu.matmul %374, %375, %cst_105 {dimension_numbers = #tpu.dot_dimension_numbers<[1], [0], [0], [1], [0, 0, 1, 1], [], []>} : vector<32x64xbf16>, vector<64x32xbf16>, vector<32x32xf32> -> vector<32x32xf32>
    %c0_106 = arith.constant 0 : index
    %c0_107 = arith.constant 0 : index
    %377 = vector.load %arg11[%c0_106, %c0_107] : memref<1x32xf32, #tpu.memory_space<vmem>>, vector<1x32xf32>
    %378 = vector.broadcast %377 : vector<1x32xf32> to vector<32x32xf32>
    %379 = arith.addf %376, %378 : vector<32x32xf32>
    %cst_108 = arith.constant 5.000000e-01 : f32
    %380 = vector.broadcast %cst_108 : f32 to vector<32x32xf32>
    %381 = arith.mulf %380, %379 : vector<32x32xf32>
    %382 = arith.addf %335, %381 : vector<32x32xf32>
    %383 = vector.extract_strided_slice %2 {offsets = [4, 0, 0], sizes = [1, 1, 32], strides = [1, 1, 1]} : vector<5x2x32xf32> to vector<1x1x32xf32>
    %384 = vector.shape_cast %383 : vector<1x1x32xf32> to vector<1x32xf32>
    %385 = vector.extract_strided_slice %2 {offsets = [4, 1, 0], sizes = [1, 1, 32], strides = [1, 1, 1]} : vector<5x2x32xf32> to vector<1x1x32xf32>
    %386 = vector.shape_cast %385 : vector<1x1x32xf32> to vector<1x32xf32>
    %cst_109 = arith.constant dense<0.000000e+00> : vector<32xf32>
    %387 = vector.multi_reduction <add>, %382, %cst_109 [1] : vector<32x32xf32> to vector<32xf32>
    %388 = vector.shape_cast %387 : vector<32xf32> to vector<32x1xf32>
    %cst_110 = arith.constant 3.200000e+01 : f32
    %389 = vector.broadcast %cst_110 : f32 to vector<32x1xf32>
    %390 = arith.divf %388, %389 : vector<32x1xf32>
    %391 = vector.broadcast %390 : vector<32x1xf32> to vector<32x32xf32>
    %392 = arith.subf %382, %391 : vector<32x32xf32>
    %393 = arith.mulf %392, %392 : vector<32x32xf32>
    %cst_111 = arith.constant dense<0.000000e+00> : vector<32xf32>
    %394 = vector.multi_reduction <add>, %393, %cst_111 [1] : vector<32x32xf32> to vector<32xf32>
    %395 = vector.shape_cast %394 : vector<32xf32> to vector<32x1xf32>
    %cst_112 = arith.constant 3.200000e+01 : f32
    %396 = vector.broadcast %cst_112 : f32 to vector<32x1xf32>
    %397 = arith.divf %395, %396 : vector<32x1xf32>
    %398 = vector.broadcast %390 : vector<32x1xf32> to vector<32x32xf32>
    %399 = arith.subf %382, %398 : vector<32x32xf32>
    %cst_113 = arith.constant 9.99999996E-13 : f32
    %400 = vector.broadcast %cst_113 : f32 to vector<32x1xf32>
    %401 = arith.addf %397, %400 : vector<32x1xf32>
    %402 = math.rsqrt %401 : vector<32x1xf32>
    %403 = vector.broadcast %402 : vector<32x1xf32> to vector<32x32xf32>
    %404 = arith.mulf %399, %403 : vector<32x32xf32>
    %405 = vector.broadcast %384 : vector<1x32xf32> to vector<32x32xf32>
    %406 = arith.mulf %404, %405 : vector<32x32xf32>
    %407 = vector.broadcast %386 : vector<1x32xf32> to vector<32x32xf32>
    %408 = arith.addf %406, %407 : vector<32x32xf32>
    %409 = vector.shape_cast %408 : vector<32x32xf32> to vector<2x16x32xf32>
    %c0_114 = arith.constant 0 : index
    %c0_115 = arith.constant 0 : index
    %c0_116 = arith.constant 0 : index
    %410 = vector.load %arg22[%c0_114, %c0_115, %c0_116] : memref<2x16x32xf32, #tpu.memory_space<vmem>>, vector<2x16x32xf32>
    tpu.vector_store %arg22[%c0_114, %c0_115, %c0_116], %409 {strides = array<i32>} : memref<2x16x32xf32, #tpu.memory_space<vmem>>, vector<2x16x32xf32>,
    return
  }
  func.func @transform_0(%arg0: i32) -> (i32, i32, i32) {
    %c0_i32 = arith.constant 0 : i32
    %c0_i32_0 = arith.constant 0 : i32
    %c0_i32_1 = arith.constant 0 : i32
    return %arg0, %c0_i32, %c0_i32_0 : i32, i32, i32
  }
  func.func @transform_1(%arg0: i32) -> (i32, i32, i32) {
    %c0_i32 = arith.constant 0 : i32
    %c0_i32_0 = arith.constant 0 : i32
    %c0_i32_1 = arith.constant 0 : i32
    return %arg0, %c0_i32, %c0_i32_0 : i32, i32, i32
  }
  func.func @transform_2(%arg0: i32) -> (i32, i32, i32) {
    %c0_i32 = arith.constant 0 : i32
    %c0_i32_0 = arith.constant 0 : i32
    %c0_i32_1 = arith.constant 0 : i32
    %c0_i32_2 = arith.constant 0 : i32
    return %c0_i32, %c0_i32_0, %c0_i32_1 : i32, i32, i32
  }
  func.func @transform_3(%arg0: i32) -> (i32, i32) {
    %c0_i32 = arith.constant 0 : i32
    %c0_i32_0 = arith.constant 0 : i32
    %c0_i32_1 = arith.constant 0 : i32
    return %c0_i32, %c0_i32_0 : i32, i32
  }
  func.func @transform_4(%arg0: i32) -> (i32, i32) {
    %c0_i32 = arith.constant 0 : i32
    %c0_i32_0 = arith.constant 0 : i32
    %c0_i32_1 = arith.constant 0 : i32
    return %c0_i32, %c0_i32_0 : i32, i32
  }
  func.func @transform_5(%arg0: i32) -> (i32, i32) {
    %c0_i32 = arith.constant 0 : i32
    %c0_i32_0 = arith.constant 0 : i32
    %c0_i32_1 = arith.constant 0 : i32
    return %c0_i32, %c0_i32_0 : i32, i32
  }
  func.func @transform_6(%arg0: i32) -> (i32, i32) {
    %c0_i32 = arith.constant 0 : i32
    %c0_i32_0 = arith.constant 0 : i32
    %c0_i32_1 = arith.constant 0 : i32
    return %c0_i32, %c0_i32_0 : i32, i32
  }
  func.func @transform_7(%arg0: i32) -> (i32, i32) {
    %c0_i32 = arith.constant 0 : i32
    %c0_i32_0 = arith.constant 0 : i32
    %c0_i32_1 = arith.constant 0 : i32
    return %c0_i32, %c0_i32_0 : i32, i32
  }
  func.func @transform_8(%arg0: i32) -> (i32, i32) {
    %c0_i32 = arith.constant 0 : i32
    %c0_i32_0 = arith.constant 0 : i32
    %c0_i32_1 = arith.constant 0 : i32
    return %c0_i32, %c0_i32_0 : i32, i32
  }
  func.func @transform_9(%arg0: i32) -> (i32, i32) {
    %c0_i32 = arith.constant 0 : i32
    %c0_i32_0 = arith.constant 0 : i32
    %c0_i32_1 = arith.constant 0 : i32
    return %c0_i32, %c0_i32_0 : i32, i32
  }
  func.func @transform_10(%arg0: i32) -> (i32, i32) {
    %c0_i32 = arith.constant 0 : i32
    %c0_i32_0 = arith.constant 0 : i32
    %c0_i32_1 = arith.constant 0 : i32
    return %c0_i32, %c0_i32_0 : i32, i32
  }
  func.func @transform_11(%arg0: i32) -> (i32, i32) {
    %c0_i32 = arith.constant 0 : i32
    %c0_i32_0 = arith.constant 0 : i32
    %c0_i32_1 = arith.constant 0 : i32
    return %c0_i32, %c0_i32_0 : i32, i32
  }
  func.func @transform_12(%arg0: i32) -> (i32, i32) {
    %c0_i32 = arith.constant 0 : i32
    %c0_i32_0 = arith.constant 0 : i32
    %c0_i32_1 = arith.constant 0 : i32
    return %c0_i32, %c0_i32_0 : i32, i32
  }
  func.func @transform_13(%arg0: i32) -> (i32, i32) {
    %c0_i32 = arith.constant 0 : i32
    %c0_i32_0 = arith.constant 0 : i32
    %c0_i32_1 = arith.constant 0 : i32
    return %c0_i32, %c0_i32_0 : i32, i32
  }
  func.func @transform_14(%arg0: i32) -> (i32, i32) {
    %c0_i32 = arith.constant 0 : i32
    %c0_i32_0 = arith.constant 0 : i32
    %c0_i32_1 = arith.constant 0 : i32
    return %c0_i32, %c0_i32_0 : i32, i32
  }
  func.func @transform_15(%arg0: i32) -> (i32, i32) {
    %c0_i32 = arith.constant 0 : i32
    %c0_i32_0 = arith.constant 0 : i32
    %c0_i32_1 = arith.constant 0 : i32
    return %c0_i32, %c0_i32_0 : i32, i32
  }
  func.func @transform_16(%arg0: i32) -> (i32, i32) {
    %c0_i32 = arith.constant 0 : i32
    %c0_i32_0 = arith.constant 0 : i32
    %c0_i32_1 = arith.constant 0 : i32
    return %c0_i32, %c0_i32_0 : i32, i32
  }
  func.func @transform_17(%arg0: i32) -> (i32, i32) {
    %c0_i32 = arith.constant 0 : i32
    %c0_i32_0 = arith.constant 0 : i32
    %c0_i32_1 = arith.constant 0 : i32
    return %c0_i32, %c0_i32_0 : i32, i32
  }
  func.func @transform_18(%arg0: i32) -> (i32, i32) {
    %c0_i32 = arith.constant 0 : i32
    %c0_i32_0 = arith.constant 0 : i32
    %c0_i32_1 = arith.constant 0 : i32
    return %c0_i32, %c0_i32_0 : i32, i32
  }
  func.func @transform_19(%arg0: i32) -> (i32, i32) {
    %c0_i32 = arith.constant 0 : i32
    %c0_i32_0 = arith.constant 0 : i32
    %c0_i32_1 = arith.constant 0 : i32
    return %c0_i32, %c0_i32_0 : i32, i32
  }
  func.func @transform_20(%arg0: i32) -> (i32, i32) {
    %c0_i32 = arith.constant 0 : i32
    %c0_i32_0 = arith.constant 0 : i32
    %c0_i32_1 = arith.constant 0 : i32
    return %c0_i32, %c0_i32_0 : i32, i32
  }
  func.func @transform_21(%arg0: i32) -> (i32, i32, i32) {
    %c0_i32 = arith.constant 0 : i32
    %c0_i32_0 = arith.constant 0 : i32
    %c0_i32_1 = arith.constant 0 : i32
    return %arg0, %c0_i32, %c0_i32_0 : i32, i32, i32
  }
}

</mosaic_0001>

<llo_original>
// kernel: tpu_custom_call.1
$region0: #{tpu_custom_call.1}
  #allocation0 [shape = 'u32[]', space=smem, size = 0x4, offset = 0x4, fixed_abs, tag = 'smem constant byte address 0x4 - core index']
  #allocation1 [shape = 'u32[144,128]{1,0:T(1,128)}', space=vmem, size = 0x12000, scoped, tag = 'internal scratch']
  %s0 = inlined_call_operand.vmem [shape: f32[4,16,32], index: 0, kind: input, shape index: {}]
  %s1 = inlined_call_operand.hbm [shape: f32[4,1,16], index: 1, kind: input, shape index: {}]
  %s2 = inlined_call_operand.hbm [shape: f32[5,2,32], index: 2, kind: input, shape index: {}]
  %s3 = inlined_call_operand.vmem [shape: bf16[32,64], index: 3, kind: input, shape index: {}]
  %s4 = inlined_call_operand.hbm [shape: f32[1,64], index: 4, kind: input, shape index: {}]
  %s5 = inlined_call_operand.vmem [shape: bf16[64,32], index: 5, kind: input, shape index: {}]
  %s6 = inlined_call_operand.hbm [shape: f32[1,32], index: 6, kind: input, shape index: {}]
  %s7 = inlined_call_operand.hbm [shape: bf16[32,64], index: 7, kind: input, shape index: {}]
  %s8 = inlined_call_operand.hbm [shape: f32[1,64], index: 8, kind: input, shape index: {}]
  %s9 = inlined_call_operand.vmem [shape: bf16[64,32], index: 9, kind: input, shape index: {}]
  %s10 = inlined_call_operand.hbm [shape: f32[1,32], index: 10, kind: input, shape index: {}]
  %s11 = inlined_call_operand.vmem [shape: bf16[32,96], index: 11, kind: input, shape index: {}]
  %s12 = inlined_call_operand.hbm [shape: f32[1,96], index: 12, kind: input, shape index: {}]
  %s13 = inlined_call_operand.vmem [shape: bf16[32,32], index: 13, kind: input, shape index: {}]
  %s14 = inlined_call_operand.hbm [shape: f32[1,32], index: 14, kind: input, shape index: {}]
  %s15 = inlined_call_operand.hbm [shape: bf16[32,64], index: 15, kind: input, shape index: {}]
  %s16 = inlined_call_operand.hbm [shape: f32[1,64], index: 16, kind: input, shape index: {}]
  %s17 = inlined_call_operand.hbm [shape: f32[8,32], index: 17, kind: input, shape index: {}]
  %s18 = inlined_call_operand.vmem [shape: f32[2,32], index: 18, kind: input, shape index: {}]
  %s19 = inlined_call_operand.vmem [shape: bf16[32,32], index: 19, kind: input, shape index: {}]
  %s20 = inlined_call_operand.vmem [shape: f32[1,32], index: 20, kind: input, shape index: {}]
  %s21 = inlined_call_operand.hbm [shape: f32[4,16,32], index: 21, kind: output, shape index: {}]
  %s22 = sld [smem:[#allocation0]]
  $region165: #{tpu_custom_call.1} parent=0
    _
  %s24 = ssub.s32 1, %s22
  %s25 = scalar_select 0, %s24, %s22
  $region1: #{tpu_custom_call.1} parent=0
    #allocation2 [shape = 'u8[2048]{0}', space=vmem, size = 0x800, scoped, tag = 'input window, operand 1']
    #allocation3 [shape = 's32[2]{0}', space=sflag, size = 0x8, scoped, tag = 'scoped memory for tpu_custom_call.1']
    #allocation4 [shape = 's32[2]{0}', space=sflag, size = 0x8, scoped, tag = 'scoped memory for tpu_custom_call.1']
    #allocation5 [shape = 'u8[5120]{0}', space=vmem, size = 0x1400, scoped, tag = 'input window, operand 2, single buffered']
    #allocation6 [shape = 's32[1]{0}', space=sflag, size = 0x4, scoped, tag = 'scoped memory for tpu_custom_call.1']
    #allocation7 [shape = 'u8[512]{0}', space=vmem, size = 0x400, scoped, tag = 'input window, operand 4, single buffered']
    #allocation8 [shape = 'u8[512]{0}', space=vmem, size = 0x400, scoped, tag = 'input window, operand 6, single buffered']
    #allocation9 [shape = 's32[1]{0}', space=sflag, size = 0x4, scoped, tag = 'scoped memory for tpu_custom_call.1']
    #allocation10 [shape = 'u8[8192]{0}', space=vmem, size = 0x2000, scoped, tag = 'input window, operand 7, single buffered']
    #allocation11 [shape = 'u8[512]{0}', space=vmem, size = 0x400, scoped, tag = 'input window, operand 8, single buffered']
    #allocation12 [shape = 's32[1]{0}', space=sflag, size = 0x4, scoped, tag = 'scoped memory for tpu_custom_call.1']
    #allocation13 [shape = 'u8[512]{0}', space=vmem, size = 0x400, scoped, tag = 'input window, operand 10, single buffered']
    #allocation14 [shape = 'u8[512]{0}', space=vmem, size = 0x400, scoped, tag = 'input window, operand 12, single buffered']
    #allocation15 [shape = 's32[1]{0}', space=sflag, size = 0x4, scoped, tag = 'scoped memory for tpu_custom_call.1']
    #allocation16 [shape = 'u8[512]{0}', space=vmem, size = 0x400, scoped, tag = 'input window, operand 14, single buffered']
    #allocation17 [shape = 'u8[8192]{0}', space=vmem, size = 0x2000, scoped, tag = 'input window, operand 15, single buffered']
    #allocation18 [shape = 's32[1]{0}', space=sflag, size = 0x4, scoped, tag = 'scoped memory for tpu_custom_call.1']
    #allocation19 [shape = 'u8[512]{0}', space=vmem, size = 0x400, scoped, tag = 'input window, operand 16, single buffered']
    #allocation20 [shape = 'u8[4096]{0}', space=vmem, size = 0x1000, scoped, tag = 'input window, operand 17, single buffered']
    #allocation21 [shape = 's32[1]{0}', space=sflag, size = 0x4, scoped, tag = 'scoped memory for tpu_custom_call.1']
    #allocation22 [shape = 'u8[32768]{0}', space=vmem, size = 0x8000, scoped, tag = 'output window, operand 0']
    %26 = vsyncpa [#allocation3], 0
    %s27 = scalar_lea.sflag [#allocation3], 1
    %28 = vsyncpa %s27, 0
    %29 = vsyncpa [#allocation6], 0
    %30 = vsyncpa [#allocation9], 0
    %31 = vsyncpa [#allocation12], 0
    %32 = vsyncpa [#allocation15], 0
    %33 = vsyncpa [#allocation18], 0
    %34 = vsyncpa [#allocation21], 0
    %35 = vsyncpa [#allocation4], 0
    %s36 = scalar_lea.sflag [#allocation4], 1
    %37 = vsyncpa %s36, 0
    loop: start=0, step=1, limit=4
    $region2: #{tpu_custom_call.1} parent=1 // loop_pre_header
      _
    $region3: #{tpu_custom_call.1} parent=1 // loop_header
      %s39 = sphi 0, %s43
      %p40 = scmp.ge.s32.totalorder %s39, 4
      %s49 = sphi 0, %s51
      %s52 = sphi 0, %s49
      %s53 = sphi 0, %s52
      %s69 = sphi 0, %s53
      %s75 = sphi 0, %s77
      %s78 = sphi 0, %s75
      %s79 = sphi 0, %s78
      %s95 = sphi 0, %s79
      %s99 = sphi 0, %s99
      %s101 = sphi 0, %s99
      %s102 = sphi 0, %s101
      %s116 = sphi 0, %s102
      %s120 = sphi 0, %s120
      %s122 = sphi 0, %s120
      %s123 = sphi 0, %s122
      %s137 = sphi 0, %s123
      %s141 = sphi 0, %s141
      %s143 = sphi 0, %s141
      %s144 = sphi 0, %s143
      %s158 = sphi 0, %s144
      %s162 = sphi 0, %s162
      %s164 = sphi 0, %s162
      %s165 = sphi 0, %s164
      %s179 = sphi 0, %s165
      %s183 = sphi 0, %s183
      %s185 = sphi 0, %s183
      %s186 = sphi 0, %s185
      %s200 = sphi 0, %s186
      %s204 = sphi 0, %s204
      %s206 = sphi 0, %s204
      %s207 = sphi 0, %s206
      %s221 = sphi 0, %s207
      %s225 = sphi 0, %s225
      %s227 = sphi 0, %s225
      %s228 = sphi 0, %s227
      %s242 = sphi 0, %s228
      %s246 = sphi 0, %s246
      %s248 = sphi 0, %s246
      %s249 = sphi 0, %s248
      %s263 = sphi 0, %s249
      %s267 = sphi 0, %s267
      %s269 = sphi 0, %s267
      %s270 = sphi 0, %s269
      %s284 = sphi 0, %s270
      %s288 = sphi 0, %s288
      %s290 = sphi 0, %s288
      %s291 = sphi 0, %s290
      %s305 = sphi 0, %s291
      %s309 = sphi 0, %s309
      %s311 = sphi 0, %s309
      %s312 = sphi 0, %s311
      %s326 = sphi 0, %s312
      %s330 = sphi 0, %s330
      %s332 = sphi 0, %s330
      %s333 = sphi 0, %s332
      %s347 = sphi 0, %s333
      %s351 = sphi 0, %s351
      %s353 = sphi 0, %s351
      %s354 = sphi 0, %s353
      %s368 = sphi 0, %s354
      %s372 = sphi 0, %s372
      %s374 = sphi 0, %s372
      %s375 = sphi 0, %s374
      %s389 = sphi 0, %s375
      %s393 = sphi 0, %s393
      %s395 = sphi 0, %s393
      %s396 = sphi 0, %s395
      %s410 = sphi 0, %s396
      %s414 = sphi 0, %s414
      %s416 = sphi 0, %s414
      %s417 = sphi 0, %s416
      %s431 = sphi 0, %s417
      %s435 = sphi 0, %s435
      %s437 = sphi 0, %s435
      %s438 = sphi 0, %s437
      %s452 = sphi 0, %s438
      %s456 = sphi 0, %s456
      %s458 = sphi 0, %s456
      %s459 = sphi 0, %s458
      %s473 = sphi 0, %s459
      %s477 = sphi 0, %s477
      %s479 = sphi 0, %s477
      %s480 = sphi 0, %s479
      %s494 = sphi 0, %s480
      %s500 = sphi 0, %s502
      %s503 = sphi 0, %s500
      %s504 = sphi 0, %s503
      %s520 = sphi 0, %s504
    $region4: #{tpu_custom_call.1} parent=1 // loop_header_branch
      %42 = sbr.rel (%p40) target = $region8
    $region5: #{tpu_custom_call.1} parent=1 // loop_body
      %s44 = ssub.s32 %s39, 1
      %s45 = ssub.s32 %s39, 2
      %s46 = sadd.s32 %s39, 1
      %s47 = ssub.s32 %s39, %s46
      %p48 = scmp.eq.s32.totalorder %s47, 0
      %s50 = sadd.s32 %s49, 1
      %s51 = scalar_select %p48, %s49, %s50
      %p54 = pneg %p48
      %p55 = scmp.eq.s32.totalorder %s39, 1
      %p56 = por %p54, %p55
      %p57 = scmp.ne.s32.totalorder %s49, %s52
      %p58 = scmp.eq.s32.totalorder %s39, 0
      %p59 = por %p57, %p58
      %p60 = scmp.ne.s32.totalorder %s49, %s52
      %p61 = scmp.eq.s32.totalorder %s44, 1
      %p62 = por %p60, %p61
      %p63 = scmp.ne.s32.totalorder %s52, %s53
      %p64 = scmp.eq.s32.totalorder %s44, 0
      %p65 = por %p63, %p64
      %p66 = scmp.ne.s32.totalorder %s52, %s53
      %p67 = scmp.eq.s32.totalorder %s45, 1
      %p68 = por %p66, %p67
      %p70 = scmp.ne.s32.totalorder %s53, %s69
      %p71 = scmp.eq.s32.totalorder %s45, 0
      %p72 = por %p70, %p71
      %s73 = ssub.s32 %s39, %s46
      %p74 = scmp.eq.s32.totalorder %s73, 0
      %s76 = sadd.s32 %s75, 1
      %s77 = scalar_select %p74, %s75, %s76
      %p80 = pneg %p74
      %p81 = scmp.eq.s32.totalorder %s39, 1
      %p82 = por %p80, %p81
      %p83 = scmp.ne.s32.totalorder %s75, %s78
      %p84 = scmp.eq.s32.totalorder %s39, 0
      %p85 = por %p83, %p84
      %p86 = scmp.ne.s32.totalorder %s75, %s78
      %p87 = scmp.eq.s32.totalorder %s44, 1
      %p88 = por %p86, %p87
      %p89 = scmp.ne.s32.totalorder %s78, %s79
      %p90 = scmp.eq.s32.totalorder %s44, 0
      %p91 = por %p89, %p90
      %p92 = scmp.ne.s32.totalorder %s78, %s79
      %p93 = scmp.eq.s32.totalorder %s45, 1
      %p94 = por %p92, %p93
      %p96 = scmp.ne.s32.totalorder %s79, %s95
      %p97 = scmp.eq.s32.totalorder %s45, 0
      %p98 = por %p96, %p97
      %s100 = sadd.s32 %s99, 1
      %p103 = scmp.eq.s32.totalorder %s39, 1
      %p104 = scmp.ne.s32.totalorder %s99, %s101
      %p105 = scmp.eq.s32.totalorder %s39, 0
      %p106 = por %p104, %p105
      %p107 = scmp.ne.s32.totalorder %s99, %s101
      %p108 = scmp.eq.s32.totalorder %s44, 1
      %p109 = por %p107, %p108
      %p110 = scmp.ne.s32.totalorder %s101, %s102
      %p111 = scmp.eq.s32.totalorder %s44, 0
      %p112 = por %p110, %p111
      %p113 = scmp.ne.s32.totalorder %s101, %s102
      %p114 = scmp.eq.s32.totalorder %s45, 1
      %p115 = por %p113, %p114
      %p117 = scmp.ne.s32.totalorder %s102, %s116
      %p118 = scmp.eq.s32.totalorder %s45, 0
      %p119 = por %p117, %p118
      %s121 = sadd.s32 %s120, 1
      %p124 = scmp.eq.s32.totalorder %s39, 1
      %p125 = scmp.ne.s32.totalorder %s120, %s122
      %p126 = scmp.eq.s32.totalorder %s39, 0
      %p127 = por %p125, %p126
      %p128 = scmp.ne.s32.totalorder %s120, %s122
      %p129 = scmp.eq.s32.totalorder %s44, 1
      %p130 = por %p128, %p129
      %p131 = scmp.ne.s32.totalorder %s122, %s123
      %p132 = scmp.eq.s32.totalorder %s44, 0
      %p133 = por %p131, %p132
      %p134 = scmp.ne.s32.totalorder %s122, %s123
      %p135 = scmp.eq.s32.totalorder %s45, 1
      %p136 = por %p134, %p135
      %p138 = scmp.ne.s32.totalorder %s123, %s137
      %p139 = scmp.eq.s32.totalorder %s45, 0
      %p140 = por %p138, %p139
      %s142 = sadd.s32 %s141, 1
      %p145 = scmp.eq.s32.totalorder %s39, 1
      %p146 = scmp.ne.s32.totalorder %s141, %s143
      %p147 = scmp.eq.s32.totalorder %s39, 0
      %p148 = por %p146, %p147
      %p149 = scmp.ne.s32.totalorder %s141, %s143
      %p150 = scmp.eq.s32.totalorder %s44, 1
      %p151 = por %p149, %p150
      %p152 = scmp.ne.s32.totalorder %s143, %s144
      %p153 = scmp.eq.s32.totalorder %s44, 0
      %p154 = por %p152, %p153
      %p155 = scmp.ne.s32.totalorder %s143, %s144
      %p156 = scmp.eq.s32.totalorder %s45, 1
      %p157 = por %p155, %p156
      %p159 = scmp.ne.s32.totalorder %s144, %s158
      %p160 = scmp.eq.s32.totalorder %s45, 0
      %p161 = por %p159, %p160
      %s163 = sadd.s32 %s162, 1
      %p166 = scmp.eq.s32.totalorder %s39, 1
      %p167 = scmp.ne.s32.totalorder %s162, %s164
      %p168 = scmp.eq.s32.totalorder %s39, 0
      %p169 = por %p167, %p168
      %p170 = scmp.ne.s32.totalorder %s162, %s164
      %p171 = scmp.eq.s32.totalorder %s44, 1
      %p172 = por %p170, %p171
      %p173 = scmp.ne.s32.totalorder %s164, %s165
      %p174 = scmp.eq.s32.totalorder %s44, 0
      %p175 = por %p173, %p174
      %p176 = scmp.ne.s32.totalorder %s164, %s165
      %p177 = scmp.eq.s32.totalorder %s45, 1
      %p178 = por %p176, %p177
      %p180 = scmp.ne.s32.totalorder %s165, %s179
      %p181 = scmp.eq.s32.totalorder %s45, 0
      %p182 = por %p180, %p181
      %s184 = sadd.s32 %s183, 1
      %p187 = scmp.eq.s32.totalorder %s39, 1
      %p188 = scmp.ne.s32.totalorder %s183, %s185
      %p189 = scmp.eq.s32.totalorder %s39, 0
      %p190 = por %p188, %p189
      %p191 = scmp.ne.s32.totalorder %s183, %s185
      %p192 = scmp.eq.s32.totalorder %s44, 1
      %p193 = por %p191, %p192
      %p194 = scmp.ne.s32.totalorder %s185, %s186
      %p195 = scmp.eq.s32.totalorder %s44, 0
      %p196 = por %p194, %p195
      %p197 = scmp.ne.s32.totalorder %s185, %s186
      %p198 = scmp.eq.s32.totalorder %s45, 1
      %p199 = por %p197, %p198
      %p201 = scmp.ne.s32.totalorder %s186, %s200
      %p202 = scmp.eq.s32.totalorder %s45, 0
      %p203 = por %p201, %p202
      %s205 = sadd.s32 %s204, 1
      %p208 = scmp.eq.s32.totalorder %s39, 1
      %p209 = scmp.ne.s32.totalorder %s204, %s206
      %p210 = scmp.eq.s32.totalorder %s39, 0
      %p211 = por %p209, %p210
      %p212 = scmp.ne.s32.totalorder %s204, %s206
      %p213 = scmp.eq.s32.totalorder %s44, 1
      %p214 = por %p212, %p213
      %p215 = scmp.ne.s32.totalorder %s206, %s207
      %p216 = scmp.eq.s32.totalorder %s44, 0
      %p217 = por %p215, %p216
      %p218 = scmp.ne.s32.totalorder %s206, %s207
      %p219 = scmp.eq.s32.totalorder %s45, 1
      %p220 = por %p218, %p219
      %p222 = scmp.ne.s32.totalorder %s207, %s221
      %p223 = scmp.eq.s32.totalorder %s45, 0
      %p224 = por %p222, %p223
      %s226 = sadd.s32 %s225, 1
      %p229 = scmp.eq.s32.totalorder %s39, 1
      %p230 = scmp.ne.s32.totalorder %s225, %s227
      %p231 = scmp.eq.s32.totalorder %s39, 0
      %p232 = por %p230, %p231
      %p233 = scmp.ne.s32.totalorder %s225, %s227
      %p234 = scmp.eq.s32.totalorder %s44, 1
      %p235 = por %p233, %p234
      %p236 = scmp.ne.s32.totalorder %s227, %s228
      %p237 = scmp.eq.s32.totalorder %s44, 0
      %p238 = por %p236, %p237
      %p239 = scmp.ne.s32.totalorder %s227, %s228
      %p240 = scmp.eq.s32.totalorder %s45, 1
      %p241 = por %p239, %p240
      %p243 = scmp.ne.s32.totalorder %s228, %s242
      %p244 = scmp.eq.s32.totalorder %s45, 0
      %p245 = por %p243, %p244
      %s247 = sadd.s32 %s246, 1
      %p250 = scmp.eq.s32.totalorder %s39, 1
      %p251 = scmp.ne.s32.totalorder %s246, %s248
      %p252 = scmp.eq.s32.totalorder %s39, 0
      %p253 = por %p251, %p252
      %p254 = scmp.ne.s32.totalorder %s246, %s248
      %p255 = scmp.eq.s32.totalorder %s44, 1
      %p256 = por %p254, %p255
      %p257 = scmp.ne.s32.totalorder %s248, %s249
      %p258 = scmp.eq.s32.totalorder %s44, 0
      %p259 = por %p257, %p258
      %p260 = scmp.ne.s32.totalorder %s248, %s249
      %p261 = scmp.eq.s32.totalorder %s45, 1
      %p262 = por %p260, %p261
      %p264 = scmp.ne.s32.totalorder %s249, %s263
      %p265 = scmp.eq.s32.totalorder %s45, 0
      %p266 = por %p264, %p265
      %s268 = sadd.s32 %s267, 1
      %p271 = scmp.eq.s32.totalorder %s39, 1
      %p272 = scmp.ne.s32.totalorder %s267, %s269
      %p273 = scmp.eq.s32.totalorder %s39, 0
      %p274 = por %p272, %p273
      %p275 = scmp.ne.s32.totalorder %s267, %s269
      %p276 = scmp.eq.s32.totalorder %s44, 1
      %p277 = por %p275, %p276
      %p278 = scmp.ne.s32.totalorder %s269, %s270
      %p279 = scmp.eq.s32.totalorder %s44, 0
      %p280 = por %p278, %p279
      %p281 = scmp.ne.s32.totalorder %s269, %s270
      %p282 = scmp.eq.s32.totalorder %s45, 1
      %p283 = por %p281, %p282
      %p285 = scmp.ne.s32.totalorder %s270, %s284
      %p286 = scmp.eq.s32.totalorder %s45, 0
      %p287 = por %p285, %p286
      %s289 = sadd.s32 %s288, 1
      %p292 = scmp.eq.s32.totalorder %s39, 1
      %p293 = scmp.ne.s32.totalorder %s288, %s290
      %p294 = scmp.eq.s32.totalorder %s39, 0
      %p295 = por %p293, %p294
      %p296 = scmp.ne.s32.totalorder %s288, %s290
      %p297 = scmp.eq.s32.totalorder %s44, 1
      %p298 = por %p296, %p297
      %p299 = scmp.ne.s32.totalorder %s290, %s291
      %p300 = scmp.eq.s32.totalorder %s44, 0
      %p301 = por %p299, %p300
      %p302 = scmp.ne.s32.totalorder %s290, %s291
      %p303 = scmp.eq.s32.totalorder %s45, 1
      %p304 = por %p302, %p303
      %p306 = scmp.ne.s32.totalorder %s291, %s305
      %p307 = scmp.eq.s32.totalorder %s45, 0
      %p308 = por %p306, %p307
      %s310 = sadd.s32 %s309, 1
      %p313 = scmp.eq.s32.totalorder %s39, 1
      %p314 = scmp.ne.s32.totalorder %s309, %s311
      %p315 = scmp.eq.s32.totalorder %s39, 0
      %p316 = por %p314, %p315
      %p317 = scmp.ne.s32.totalorder %s309, %s311
      %p318 = scmp.eq.s32.totalorder %s44, 1
      %p319 = por %p317, %p318
      %p320 = scmp.ne.s32.totalorder %s311, %s312
      %p321 = scmp.eq.s32.totalorder %s44, 0
      %p322 = por %p320, %p321
      %p323 = scmp.ne.s32.totalorder %s311, %s312
      %p324 = scmp.eq.s32.totalorder %s45, 1
      %p325 = por %p323, %p324
      %p327 = scmp.ne.s32.totalorder %s312, %s326
      %p328 = scmp.eq.s32.totalorder %s45, 0
      %p329 = por %p327, %p328
      %s331 = sadd.s32 %s330, 1
      %p334 = scmp.eq.s32.totalorder %s39, 1
      %p335 = scmp.ne.s32.totalorder %s330, %s332
      %p336 = scmp.eq.s32.totalorder %s39, 0
      %p337 = por %p335, %p336
      %p338 = scmp.ne.s32.totalorder %s330, %s332
      %p339 = scmp.eq.s32.totalorder %s44, 1
      %p340 = por %p338, %p339
      %p341 = scmp.ne.s32.totalorder %s332, %s333
      %p342 = scmp.eq.s32.totalorder %s44, 0
      %p343 = por %p341, %p342
      %p344 = scmp.ne.s32.totalorder %s332, %s333
      %p345 = scmp.eq.s32.totalorder %s45, 1
      %p346 = por %p344, %p345
      %p348 = scmp.ne.s32.totalorder %s333, %s347
      %p349 = scmp.eq.s32.totalorder %s45, 0
      %p350 = por %p348, %p349
      %s352 = sadd.s32 %s351, 1
      %p355 = scmp.eq.s32.totalorder %s39, 1
      %p356 = scmp.ne.s32.totalorder %s351, %s353
      %p357 = scmp.eq.s32.totalorder %s39, 0
      %p358 = por %p356, %p357
      %p359 = scmp.ne.s32.totalorder %s351, %s353
      %p360 = scmp.eq.s32.totalorder %s44, 1
      %p361 = por %p359, %p360
      %p362 = scmp.ne.s32.totalorder %s353, %s354
      %p363 = scmp.eq.s32.totalorder %s44, 0
      %p364 = por %p362, %p363
      %p365 = scmp.ne.s32.totalorder %s353, %s354
      %p366 = scmp.eq.s32.totalorder %s45, 1
      %p367 = por %p365, %p366
      %p369 = scmp.ne.s32.totalorder %s354, %s368
      %p370 = scmp.eq.s32.totalorder %s45, 0
      %p371 = por %p369, %p370
      %s373 = sadd.s32 %s372, 1
      %p376 = scmp.eq.s32.totalorder %s39, 1
      %p377 = scmp.ne.s32.totalorder %s372, %s374
      %p378 = scmp.eq.s32.totalorder %s39, 0
      %p379 = por %p377, %p378
      %p380 = scmp.ne.s32.totalorder %s372, %s374
      %p381 = scmp.eq.s32.totalorder %s44, 1
      %p382 = por %p380, %p381
      %p383 = scmp.ne.s32.totalorder %s374, %s375
      %p384 = scmp.eq.s32.totalorder %s44, 0
      %p385 = por %p383, %p384
      %p386 = scmp.ne.s32.totalorder %s374, %s375
      %p387 = scmp.eq.s32.totalorder %s45, 1
      %p388 = por %p386, %p387
      %p390 = scmp.ne.s32.totalorder %s375, %s389
      %p391 = scmp.eq.s32.totalorder %s45, 0
      %p392 = por %p390, %p391
      %s394 = sadd.s32 %s393, 1
      %p397 = scmp.eq.s32.totalorder %s39, 1
      %p398 = scmp.ne.s32.totalorder %s393, %s395
      %p399 = scmp.eq.s32.totalorder %s39, 0
      %p400 = por %p398, %p399
      %p401 = scmp.ne.s32.totalorder %s393, %s395
      %p402 = scmp.eq.s32.totalorder %s44, 1
      %p403 = por %p401, %p402
      %p404 = scmp.ne.s32.totalorder %s395, %s396
      %p405 = scmp.eq.s32.totalorder %s44, 0
      %p406 = por %p404, %p405
      %p407 = scmp.ne.s32.totalorder %s395, %s396
      %p408 = scmp.eq.s32.totalorder %s45, 1
      %p409 = por %p407, %p408
      %p411 = scmp.ne.s32.totalorder %s396, %s410
      %p412 = scmp.eq.s32.totalorder %s45, 0
      %p413 = por %p411, %p412
      %s415 = sadd.s32 %s414, 1
      %p418 = scmp.eq.s32.totalorder %s39, 1
      %p419 = scmp.ne.s32.totalorder %s414, %s416
      %p420 = scmp.eq.s32.totalorder %s39, 0
      %p421 = por %p419, %p420
      %p422 = scmp.ne.s32.totalorder %s414, %s416
      %p423 = scmp.eq.s32.totalorder %s44, 1
      %p424 = por %p422, %p423
      %p425 = scmp.ne.s32.totalorder %s416, %s417
      %p426 = scmp.eq.s32.totalorder %s44, 0
      %p427 = por %p425, %p426
      %p428 = scmp.ne.s32.totalorder %s416, %s417
      %p429 = scmp.eq.s32.totalorder %s45, 1
      %p430 = por %p428, %p429
      %p432 = scmp.ne.s32.totalorder %s417, %s431
      %p433 = scmp.eq.s32.totalorder %s45, 0
      %p434 = por %p432, %p433
      %s436 = sadd.s32 %s435, 1
      %p439 = scmp.eq.s32.totalorder %s39, 1
      %p440 = scmp.ne.s32.totalorder %s435, %s437
      %p441 = scmp.eq.s32.totalorder %s39, 0
      %p442 = por %p440, %p441
      %p443 = scmp.ne.s32.totalorder %s435, %s437
      %p444 = scmp.eq.s32.totalorder %s44, 1
      %p445 = por %p443, %p444
      %p446 = scmp.ne.s32.totalorder %s437, %s438
      %p447 = scmp.eq.s32.totalorder %s44, 0
      %p448 = por %p446, %p447
      %p449 = scmp.ne.s32.totalorder %s437, %s438
      %p450 = scmp.eq.s32.totalorder %s45, 1
      %p451 = por %p449, %p450
      %p453 = scmp.ne.s32.totalorder %s438, %s452
      %p454 = scmp.eq.s32.totalorder %s45, 0
      %p455 = por %p453, %p454
      %s457 = sadd.s32 %s456, 1
      %p460 = scmp.eq.s32.totalorder %s39, 1
      %p461 = scmp.ne.s32.totalorder %s456, %s458
      %p462 = scmp.eq.s32.totalorder %s39, 0
      %p463 = por %p461, %p462
      %p464 = scmp.ne.s32.totalorder %s456, %s458
      %p465 = scmp.eq.s32.totalorder %s44, 1
      %p466 = por %p464, %p465
      %p467 = scmp.ne.s32.totalorder %s458, %s459
      %p468 = scmp.eq.s32.totalorder %s44, 0
      %p469 = por %p467, %p468
      %p470 = scmp.ne.s32.totalorder %s458, %s459
      %p471 = scmp.eq.s32.totalorder %s45, 1
      %p472 = por %p470, %p471
      %p474 = scmp.ne.s32.totalorder %s459, %s473
      %p475 = scmp.eq.s32.totalorder %s45, 0
      %p476 = por %p474, %p475
      %s478 = sadd.s32 %s477, 1
      %p481 = scmp.eq.s32.totalorder %s39, 1
      %p482 = scmp.ne.s32.totalorder %s477, %s479
      %p483 = scmp.eq.s32.totalorder %s39, 0
      %p484 = por %p482, %p483
      %p485 = scmp.ne.s32.totalorder %s477, %s479
      %p486 = scmp.eq.s32.totalorder %s44, 1
      %p487 = por %p485, %p486
      %p488 = scmp.ne.s32.totalorder %s479, %s480
      %p489 = scmp.eq.s32.totalorder %s44, 0
      %p490 = por %p488, %p489
      %p491 = scmp.ne.s32.totalorder %s479, %s480
      %p492 = scmp.eq.s32.totalorder %s45, 1
      %p493 = por %p491, %p492
      %p495 = scmp.ne.s32.totalorder %s480, %s494
      %p496 = scmp.eq.s32.totalorder %s45, 0
      %p497 = por %p495, %p496
      %s498 = ssub.s32 %s39, %s46
      %p499 = scmp.eq.s32.totalorder %s498, 0
      %s501 = sadd.s32 %s500, 1
      %s502 = scalar_select %p499, %s500, %s501
      %p505 = pneg %p499
      %p506 = scmp.eq.s32.totalorder %s39, 1
      %p507 = por %p505, %p506
      %p508 = scmp.ne.s32.totalorder %s500, %s503
      %p509 = scmp.eq.s32.totalorder %s39, 0
      %p510 = por %p508, %p509
      %p511 = scmp.ne.s32.totalorder %s500, %s503
      %p512 = scmp.eq.s32.totalorder %s44, 1
      %p513 = por %p511, %p512
      %p514 = scmp.ne.s32.totalorder %s503, %s504
      %p515 = scmp.eq.s32.totalorder %s44, 0
      %p516 = por %p514, %p515
      %p517 = scmp.ne.s32.totalorder %s503, %s504
      %p518 = scmp.eq.s32.totalorder %s45, 1
      %p519 = por %p517, %p518
      %p521 = scmp.ne.s32.totalorder %s504, %s520
      %p522 = scmp.eq.s32.totalorder %s45, 0
      %p523 = por %p521, %p522
      %p524 = scmp.le.s32.totalorder 1, %s39
      %p525 = scmp.lt.s32.totalorder %s39, 3
      %p526 = pnand %p524, %p525
      %p527 = pneg %p526
      // Predicated region
      $region9: #{tpu_custom_call.1} parent=5 // pred_check
        _
      $region10: #{tpu_custom_call.1} parent=5 // pred_check_branch
        %529 = sbr.rel (%p526) target = $region12
      $region11: #{tpu_custom_call.1} parent=5 // pred_region
        %s530 = ssub.s32 %s39, 1
        // Predicated region
        $region13: #{tpu_custom_call.1} parent=11 // pred_check
          %p531 = pneg %p112
        $region14: #{tpu_custom_call.1} parent=11 // pred_check_branch
          %533 = sbr.rel (%p531) target = $region16
        $region15: #{tpu_custom_call.1} parent=11 // pred_region
          %s535 = ssub.s32 160, 160
          %536 = vsyncadd [#allocation6], %s535
          %s537 = sshll.u32 [#allocation5], 4
          %s538 = int_to_ptr.vmem [resolvable:$true] %s537
          %543 = dma.hbm_to_vmem [thread:$0]  %s2, 160, %s538, [#allocation6], 32, 32, 2
        $region16: #{tpu_custom_call.1} parent=11 // pred_fallthru
          _
        // Predicated region
        $region17: #{tpu_custom_call.1} parent=11 // pred_check
          %p544 = pneg %p133
        $region18: #{tpu_custom_call.1} parent=11 // pred_check_branch
          %546 = sbr.rel (%p544) target = $region20
        $region19: #{tpu_custom_call.1} parent=11 // pred_region
          _
        $region20: #{tpu_custom_call.1} parent=11 // pred_fallthru
          _
        // Predicated region
        $region21: #{tpu_custom_call.1} parent=11 // pred_check
          %p547 = pneg %p154
        $region22: #{tpu_custom_call.1} parent=11 // pred_check_branch
          %549 = sbr.rel (%p547) target = $region24
        $region23: #{tpu_custom_call.1} parent=11 // pred_region
          %s551 = ssub.s32 16, 16
          %552 = vsyncadd [#allocation6], %s551
          %s554 = sshll.u32 [#allocation7], 4
          %s555 = int_to_ptr.vmem [resolvable:$true] %s554
          %557 = dma.hbm_to_vmem [thread:$0]  %s4, 16, %s555, [#allocation6]
        $region24: #{tpu_custom_call.1} parent=11 // pred_fallthru
          _
        // Predicated region
        $region25: #{tpu_custom_call.1} parent=11 // pred_check
          %p558 = pneg %p175
        $region26: #{tpu_custom_call.1} parent=11 // pred_check_branch
          %560 = sbr.rel (%p558) target = $region28
        $region27: #{tpu_custom_call.1} parent=11 // pred_region
          _
        $region28: #{tpu_custom_call.1} parent=11 // pred_fallthru
          _
        // Predicated region
        $region29: #{tpu_custom_call.1} parent=11 // pred_check
          %p561 = pneg %p196
        $region30: #{tpu_custom_call.1} parent=11 // pred_check_branch
          %563 = sbr.rel (%p561) target = $region32
        $region31: #{tpu_custom_call.1} parent=11 // pred_region
          %s565 = ssub.s32 16, 16
          %566 = vsyncadd [#allocation9], %s565
          %s568 = sshll.u32 [#allocation8], 4
          %s569 = int_to_ptr.vmem [resolvable:$true] %s568
          %571 = dma.hbm_to_vmem [thread:$0]  %s6, 16, %s569, [#allocation9]
        $region32: #{tpu_custom_call.1} parent=11 // pred_fallthru
          _
        // Predicated region
        $region33: #{tpu_custom_call.1} parent=11 // pred_check
          %p572 = pneg %p217
        $region34: #{tpu_custom_call.1} parent=11 // pred_check_branch
          %574 = sbr.rel (%p572) target = $region36
        $region35: #{tpu_custom_call.1} parent=11 // pred_region
          %s576 = ssub.s32 256, 256
          %577 = vsyncadd [#allocation9], %s576
          %s578 = sshll.u32 [#allocation10], 4
          %s579 = int_to_ptr.vmem [resolvable:$true] %s578
          %584 = dma.hbm_to_vmem [thread:$0]  %s7, 256, %s579, [#allocation9], 64, 64, 4
        $region36: #{tpu_custom_call.1} parent=11 // pred_fallthru
          _
        // Predicated region
        $region37: #{tpu_custom_call.1} parent=11 // pred_check
          %p585 = pneg %p238
        $region38: #{tpu_custom_call.1} parent=11 // pred_check_branch
          %587 = sbr.rel (%p585) target = $region40
        $region39: #{tpu_custom_call.1} parent=11 // pred_region
          %s589 = ssub.s32 16, 16
          %590 = vsyncadd [#allocation12], %s589
          %s592 = sshll.u32 [#allocation11], 4
          %s593 = int_to_ptr.vmem [resolvable:$true] %s592
          %595 = dma.hbm_to_vmem [thread:$0]  %s8, 16, %s593, [#allocation12]
        $region40: #{tpu_custom_call.1} parent=11 // pred_fallthru
          _
        // Predicated region
        $region41: #{tpu_custom_call.1} parent=11 // pred_check
          %p596 = pneg %p259
        $region42: #{tpu_custom_call.1} parent=11 // pred_check_branch
          %598 = sbr.rel (%p596) target = $region44
        $region43: #{tpu_custom_call.1} parent=11 // pred_region
          _
        $region44: #{tpu_custom_call.1} parent=11 // pred_fallthru
          _
        // Predicated region
        $region45: #{tpu_custom_call.1} parent=11 // pred_check
          %p599 = pneg %p280
        $region46: #{tpu_custom_call.1} parent=11 // pred_check_branch
          %601 = sbr.rel (%p599) target = $region48
        $region47: #{tpu_custom_call.1} parent=11 // pred_region
          %s603 = ssub.s32 16, 16
          %604 = vsyncadd [#allocation12], %s603
          %s606 = sshll.u32 [#allocation13], 4
          %s607 = int_to_ptr.vmem [resolvable:$true] %s606
          %609 = dma.hbm_to_vmem [thread:$0]  %s10, 16, %s607, [#allocation12]
        $region48: #{tpu_custom_call.1} parent=11 // pred_fallthru
          _
        // Predicated region
        $region49: #{tpu_custom_call.1} parent=11 // pred_check
          %p610 = pneg %p301
        $region50: #{tpu_custom_call.1} parent=11 // pred_check_branch
          %612 = sbr.rel (%p610) target = $region52
        $region51: #{tpu_custom_call.1} parent=11 // pred_region
          _
        $region52: #{tpu_custom_call.1} parent=11 // pred_fallthru
          _
        // Predicated region
        $region53: #{tpu_custom_call.1} parent=11 // pred_check
          %p613 = pneg %p322
        $region54: #{tpu_custom_call.1} parent=11 // pred_check_branch
          %615 = sbr.rel (%p613) target = $region56
        $region55: #{tpu_custom_call.1} parent=11 // pred_region
          %s617 = ssub.s32 16, 16
          %618 = vsyncadd [#allocation15], %s617
          %s620 = sshll.u32 [#allocation14], 4
          %s621 = int_to_ptr.vmem [resolvable:$true] %s620
          %623 = dma.hbm_to_vmem [thread:$0]  %s12, 16, %s621, [#allocation15]
        $region56: #{tpu_custom_call.1} parent=11 // pred_fallthru
          _
        // Predicated region
        $region57: #{tpu_custom_call.1} parent=11 // pred_check
          %p624 = pneg %p343
        $region58: #{tpu_custom_call.1} parent=11 // pred_check_branch
          %626 = sbr.rel (%p624) target = $region60
        $region59: #{tpu_custom_call.1} parent=11 // pred_region
          _
        $region60: #{tpu_custom_call.1} parent=11 // pred_fallthru
          _
        // Predicated region
        $region61: #{tpu_custom_call.1} parent=11 // pred_check
          %p627 = pneg %p364
        $region62: #{tpu_custom_call.1} parent=11 // pred_check_branch
          %629 = sbr.rel (%p627) target = $region64
        $region63: #{tpu_custom_call.1} parent=11 // pred_region
          %s631 = ssub.s32 16, 16
          %632 = vsyncadd [#allocation15], %s631
          %s634 = sshll.u32 [#allocation16], 4
          %s635 = int_to_ptr.vmem [resolvable:$true] %s634
          %637 = dma.hbm_to_vmem [thread:$0]  %s14, 16, %s635, [#allocation15]
        $region64: #{tpu_custom_call.1} parent=11 // pred_fallthru
          _
        // Predicated region
        $region65: #{tpu_custom_call.1} parent=11 // pred_check
          %p638 = pneg %p385
        $region66: #{tpu_custom_call.1} parent=11 // pred_check_branch
          %640 = sbr.rel (%p638) target = $region68
        $region67: #{tpu_custom_call.1} parent=11 // pred_region
          %s642 = ssub.s32 256, 256
          %643 = vsyncadd [#allocation18], %s642
          %s644 = sshll.u32 [#allocation17], 4
          %s645 = int_to_ptr.vmem [resolvable:$true] %s644
          %650 = dma.hbm_to_vmem [thread:$0]  %s15, 256, %s645, [#allocation18], 64, 64, 4
        $region68: #{tpu_custom_call.1} parent=11 // pred_fallthru
          _
        // Predicated region
        $region69: #{tpu_custom_call.1} parent=11 // pred_check
          %p651 = pneg %p406
        $region70: #{tpu_custom_call.1} parent=11 // pred_check_branch
          %653 = sbr.rel (%p651) target = $region72
        $region71: #{tpu_custom_call.1} parent=11 // pred_region
          %s655 = ssub.s32 16, 16
          %656 = vsyncadd [#allocation18], %s655
          %s658 = sshll.u32 [#allocation19], 4
          %s659 = int_to_ptr.vmem [resolvable:$true] %s658
          %661 = dma.hbm_to_vmem [thread:$0]  %s16, 16, %s659, [#allocation18]
        $region72: #{tpu_custom_call.1} parent=11 // pred_fallthru
          _
        // Predicated region
        $region73: #{tpu_custom_call.1} parent=11 // pred_check
          %p662 = pneg %p427
        $region74: #{tpu_custom_call.1} parent=11 // pred_check_branch
          %664 = sbr.rel (%p662) target = $region76
        $region75: #{tpu_custom_call.1} parent=11 // pred_region
          %s666 = ssub.s32 128, 128
          %667 = vsyncadd [#allocation21], %s666
          %s669 = sshll.u32 [#allocation20], 4
          %s670 = int_to_ptr.vmem [resolvable:$true] %s669
          %672 = dma.hbm_to_vmem [thread:$0]  %s17, 128, %s670, [#allocation21]
        $region76: #{tpu_custom_call.1} parent=11 // pred_fallthru
          _
        // Predicated region
        $region77: #{tpu_custom_call.1} parent=11 // pred_check
          %p673 = pneg %p448
        $region78: #{tpu_custom_call.1} parent=11 // pred_check_branch
          %675 = sbr.rel (%p673) target = $region80
        $region79: #{tpu_custom_call.1} parent=11 // pred_region
          _
        $region80: #{tpu_custom_call.1} parent=11 // pred_fallthru
          _
        // Predicated region
        $region81: #{tpu_custom_call.1} parent=11 // pred_check
          %p676 = pneg %p469
        $region82: #{tpu_custom_call.1} parent=11 // pred_check_branch
          %678 = sbr.rel (%p676) target = $region84
        $region83: #{tpu_custom_call.1} parent=11 // pred_region
          _
        $region84: #{tpu_custom_call.1} parent=11 // pred_fallthru
          _
        // Predicated region
        $region85: #{tpu_custom_call.1} parent=11 // pred_check
          %p679 = pneg %p490
        $region86: #{tpu_custom_call.1} parent=11 // pred_check_branch
          %681 = sbr.rel (%p679) target = $region88
        $region87: #{tpu_custom_call.1} parent=11 // pred_region
          _
        $region88: #{tpu_custom_call.1} parent=11 // pred_fallthru
          _
      $region12: #{tpu_custom_call.1} parent=5 // pred_fallthru
        _
      %p682 = scmp.lt.s32.totalorder %s39, 2
      // Predicated region
      $region89: #{tpu_custom_call.1} parent=5 // pred_check
        %p683 = pneg %p682
      $region90: #{tpu_custom_call.1} parent=5 // pred_check_branch
        %685 = sbr.rel (%p683) target = $region92
      $region91: #{tpu_custom_call.1} parent=5 // pred_region
        // Predicated region
        $region93: #{tpu_custom_call.1} parent=91 // pred_check
          %p686 = pneg %p59
        $region94: #{tpu_custom_call.1} parent=91 // pred_check_branch
          %688 = sbr.rel (%p686) target = $region96
        $region95: #{tpu_custom_call.1} parent=91 // pred_region
          %s689 = smul.u32 2, %s39
          %p690 = scmp.lt.s32.totalorder %s689, 3
          %s691 = scalar_select %p690, %s689, 3
          %s692 = smul.addr %s691, 2
          %s693 = smul.addr %s692, 8
          %s694 = scalar_lea.vmem %s0, %s693
          %s695 = smul.u32 2, %s39
        $region96: #{tpu_custom_call.1} parent=91 // pred_fallthru
          _
        // Predicated region
        $region97: #{tpu_custom_call.1} parent=91 // pred_check
          %p696 = pneg %p85
        $region98: #{tpu_custom_call.1} parent=91 // pred_check_branch
          %698 = sbr.rel (%p696) target = $region100
        $region99: #{tpu_custom_call.1} parent=91 // pred_region
          %s699 = sand.u32 %s75, 1
          %s700 = scalar_lea.sflag [#allocation3], %s699
          %s701 = sand.u32 %s75, 1
          %s702 = smul.addr %s701, 2
          %s703 = scalar_lea.vmem [#allocation2], %s702
          %s704 = smul.u32 2, %s39
          %s706 = ssub.s32 32, 32
          %707 = vsyncadd %s700, %s706
          %s708 = smul.addr %s704, 16
          %s709 = scalar_lea.hbm %s1, %s708
          %s710 = sshll.u32 %s703, 4
          %s711 = int_to_ptr.vmem [resolvable:$true] %s710
          %716 = dma.hbm_to_vmem [thread:$0]  %s709, 32, %s711, %s700, 16, 16, 1
        $region100: #{tpu_custom_call.1} parent=91 // pred_fallthru
          _
      $region92: #{tpu_custom_call.1} parent=5 // pred_fallthru
        _
      %p717 = scmp.le.s32.totalorder 1, %s39
      %p718 = scmp.lt.s32.totalorder %s39, 3
      %p719 = pnand %p717, %p718
      %p720 = pneg %p719
      // Predicated region
      $region101: #{tpu_custom_call.1} parent=5 // pred_check
        _
      $region102: #{tpu_custom_call.1} parent=5 // pred_check_branch
        %722 = sbr.rel (%p719) target = $region104
      $region103: #{tpu_custom_call.1} parent=5 // pred_region
        %s723 = ssub.s32 %s39, 1
        %s724 = sand.u32 %s78, 1
        %s725 = scalar_lea.sflag [#allocation3], %s724
        %s726 = sand.u32 %s78, 1
        %s727 = smul.addr %s726, 2
        %s728 = scalar_lea.vmem [#allocation2], %s727
        // Predicated region
        $region105: #{tpu_custom_call.1} parent=103 // pred_check
          %p729 = pneg %p91
        $region106: #{tpu_custom_call.1} parent=103 // pred_check_branch
          %731 = sbr.rel (%p729) target = $region108
        $region107: #{tpu_custom_call.1} parent=103 // pred_region
          %732 = dma.done %s725, 32
        $region108: #{tpu_custom_call.1} parent=103 // pred_fallthru
          _
        // Predicated region
        $region109: #{tpu_custom_call.1} parent=103 // pred_check
          %p733 = pneg %p112
        $region110: #{tpu_custom_call.1} parent=103 // pred_check_branch
          %735 = sbr.rel (%p733) target = $region112
        $region111: #{tpu_custom_call.1} parent=103 // pred_region
          %736 = dma.done [#allocation6], 160
        $region112: #{tpu_custom_call.1} parent=103 // pred_fallthru
          _
        // Predicated region
        $region113: #{tpu_custom_call.1} parent=103 // pred_check
          %p737 = pneg %p154
        $region114: #{tpu_custom_call.1} parent=103 // pred_check_branch
          %739 = sbr.rel (%p737) target = $region116
        $region115: #{tpu_custom_call.1} parent=103 // pred_region
          %740 = dma.done [#allocation6], 16
        $region116: #{tpu_custom_call.1} parent=103 // pred_fallthru
          _
        // Predicated region
        $region117: #{tpu_custom_call.1} parent=103 // pred_check
          %p741 = pneg %p196
        $region118: #{tpu_custom_call.1} parent=103 // pred_check_branch
          %743 = sbr.rel (%p741) target = $region120
        $region119: #{tpu_custom_call.1} parent=103 // pred_region
          %744 = dma.done [#allocation9], 16
        $region120: #{tpu_custom_call.1} parent=103 // pred_fallthru
          _
        // Predicated region
        $region121: #{tpu_custom_call.1} parent=103 // pred_check
          %p745 = pneg %p217
        $region122: #{tpu_custom_call.1} parent=103 // pred_check_branch
          %747 = sbr.rel (%p745) target = $region124
        $region123: #{tpu_custom_call.1} parent=103 // pred_region
          %748 = dma.done [#allocation9], 256
        $region124: #{tpu_custom_call.1} parent=103 // pred_fallthru
          _
        // Predicated region
        $region125: #{tpu_custom_call.1} parent=103 // pred_check
          %p749 = pneg %p238
        $region126: #{tpu_custom_call.1} parent=103 // pred_check_branch
          %751 = sbr.rel (%p749) target = $region128
        $region127: #{tpu_custom_call.1} parent=103 // pred_region
          %752 = dma.done [#allocation12], 16
        $region128: #{tpu_custom_call.1} parent=103 // pred_fallthru
          _
        // Predicated region
        $region129: #{tpu_custom_call.1} parent=103 // pred_check
          %p753 = pneg %p280
        $region130: #{tpu_custom_call.1} parent=103 // pred_check_branch
          %755 = sbr.rel (%p753) target = $region132
        $region131: #{tpu_custom_call.1} parent=103 // pred_region
          %756 = dma.done [#allocation12], 16
        $region132: #{tpu_custom_call.1} parent=103 // pred_fallthru
          _
        // Predicated region
        $region133: #{tpu_custom_call.1} parent=103 // pred_check
          %p757 = pneg %p322
        $region134: #{tpu_custom_call.1} parent=103 // pred_check_branch
          %759 = sbr.rel (%p757) target = $region136
        $region135: #{tpu_custom_call.1} parent=103 // pred_region
          %760 = dma.done [#allocation15], 16
        $region136: #{tpu_custom_call.1} parent=103 // pred_fallthru
          _
        // Predicated region
        $region137: #{tpu_custom_call.1} parent=103 // pred_check
          %p761 = pneg %p364
        $region138: #{tpu_custom_call.1} parent=103 // pred_check_branch
          %763 = sbr.rel (%p761) target = $region140
        $region139: #{tpu_custom_call.1} parent=103 // pred_region
          %764 = dma.done [#allocation15], 16
        $region140: #{tpu_custom_call.1} parent=103 // pred_fallthru
          _
        // Predicated region
        $region141: #{tpu_custom_call.1} parent=103 // pred_check
          %p765 = pneg %p385
        $region142: #{tpu_custom_call.1} parent=103 // pred_check_branch
          %767 = sbr.rel (%p765) target = $region144
        $region143: #{tpu_custom_call.1} parent=103 // pred_region
          %768 = dma.done [#allocation18], 256
        $region144: #{tpu_custom_call.1} parent=103 // pred_fallthru
          _
        // Predicated region
        $region145: #{tpu_custom_call.1} parent=103 // pred_check
          %p769 = pneg %p406
        $region146: #{tpu_custom_call.1} parent=103 // pred_check_branch
          %771 = sbr.rel (%p769) target = $region148
        $region147: #{tpu_custom_call.1} parent=103 // pred_region
          %772 = dma.done [#allocation18], 16
        $region148: #{tpu_custom_call.1} parent=103 // pred_fallthru
          _
        // Predicated region
        $region149: #{tpu_custom_call.1} parent=103 // pred_check
          %p773 = pneg %p427
        $region150: #{tpu_custom_call.1} parent=103 // pred_check_branch
          %775 = sbr.rel (%p773) target = $region152
        $region151: #{tpu_custom_call.1} parent=103 // pred_region
          %776 = dma.done [#allocation21], 128
        $region152: #{tpu_custom_call.1} parent=103 // pred_fallthru
          _
        %s777 = smul.u32 2, %s44
        %p778 = scmp.lt.s32.totalorder %s777, 3
        %s779 = scalar_select %p778, %s777, 3
        %s780 = smul.addr %s779, 2
        %s781 = smul.addr %s780, 8
        %s782 = scalar_lea.vmem %s0, %s781
        %p783 = pneg %p65
        %p784 = pneg %p62
        %s785 = sand.u32 %s78, 1
        %s786 = scalar_lea.sflag [#allocation3], %s785
        %s787 = sand.u32 %s78, 1
        %s788 = smul.addr %s787, 2
        %s789 = scalar_lea.vmem [#allocation2], %s788
        %p790 = pneg %p91
        %p791 = pneg %p88
        %p792 = pneg %p112
        %p793 = pneg %p109
        %p794 = pneg %p133
        %p795 = pneg %p130
        %p796 = pneg %p154
        %p797 = pneg %p151
        %p798 = pneg %p175
        %p799 = pneg %p172
        %p800 = pneg %p196
        %p801 = pneg %p193
        %p802 = pneg %p217
        %p803 = pneg %p214
        %p804 = pneg %p238
        %p805 = pneg %p235
        %p806 = pneg %p259
        %p807 = pneg %p256
        %p808 = pneg %p280
        %p809 = pneg %p277
        %p810 = pneg %p301
        %p811 = pneg %p298
        %p812 = pneg %p322
        %p813 = pneg %p319
        %p814 = pneg %p343
        %p815 = pneg %p340
        %p816 = pneg %p364
        %p817 = pneg %p361
        %p818 = pneg %p385
        %p819 = pneg %p382
        %p820 = pneg %p406
        %p821 = pneg %p403
        %p822 = pneg %p427
        %p823 = pneg %p424
        %p824 = pneg %p448
        %p825 = pneg %p445
        %p826 = pneg %p469
        %p827 = pneg %p466
        %p828 = pneg %p490
        %p829 = pneg %p487
        %p830 = pneg %p516
        %p831 = pneg %p513
        %s832 = sand.u32 %s503, 1
        %s833 = scalar_lea.sflag [#allocation4], %s832
        %s834 = sand.u32 %s503, 1
        %s835 = smul.addr %s834, 32
        %s836 = scalar_lea.vmem [#allocation22], %s835
        %s837 = smul.u32 2, %s44
        %p838 = scmp.lt.s32.totalorder %s837, 3
        %s839 = scalar_select %p838, %s837, 3
        %s840 = smul.addr %s839, 2
        %s841 = smul.addr %s840, 8
        %s842 = scalar_lea.vmem %s0, %s841
        %s843 = smul.u32 2, %s44
        %s844 = smul.u32 2, %s44
        %s845 = smul.u32 2, %s44
        %v847 = vld [vmem:[%s842] sm:$0xff]
        %v848 = vld [vmem:[%s842 + $0x8] sm:$0xff]
        %v849 = vld [vmem:[%s842 + $0x10] sm:$0xff]
        %v850 = vld [vmem:[%s842 + $0x18] sm:$0xff]
        %v851 = vld [vmem:[#allocation5] sm:$0x3]
        %v852 = vld [vmem:[#allocation5 + $0x2] sm:$0x3]
        %v853 = vld [vmem:[#allocation5 + $0x4] sm:$0x3]
        %v854 = vld [vmem:[#allocation5 + $0x6] sm:$0x3]
        %v855 = vld [vmem:[#allocation5 + $0x8] sm:$0x3]
        %vm856 = vcmask 261120
        %v857 = vsel %vm856, %v847, 0.0
        %858 = vadd.xlane.f32.xlu0 %v857
        %v859 = vpop.xlane.xlu0 %858
        %v860 = vsel %vm856, %v848, 0.0
        %861 = vadd.xlane.f32.xlu0 %v860
        %v862 = vpop.xlane.xlu0 %861
        %v863 = vsel %vm856, %v849, 0.0
        %864 = vadd.xlane.f32.xlu0 %v863
        %v865 = vpop.xlane.xlu0 %864
        %v866 = vsel %vm856, %v850, 0.0
        %867 = vadd.xlane.f32.xlu0 %v866
        %v868 = vpop.xlane.xlu0 %867
        %v869 = vrcp.pop 32.0
        %v870 = vmul.f32 %v859, %v869
        %v871 = vmul.f32 %v862, %v869
        %v872 = vmul.f32 %v865, %v869
        %v873 = vmul.f32 %v868, %v869
        %v874 = vsub.f32 %v847, %v870
        %v875 = vsub.f32 %v848, %v871
        %v876 = vsub.f32 %v849, %v872
        %v877 = vsub.f32 %v850, %v873
        %v878 = vmul.f32 %v874, %v874
        %v879 = vmul.f32 %v875, %v875
        %v880 = vmul.f32 %v876, %v876
        %v881 = vmul.f32 %v877, %v877
        %v882 = vsel %vm856, %v878, 0.0
        %883 = vadd.xlane.f32.xlu0 %v882
        %v884 = vpop.xlane.xlu0 %883
        %v885 = vsel %vm856, %v879, 0.0
        %886 = vadd.xlane.f32.xlu0 %v885
        %v887 = vpop.xlane.xlu0 %886
        %v888 = vsel %vm856, %v880, 0.0
        %889 = vadd.xlane.f32.xlu0 %v888
        %v890 = vpop.xlane.xlu0 %889
        %v891 = vsel %vm856, %v881, 0.0
        %892 = vadd.xlane.f32.xlu0 %v891
        %v893 = vpop.xlane.xlu0 %892
        %v894 = vmul.f32 %v884, %v869
        %v895 = vmul.f32 %v887, %v869
        %v896 = vmul.f32 %v890, %v869
        %v897 = vmul.f32 %v893, %v869
        %v898 = vadd.f32 %v894, 1e-12
        %v899 = vadd.f32 %v895, 1e-12
        %v900 = vadd.f32 %v896, 1e-12
        %v901 = vadd.f32 %v897, 1e-12
        %v902 = vrsqrt.pop %v898
        %v903 = vrsqrt.pop %v899
        %v904 = vrsqrt.pop %v900
        %v905 = vrsqrt.pop %v901
        %v906 = vmul.f32 %v874, %v902
        %v907 = vmul.f32 %v875, %v903
        %v908 = vmul.f32 %v876, %v904
        %v909 = vmul.f32 %v877, %v905
        %v910 = vlaneseq
        %v911 = vshrl.u32 %v910, 7
        %v912 = vsub.s32 0, %v911
        %v913 = vrot.slane %v851, %v912
        %v914 = vmul.f32 %v906, %v913
        %v915 = vmul.f32 %v907, %v913
        %v916 = vmul.f32 %v908, %v913
        %v917 = vmul.f32 %v909, %v913
        %v918 = vlaneseq
        %v919 = vshrl.u32 %v918, 7
        %v920 = vsub.s32 1, %v919
        %v921 = vrot.slane %v851, %v920
        %v922 = vadd.f32 %v914, %v921
        %v923 = vadd.f32 %v915, %v921
        %v924 = vadd.f32 %v916, %v921
        %v925 = vadd.f32 %v917, %v921
        %v926 = vpack.c.bf16 %v923, %v922
        %v927 = vpack.c.bf16 %v925, %v924
        %v928 = vld [vmem:[%s3] sm:$0xf]
        %v929 = vld [vmem:[%s3 + $0x4] sm:$0xf]
        %v930 = vld [vmem:[%s3 + $0x8] sm:$0xf]
        %v931 = vld [vmem:[%s3 + $0xc] sm:$0xf]
        %v932 = vld [vmem:[#allocation7] sm:$0x1]
        %v934 = vlaneseq
        %v935 = vshrl.u32 %v934, 7
        %v936 = vsub.s32 0, %v935
        %v937 = vrot.slane %v932, %v936
        %v943 = vunpack.c.l.b16 %v928
        %v944 = vunpack.c.l.b16 %v929
        %v945 = vunpack.c.l.b16 %v930
        %v946 = vunpack.c.l.b16 %v931
        %v947 = vpack.c.b16 %v944, %v943
        %v948 = vpack.c.b16 %v946, %v945
        %v952 = vsel %vm856, %v926, 0
        %v955 = vsel %vm856, %v927, 0
        %957 = vmatprep.subr.bf16.mxu0 0
        %958 = vmatpush1.bf16.msra.mxu0 %v947
        %959 = vmatprep.subr.bf16.mxu0 0
        %960 = vmatpush1.bf16.msra.mxu0 %v948
        %961 = vmatprep.subr.bf16.mxu0 0
        %962 = vmatpush1.bf16.msra.mxu0 0
        %963 = vmatprep.subr.bf16.mxu0 0
        %964 = vmatpush1.bf16.msra.mxu0 0
        %965 = vmatprep.subr.bf16.mxu0 0
        %966 = vmatpush1.bf16.msra.mxu0 0
        %967 = vmatprep.subr.bf16.mxu0 0
        %968 = vmatpush1.bf16.msra.mxu0 0
        %969 = vmatprep.subr.bf16.mxu0 0
        %970 = vmatpush1.bf16.msra.mxu0 0
        %971 = vmatprep.subr.bf16.mxu0 0
        %972 = vmatpush1.bf16.msra.mxu0 0
        %973 = vmatprep.subr.bf16.mxu0 0
        %974 = vmatpush1.bf16.msra.mxu0 0
        %975 = vmatprep.subr.bf16.mxu0 0
        %976 = vmatpush1.bf16.msra.mxu0 0
        %977 = vmatprep.subr.bf16.mxu0 0
        %978 = vmatpush1.bf16.msra.mxu0 0
        %979 = vmatprep.subr.bf16.mxu0 0
        %980 = vmatpush1.bf16.msra.mxu0 0
        %981 = vmatprep.subr.bf16.mxu0 0
        %982 = vmatpush1.bf16.msra.mxu0 0
        %983 = vmatprep.subr.bf16.mxu0 0
        %984 = vmatpush1.bf16.msra.mxu0 0
        %985 = vmatprep.subr.bf16.mxu0 0
        %986 = vmatpush1.bf16.msra.mxu0 0
        %987 = vmatprep.subr.bf16.mxu0 0
        %988 = vmatpush1.bf16.msra.mxu0 0
        %989 = vmatprep.mubr.bf16.mxu0 0
        %990 = vmatmul.mubr.bf16.gmra.mrb[0].mxu0 %v952
        %v991 = vpop.f32.mrb[0].mxu0
        %v992 = vadd.f32 %v937, %v991
        %v993 = vpop.f32.mrb[0].mxu0
        %v994 = vpop.f32.mrb[0].mxu0
        %v995 = vadd.f32 %v937, %v994
        %v996 = vpop.f32.mrb[0].mxu0
        %997 = vmatprep.mubr.bf16.mxu0 0
        %998 = vmatmul.mubr.bf16.gmra.mrb[0].mxu0 %v955
        %v999 = vpop.f32.mrb[0].mxu0
        %v1000 = vadd.f32 %v937, %v999
        %v1001 = vpop.f32.mrb[0].mxu0
        %v1002 = vpop.f32.mrb[0].mxu0
        %v1003 = vadd.f32 %v937, %v1002
        %v1004 = vpop.f32.mrb[0].mxu0
        %1005 = vdwg.mxu0
        %v1006 = vxor.u32 %v992, 2147483648
        %v1007 = vxor.u32 %v995, 2147483648
        %v1008 = vxor.u32 %v1000, 2147483648
        %v1009 = vxor.u32 %v1003, 2147483648
        %v1010 = vmul.f32 %v1006, 1.442695
        %v1011 = vpow.pop %v1010
        %v1012 = vmul.f32 %v1007, 1.442695
        %v1013 = vpow.pop %v1012
        %v1014 = vmul.f32 %v1008, 1.442695
        %v1015 = vpow.pop %v1014
        %v1016 = vmul.f32 %v1009, 1.442695
        %v1017 = vpow.pop %v1016
        %v1018 = vadd.f32 %v1011, 1.0
        %v1019 = vadd.f32 %v1013, 1.0
        %v1020 = vadd.f32 %v1015, 1.0
        %v1021 = vadd.f32 %v1017, 1.0
        %v1022 = vrcp.pop %v1018
        %v1023 = vmul.f32 1.0, %v1022
        %v1024 = vrcp.pop %v1019
        %v1025 = vmul.f32 1.0, %v1024
        %v1026 = vrcp.pop %v1020
        %v1027 = vmul.f32 1.0, %v1026
        %v1028 = vrcp.pop %v1021
        %v1029 = vmul.f32 1.0, %v1028
        %v1030 = vmul.f32 %v992, %v1023
        %v1031 = vmul.f32 %v995, %v1025
        %v1032 = vmul.f32 %v1000, %v1027
        %v1033 = vmul.f32 %v1003, %v1029
        %v1034 = vpack.c.bf16 %v1031, %v1030
        %v1035 = vpack.c.bf16 %v1033, %v1032
        %v1036 = vld [vmem:[%s5] sm:$0xf]
        %v1037 = vld [vmem:[%s5 + $0x4] sm:$0xf]
        %v1038 = vld [vmem:[%s5 + $0x8] sm:$0xf]
        %v1039 = vld [vmem:[%s5 + $0xc] sm:$0xf]
        %v1040 = vld [vmem:[%s5 + $0x10] sm:$0xf]
        %v1041 = vld [vmem:[%s5 + $0x14] sm:$0xf]
        %v1042 = vld [vmem:[%s5 + $0x18] sm:$0xf]
        %v1043 = vld [vmem:[%s5 + $0x1c] sm:$0xf]
        %v1044 = vld [vmem:[#allocation8] sm:$0x1]
        %v1046 = vlaneseq
        %v1047 = vshrl.u32 %v1046, 7
        %v1048 = vsub.s32 0, %v1047
        %v1049 = vrot.slane %v1044, %v1048
        %v1059 = vunpack.c.l.b16 %v1036
        %v1060 = vunpack.c.l.b16 %v1037
        %v1061 = vunpack.c.l.b16 %v1038
        %v1062 = vunpack.c.l.b16 %v1039
        %v1063 = vunpack.c.l.b16 %v1040
        %v1064 = vunpack.c.l.b16 %v1041
        %v1065 = vunpack.c.l.b16 %v1042
        %v1066 = vunpack.c.l.b16 %v1043
        %v1067 = vpack.c.b16 %v1060, %v1059
        %v1068 = vpack.c.b16 %v1062, %v1061
        %v1069 = vpack.c.b16 %v1064, %v1063
        %v1070 = vpack.c.b16 %v1066, %v1065
        %vm1075 = vcmask 523264
        %v1077 = vsel %vm1075, %v1034, 0
        %v1080 = vsel %vm1075, %v1035, 0
        %1082 = vmatprep.subr.bf16.mxu0 0
        %1083 = vmatpush1.bf16.msra.mxu0 %v1067
        %1084 = vmatprep.subr.bf16.mxu0 0
        %1085 = vmatpush1.bf16.msra.mxu0 %v1068
        %1086 = vmatprep.subr.bf16.mxu0 0
        %1087 = vmatpush1.bf16.msra.mxu0 %v1069
        %1088 = vmatprep.subr.bf16.mxu0 0
        %1089 = vmatpush1.bf16.msra.mxu0 %v1070
        %1090 = vmatprep.subr.bf16.mxu0 0
        %1091 = vmatpush1.bf16.msra.mxu0 0
        %1092 = vmatprep.subr.bf16.mxu0 0
        %1093 = vmatpush1.bf16.msra.mxu0 0
        %1094 = vmatprep.subr.bf16.mxu0 0
        %1095 = vmatpush1.bf16.msra.mxu0 0
        %1096 = vmatprep.subr.bf16.mxu0 0
        %1097 = vmatpush1.bf16.msra.mxu0 0
        %1098 = vmatprep.subr.bf16.mxu0 0
        %1099 = vmatpush1.bf16.msra.mxu0 0
        %1100 = vmatprep.subr.bf16.mxu0 0
        %1101 = vmatpush1.bf16.msra.mxu0 0
        %1102 = vmatprep.subr.bf16.mxu0 0
        %1103 = vmatpush1.bf16.msra.mxu0 0
        %1104 = vmatprep.subr.bf16.mxu0 0
        %1105 = vmatpush1.bf16.msra.mxu0 0
        %1106 = vmatprep.subr.bf16.mxu0 0
        %1107 = vmatpush1.bf16.msra.mxu0 0
        %1108 = vmatprep.subr.bf16.mxu0 0
        %1109 = vmatpush1.bf16.msra.mxu0 0
        %1110 = vmatprep.subr.bf16.mxu0 0
        %1111 = vmatpush1.bf16.msra.mxu0 0
        %1112 = vmatprep.subr.bf16.mxu0 0
        %1113 = vmatpush1.bf16.msra.mxu0 0
        %1114 = vmatprep.mubr.bf16.mxu0 0
        %1115 = vmatmul.mubr.bf16.gmra.mrb[0].mxu0 %v1077
        %v1116 = vpop.f32.mrb[0].mxu0
        %v1117 = vadd.f32 %v1049, %v1116
        %v1118 = vpop.f32.mrb[0].mxu0
        %v1119 = vpop.f32.mrb[0].mxu0
        %v1120 = vadd.f32 %v1049, %v1119
        %v1121 = vpop.f32.mrb[0].mxu0
        %1122 = vmatprep.mubr.bf16.mxu0 0
        %1123 = vmatmul.mubr.bf16.gmra.mrb[0].mxu0 %v1080
        %v1124 = vpop.f32.mrb[0].mxu0
        %v1125 = vadd.f32 %v1049, %v1124
        %v1126 = vpop.f32.mrb[0].mxu0
        %v1127 = vpop.f32.mrb[0].mxu0
        %v1128 = vadd.f32 %v1049, %v1127
        %v1129 = vpop.f32.mrb[0].mxu0
        %1130 = vdwg.mxu0
        %v1131 = vmul.f32 %v1117, 0.5
        %v1132 = vmul.f32 %v1120, 0.5
        %v1133 = vmul.f32 %v1125, 0.5
        %v1134 = vmul.f32 %v1128, 0.5
        %v1135 = vadd.f32 %v847, %v1131
        %v1136 = vadd.f32 %v848, %v1132
        %v1137 = vadd.f32 %v849, %v1133
        %v1138 = vadd.f32 %v850, %v1134
        %v1139 = vsel %vm856, %v1135, 0.0
        %1140 = vadd.xlane.f32.xlu0 %v1139
        %v1141 = vpop.xlane.xlu0 %1140
        %v1142 = vsel %vm856, %v1136, 0.0
        %1143 = vadd.xlane.f32.xlu0 %v1142
        %v1144 = vpop.xlane.xlu0 %1143
        %v1145 = vsel %vm856, %v1137, 0.0
        %1146 = vadd.xlane.f32.xlu0 %v1145
        %v1147 = vpop.xlane.xlu0 %1146
        %v1148 = vsel %vm856, %v1138, 0.0
        %1149 = vadd.xlane.f32.xlu0 %v1148
        %v1150 = vpop.xlane.xlu0 %1149
        %v1151 = vmul.f32 %v1141, %v869
        %v1152 = vmul.f32 %v1144, %v869
        %v1153 = vmul.f32 %v1147, %v869
        %v1154 = vmul.f32 %v1150, %v869
        %v1155 = vsub.f32 %v1135, %v1151
        %v1156 = vsub.f32 %v1136, %v1152
        %v1157 = vsub.f32 %v1137, %v1153
        %v1158 = vsub.f32 %v1138, %v1154
        %v1159 = vmul.f32 %v1155, %v1155
        %v1160 = vmul.f32 %v1156, %v1156
        %v1161 = vmul.f32 %v1157, %v1157
        %v1162 = vmul.f32 %v1158, %v1158
        %v1163 = vsel %vm856, %v1159, 0.0
        %1164 = vadd.xlane.f32.xlu0 %v1163
        %v1165 = vpop.xlane.xlu0 %1164
        %v1166 = vsel %vm856, %v1160, 0.0
        %1167 = vadd.xlane.f32.xlu0 %v1166
        %v1168 = vpop.xlane.xlu0 %1167
        %v1169 = vsel %vm856, %v1161, 0.0
        %1170 = vadd.xlane.f32.xlu0 %v1169
        %v1171 = vpop.xlane.xlu0 %1170
        %v1172 = vsel %vm856, %v1162, 0.0
        %1173 = vadd.xlane.f32.xlu0 %v1172
        %v1174 = vpop.xlane.xlu0 %1173
        %v1175 = vmul.f32 %v1165, %v869
        %v1176 = vmul.f32 %v1168, %v869
        %v1177 = vmul.f32 %v1171, %v869
        %v1178 = vmul.f32 %v1174, %v869
        %v1179 = vadd.f32 %v1175, 1e-12
        %v1180 = vadd.f32 %v1176, 1e-12
        %v1181 = vadd.f32 %v1177, 1e-12
        %v1182 = vadd.f32 %v1178, 1e-12
        %v1183 = vrsqrt.pop %v1179
        %v1184 = vrsqrt.pop %v1180
        %v1185 = vrsqrt.pop %v1181
        %v1186 = vrsqrt.pop %v1182
        %v1187 = vmul.f32 %v1155, %v1183
        %v1188 = vmul.f32 %v1156, %v1184
        %v1189 = vmul.f32 %v1157, %v1185
        %v1190 = vmul.f32 %v1158, %v1186
        %v1191 = vlaneseq
        %v1192 = vshrl.u32 %v1191, 7
        %v1193 = vsub.s32 0, %v1192
        %v1194 = vrot.slane %v852, %v1193
        %v1195 = vmul.f32 %v1187, %v1194
        %v1196 = vmul.f32 %v1188, %v1194
        %v1197 = vmul.f32 %v1189, %v1194
        %v1198 = vmul.f32 %v1190, %v1194
        %v1199 = vlaneseq
        %v1200 = vshrl.u32 %v1199, 7
        %v1201 = vsub.s32 1, %v1200
        %v1202 = vrot.slane %v852, %v1201
        %v1203 = vadd.f32 %v1195, %v1202
        %v1204 = vadd.f32 %v1196, %v1202
        %v1205 = vadd.f32 %v1197, %v1202
        %v1206 = vadd.f32 %v1198, %v1202
        %v1207 = vpack.c.bf16 %v1204, %v1203
        %v1208 = vpack.c.bf16 %v1206, %v1205
        %v1209 = vld [vmem:[%s11] sm:$0xf]
        %v1210 = vld [vmem:[%s11 + $0x4] sm:$0xf]
        %v1211 = vld [vmem:[%s11 + $0x8] sm:$0xf]
        %v1212 = vld [vmem:[%s11 + $0xc] sm:$0xf]
        %v1213 = vld [vmem:[#allocation14] sm:$0x1]
        %v1215 = vlaneseq
        %v1216 = vshrl.u32 %v1215, 7
        %v1217 = vsub.s32 0, %v1216
        %v1218 = vrot.slane %v1213, %v1217
        %v1224 = vunpack.c.l.b16 %v1209
        %v1225 = vunpack.c.l.b16 %v1210
        %v1226 = vunpack.c.l.b16 %v1211
        %v1227 = vunpack.c.l.b16 %v1212
        %v1228 = vpack.c.b16 %v1225, %v1224
        %v1229 = vpack.c.b16 %v1227, %v1226
        %v1233 = vsel %vm856, %v1207, 0
        %v1236 = vsel %vm856, %v1208, 0
        %1238 = vmatprep.subr.bf16.mxu0 0
        %1239 = vmatpush1.bf16.msra.mxu0 %v1228
        %1240 = vmatprep.subr.bf16.mxu0 0
        %1241 = vmatpush1.bf16.msra.mxu0 %v1229
        %1242 = vmatprep.subr.bf16.mxu0 0
        %1243 = vmatpush1.bf16.msra.mxu0 0
        %1244 = vmatprep.subr.bf16.mxu0 0
        %1245 = vmatpush1.bf16.msra.mxu0 0
        %1246 = vmatprep.subr.bf16.mxu0 0
        %1247 = vmatpush1.bf16.msra.mxu0 0
        %1248 = vmatprep.subr.bf16.mxu0 0
        %1249 = vmatpush1.bf16.msra.mxu0 0
        %1250 = vmatprep.subr.bf16.mxu0 0
        %1251 = vmatpush1.bf16.msra.mxu0 0
        %1252 = vmatprep.subr.bf16.mxu0 0
        %1253 = vmatpush1.bf16.msra.mxu0 0
        %1254 = vmatprep.subr.bf16.mxu0 0
        %1255 = vmatpush1.bf16.msra.mxu0 0
        %1256 = vmatprep.subr.bf16.mxu0 0
        %1257 = vmatpush1.bf16.msra.mxu0 0
        %1258 = vmatprep.subr.bf16.mxu0 0
        %1259 = vmatpush1.bf16.msra.mxu0 0
        %1260 = vmatprep.subr.bf16.mxu0 0
        %1261 = vmatpush1.bf16.msra.mxu0 0
        %1262 = vmatprep.subr.bf16.mxu0 0
        %1263 = vmatpush1.bf16.msra.mxu0 0
        %1264 = vmatprep.subr.bf16.mxu0 0
        %1265 = vmatpush1.bf16.msra.mxu0 0
        %1266 = vmatprep.subr.bf16.mxu0 0
        %1267 = vmatpush1.bf16.msra.mxu0 0
        %1268 = vmatprep.subr.bf16.mxu0 0
        %1269 = vmatpush1.bf16.msra.mxu0 0
        %1270 = vmatprep.mubr.bf16.mxu0 0
        %1271 = vmatmul.mubr.bf16.gmra.mrb[0].mxu0 %v1233
        %v1272 = vpop.f32.mrb[0].mxu0
        %v1273 = vadd.f32 %v1218, %v1272
        %v1274 = vpop.f32.mrb[0].mxu0
        %v1275 = vpop.f32.mrb[0].mxu0
        %v1276 = vadd.f32 %v1218, %v1275
        %v1277 = vpop.f32.mrb[0].mxu0
        %1278 = vmatprep.mubr.bf16.mxu0 0
        %1279 = vmatmul.mubr.bf16.gmra.mrb[0].mxu0 %v1236
        %v1280 = vpop.f32.mrb[0].mxu0
        %v1281 = vadd.f32 %v1218, %v1280
        %v1282 = vpop.f32.mrb[0].mxu0
        %v1283 = vpop.f32.mrb[0].mxu0
        %v1284 = vadd.f32 %v1218, %v1283
        %v1285 = vpop.f32.mrb[0].mxu0
        %1286 = vdwg.mxu0
        %1291 = vrot.lane.b32.xlu0 %v1273, 120
        %v1292 = vpop.permute.xlu0 %1291
        %1293 = vrot.lane.b32.xlu0 %v1276, 120
        %v1294 = vpop.permute.xlu0 %1293
        %1295 = vrot.lane.b32.xlu0 %v1281, 120
        %v1296 = vpop.permute.xlu0 %1295
        %1297 = vrot.lane.b32.xlu0 %v1284, 120
        %v1298 = vpop.permute.xlu0 %1297
        %1299 = vrot.lane.b32.xlu0 %v1273, 112
        %v1300 = vpop.permute.xlu0 %1299
        %1301 = vrot.lane.b32.xlu0 %v1276, 112
        %v1302 = vpop.permute.xlu0 %1301
        %1303 = vrot.lane.b32.xlu0 %v1281, 112
        %v1304 = vpop.permute.xlu0 %1303
        %1305 = vrot.lane.b32.xlu0 %v1284, 112
        %v1306 = vpop.permute.xlu0 %1305
        %1307 = vrot.lane.b32.xlu0 %v1273, 104
        %v1308 = vpop.permute.xlu0 %1307
        %1309 = vrot.lane.b32.xlu0 %v1276, 104
        %v1310 = vpop.permute.xlu0 %1309
        %1311 = vrot.lane.b32.xlu0 %v1281, 104
        %v1312 = vpop.permute.xlu0 %1311
        %1313 = vrot.lane.b32.xlu0 %v1284, 104
        %v1314 = vpop.permute.xlu0 %1313
        %v1315 = vld [vmem:[%s728] sm:$0x1]
        %v1316 = vld [vmem:[%s728 + $0x1] sm:$0x1]
        %vm1317 = vcmp.gt.f32.partialorder %v1315, 0.0
        %vm1318 = vcmp.gt.f32.partialorder %v1316, 0.0
        %1319 = vrot.lane.b32.xlu0 %v1273, 96
        %v1320 = vpop.permute.xlu0 %1319
        %1321 = vrot.lane.b32.xlu0 %v1276, 96
        %v1322 = vpop.permute.xlu0 %1321
        %vm1323 = vcmask 64512
        %v1324 = vsel %vm1323, %v1273, 0
        %v1326 = vsel %vm1323, %v1276, 0
        %v1328 = vsel %vm1323, %v1320, 0
        %v1330 = vsel %vm1323, %v1322, 0
        %1332 = vmatprep.subr.mxu0 0.0
        %1333 = vmatpush1.xpose.msra.mxu0 %v1328
        %1334 = vmatprep.subr.mxu0 0.0
        %1335 = vmatpush1.xpose.msra.mxu0 %v1330
        %1336 = vmatprep.subr.mxu0 0.0
        %1337 = vmatpush1.xpose.msra.mxu0 0.0
        %1338 = vmatprep.subr.mxu0 0.0
        %1339 = vmatpush1.xpose.msra.mxu0 0.0
        %1340 = vmatprep.subr.mxu0 0.0
        %1341 = vmatpush1.xpose.msra.mxu0 0.0
        %1342 = vmatprep.subr.mxu0 0.0
        %1343 = vmatpush1.xpose.msra.mxu0 0.0
        %1344 = vmatprep.subr.mxu0 0.0
        %1345 = vmatpush1.xpose.msra.mxu0 0.0
        %1346 = vmatprep.subr.mxu0 0.0
        %1347 = vmatpush1.xpose.msra.mxu0 0.0
        %1348 = vmatprep.subr.mxu0 0.0
        %1349 = vmatpush1.xpose.msra.mxu0 0.0
        %1350 = vmatprep.subr.mxu0 0.0
        %1351 = vmatpush1.xpose.msra.mxu0 0.0
        %1352 = vmatprep.subr.mxu0 0.0
        %1353 = vmatpush1.xpose.msra.mxu0 0.0
        %1354 = vmatprep.subr.mxu0 0.0
        %1355 = vmatpush1.xpose.msra.mxu0 0.0
        %1356 = vmatprep.subr.mxu0 0.0
        %1357 = vmatpush1.xpose.msra.mxu0 0.0
        %1358 = vmatprep.subr.mxu0 0.0
        %1359 = vmatpush1.xpose.msra.mxu0 0.0
        %1360 = vmatprep.subr.mxu0 0.0
        %1361 = vmatpush1.xpose.msra.mxu0 0.0
        %1362 = vmatprep.subr.mxu0 0.0
        %1363 = vmatpush1.xpose.msra.mxu0 0.0
        %1364 = vmatprep.subr.mxu0 0.0
        %1365 = vmatpush1.xpose.msra.mxu0 0.0
        %1366 = vmatprep.subr.mxu0 0.0
        %1367 = vmatpush1.xpose.msra.mxu0 0.0
        %1368 = vmatprep.subr.mxu0 0.0
        %1369 = vmatpush1.xpose.msra.mxu0 0.0
        %1370 = vmatprep.subr.mxu0 0.0
        %1371 = vmatpush1.xpose.msra.mxu0 0.0
        %1372 = vmatprep.subr.mxu0 0.0
        %1373 = vmatpush1.xpose.msra.mxu0 0.0
        %1374 = vmatprep.subr.mxu0 0.0
        %1375 = vmatpush1.xpose.msra.mxu0 0.0
        %1376 = vmatprep.subr.mxu0 0.0
        %1377 = vmatpush1.xpose.msra.mxu0 0.0
        %1378 = vmatprep.subr.mxu0 0.0
        %1379 = vmatpush1.xpose.msra.mxu0 0.0
        %1380 = vmatprep.subr.mxu0 0.0
        %1381 = vmatpush1.xpose.msra.mxu0 0.0
        %1382 = vmatprep.subr.mxu0 0.0
        %1383 = vmatpush1.xpose.msra.mxu0 0.0
        %1384 = vmatprep.subr.mxu0 0.0
        %1385 = vmatpush1.xpose.msra.mxu0 0.0
        %1386 = vmatprep.subr.mxu0 0.0
        %1387 = vmatpush1.xpose.msra.mxu0 0.0
        %1388 = vmatprep.subr.mxu0 0.0
        %1389 = vmatpush1.xpose.msra.mxu0 0.0
        %1390 = vmatprep.subr.mxu0 0.0
        %1391 = vmatpush1.xpose.msra.mxu0 0.0
        %1392 = vmatprep.subr.mxu0 0.0
        %1393 = vmatpush1.xpose.msra.mxu0 0.0
        %1394 = vmatprep.subr.mxu0 0.0
        %1395 = vmatpush1.xpose.msra.mxu0 0.0
        %1396 = vmatprep.mubr.f32.mxu0 0.0
        %1397 = vmatmul.mubr.f32.gmra.mrb[0].mxu0 %v1324
        %v1398 = vpop.f32.mrb[0].mxu0
        %v1399 = vadd.f32 0.0, %v1398
        %v1400 = vpop.f32.mrb[0].mxu0
        %1401 = vmatprep.mubr.f32.mxu0 0.0
        %1402 = vmatmul.mubr.f32.gmra.mrb[0].mxu0 %v1326
        %v1403 = vpop.f32.mrb[0].mxu0
        %v1404 = vadd.f32 0.0, %v1403
        %v1405 = vpop.f32.mrb[0].mxu0
        %1406 = vdwg.mxu0
        %1407 = vrot.lane.b32.xlu0 %v1281, 96
        %v1408 = vpop.permute.xlu0 %1407
        %1409 = vrot.lane.b32.xlu0 %v1284, 96
        %v1410 = vpop.permute.xlu0 %1409
        %v1411 = vsel %vm1323, %v1281, 0
        %v1413 = vsel %vm1323, %v1284, 0
        %v1415 = vsel %vm1323, %v1408, 0
        %v1417 = vsel %vm1323, %v1410, 0
        %1419 = vmatprep.subr.mxu0 0.0
        %1420 = vmatpush1.xpose.msra.mxu0 %v1415
        %1421 = vmatprep.subr.mxu0 0.0
        %1422 = vmatpush1.xpose.msra.mxu0 %v1417
        %1423 = vmatprep.subr.mxu0 0.0
        %1424 = vmatpush1.xpose.msra.mxu0 0.0
        %1425 = vmatprep.subr.mxu0 0.0
        %1426 = vmatpush1.xpose.msra.mxu0 0.0
        %1427 = vmatprep.subr.mxu0 0.0
        %1428 = vmatpush1.xpose.msra.mxu0 0.0
        %1429 = vmatprep.subr.mxu0 0.0
        %1430 = vmatpush1.xpose.msra.mxu0 0.0
        %1431 = vmatprep.subr.mxu0 0.0
        %1432 = vmatpush1.xpose.msra.mxu0 0.0
        %1433 = vmatprep.subr.mxu0 0.0
        %1434 = vmatpush1.xpose.msra.mxu0 0.0
        %1435 = vmatprep.subr.mxu0 0.0
        %1436 = vmatpush1.xpose.msra.mxu0 0.0
        %1437 = vmatprep.subr.mxu0 0.0
        %1438 = vmatpush1.xpose.msra.mxu0 0.0
        %1439 = vmatprep.subr.mxu0 0.0
        %1440 = vmatpush1.xpose.msra.mxu0 0.0
        %1441 = vmatprep.subr.mxu0 0.0
        %1442 = vmatpush1.xpose.msra.mxu0 0.0
        %1443 = vmatprep.subr.mxu0 0.0
        %1444 = vmatpush1.xpose.msra.mxu0 0.0
        %1445 = vmatprep.subr.mxu0 0.0
        %1446 = vmatpush1.xpose.msra.mxu0 0.0
        %1447 = vmatprep.subr.mxu0 0.0
        %1448 = vmatpush1.xpose.msra.mxu0 0.0
        %1449 = vmatprep.subr.mxu0 0.0
        %1450 = vmatpush1.xpose.msra.mxu0 0.0
        %1451 = vmatprep.subr.mxu0 0.0
        %1452 = vmatpush1.xpose.msra.mxu0 0.0
        %1453 = vmatprep.subr.mxu0 0.0
        %1454 = vmatpush1.xpose.msra.mxu0 0.0
        %1455 = vmatprep.subr.mxu0 0.0
        %1456 = vmatpush1.xpose.msra.mxu0 0.0
        %1457 = vmatprep.subr.mxu0 0.0
        %1458 = vmatpush1.xpose.msra.mxu0 0.0
        %1459 = vmatprep.subr.mxu0 0.0
        %1460 = vmatpush1.xpose.msra.mxu0 0.0
        %1461 = vmatprep.subr.mxu0 0.0
        %1462 = vmatpush1.xpose.msra.mxu0 0.0
        %1463 = vmatprep.subr.mxu0 0.0
        %1464 = vmatpush1.xpose.msra.mxu0 0.0
        %1465 = vmatprep.subr.mxu0 0.0
        %1466 = vmatpush1.xpose.msra.mxu0 0.0
        %1467 = vmatprep.subr.mxu0 0.0
        %1468 = vmatpush1.xpose.msra.mxu0 0.0
        %1469 = vmatprep.subr.mxu0 0.0
        %1470 = vmatpush1.xpose.msra.mxu0 0.0
        %1471 = vmatprep.subr.mxu0 0.0
        %1472 = vmatpush1.xpose.msra.mxu0 0.0
        %1473 = vmatprep.subr.mxu0 0.0
        %1474 = vmatpush1.xpose.msra.mxu0 0.0
        %1475 = vmatprep.subr.mxu0 0.0
        %1476 = vmatpush1.xpose.msra.mxu0 0.0
        %1477 = vmatprep.subr.mxu0 0.0
        %1478 = vmatpush1.xpose.msra.mxu0 0.0
        %1479 = vmatprep.subr.mxu0 0.0
        %1480 = vmatpush1.xpose.msra.mxu0 0.0
        %1481 = vmatprep.subr.mxu0 0.0
        %1482 = vmatpush1.xpose.msra.mxu0 0.0
        %1483 = vmatprep.mubr.f32.mxu0 0.0
        %1484 = vmatmul.mubr.f32.gmra.mrb[0].mxu0 %v1411
        %v1485 = vpop.f32.mrb[0].mxu0
        %v1486 = vadd.f32 0.0, %v1485
        %v1487 = vpop.f32.mrb[0].mxu0
        %1488 = vmatprep.mubr.f32.mxu0 0.0
        %1489 = vmatmul.mubr.f32.gmra.mrb[0].mxu0 %v1413
        %v1490 = vpop.f32.mrb[0].mxu0
        %v1491 = vadd.f32 0.0, %v1490
        %v1492 = vpop.f32.mrb[0].mxu0
        %1493 = vdwg.mxu0
        %1494 = vrot.lane.b32.xlu0 %v1292, 96
        %v1495 = vpop.permute.xlu0 %1494
        %1496 = vrot.lane.b32.xlu0 %v1294, 96
        %v1497 = vpop.permute.xlu0 %1496
        %v1498 = vsel %vm1323, %v1292, 0
        %v1500 = vsel %vm1323, %v1294, 0
        %v1502 = vsel %vm1323, %v1495, 0
        %v1504 = vsel %vm1323, %v1497, 0
        %1506 = vmatprep.subr.mxu0 0.0
        %1507 = vmatpush1.xpose.msra.mxu0 %v1502
        %1508 = vmatprep.subr.mxu0 0.0
        %1509 = vmatpush1.xpose.msra.mxu0 %v1504
        %1510 = vmatprep.subr.mxu0 0.0
        %1511 = vmatpush1.xpose.msra.mxu0 0.0
        %1512 = vmatprep.subr.mxu0 0.0
        %1513 = vmatpush1.xpose.msra.mxu0 0.0
        %1514 = vmatprep.subr.mxu0 0.0
        %1515 = vmatpush1.xpose.msra.mxu0 0.0
        %1516 = vmatprep.subr.mxu0 0.0
        %1517 = vmatpush1.xpose.msra.mxu0 0.0
        %1518 = vmatprep.subr.mxu0 0.0
        %1519 = vmatpush1.xpose.msra.mxu0 0.0
        %1520 = vmatprep.subr.mxu0 0.0
        %1521 = vmatpush1.xpose.msra.mxu0 0.0
        %1522 = vmatprep.subr.mxu0 0.0
        %1523 = vmatpush1.xpose.msra.mxu0 0.0
        %1524 = vmatprep.subr.mxu0 0.0
        %1525 = vmatpush1.xpose.msra.mxu0 0.0
        %1526 = vmatprep.subr.mxu0 0.0
        %1527 = vmatpush1.xpose.msra.mxu0 0.0
        %1528 = vmatprep.subr.mxu0 0.0
        %1529 = vmatpush1.xpose.msra.mxu0 0.0
        %1530 = vmatprep.subr.mxu0 0.0
        %1531 = vmatpush1.xpose.msra.mxu0 0.0
        %1532 = vmatprep.subr.mxu0 0.0
        %1533 = vmatpush1.xpose.msra.mxu0 0.0
        %1534 = vmatprep.subr.mxu0 0.0
        %1535 = vmatpush1.xpose.msra.mxu0 0.0
        %1536 = vmatprep.subr.mxu0 0.0
        %1537 = vmatpush1.xpose.msra.mxu0 0.0
        %1538 = vmatprep.subr.mxu0 0.0
        %1539 = vmatpush1.xpose.msra.mxu0 0.0
        %1540 = vmatprep.subr.mxu0 0.0
        %1541 = vmatpush1.xpose.msra.mxu0 0.0
        %1542 = vmatprep.subr.mxu0 0.0
        %1543 = vmatpush1.xpose.msra.mxu0 0.0
        %1544 = vmatprep.subr.mxu0 0.0
        %1545 = vmatpush1.xpose.msra.mxu0 0.0
        %1546 = vmatprep.subr.mxu0 0.0
        %1547 = vmatpush1.xpose.msra.mxu0 0.0
        %1548 = vmatprep.subr.mxu0 0.0
        %1549 = vmatpush1.xpose.msra.mxu0 0.0
        %1550 = vmatprep.subr.mxu0 0.0
        %1551 = vmatpush1.xpose.msra.mxu0 0.0
        %1552 = vmatprep.subr.mxu0 0.0
        %1553 = vmatpush1.xpose.msra.mxu0 0.0
        %1554 = vmatprep.subr.mxu0 0.0
        %1555 = vmatpush1.xpose.msra.mxu0 0.0
        %1556 = vmatprep.subr.mxu0 0.0
        %1557 = vmatpush1.xpose.msra.mxu0 0.0
        %1558 = vmatprep.subr.mxu0 0.0
        %1559 = vmatpush1.xpose.msra.mxu0 0.0
        %1560 = vmatprep.subr.mxu0 0.0
        %1561 = vmatpush1.xpose.msra.mxu0 0.0
        %1562 = vmatprep.subr.mxu0 0.0
        %1563 = vmatpush1.xpose.msra.mxu0 0.0
        %1564 = vmatprep.subr.mxu0 0.0
        %1565 = vmatpush1.xpose.msra.mxu0 0.0
        %1566 = vmatprep.subr.mxu0 0.0
        %1567 = vmatpush1.xpose.msra.mxu0 0.0
        %1568 = vmatprep.subr.mxu0 0.0
        %1569 = vmatpush1.xpose.msra.mxu0 0.0
        %1570 = vmatprep.mubr.f32.mxu0 0.0
        %1571 = vmatmul.mubr.f32.gmra.mrb[0].mxu0 %v1498
        %v1572 = vpop.f32.mrb[0].mxu0
        %v1573 = vadd.f32 0.0, %v1572
        %v1574 = vpop.f32.mrb[0].mxu0
        %1575 = vmatprep.mubr.f32.mxu0 0.0
        %1576 = vmatmul.mubr.f32.gmra.mrb[0].mxu0 %v1500
        %v1577 = vpop.f32.mrb[0].mxu0
        %v1578 = vadd.f32 0.0, %v1577
        %v1579 = vpop.f32.mrb[0].mxu0
        %1580 = vdwg.mxu0
        %1581 = vrot.lane.b32.xlu0 %v1296, 96
        %v1582 = vpop.permute.xlu0 %1581
        %1583 = vrot.lane.b32.xlu0 %v1298, 96
        %v1584 = vpop.permute.xlu0 %1583
        %v1585 = vsel %vm1323, %v1296, 0
        %v1587 = vsel %vm1323, %v1298, 0
        %v1589 = vsel %vm1323, %v1582, 0
        %v1591 = vsel %vm1323, %v1584, 0
        %1593 = vmatprep.subr.mxu0 0.0
        %1594 = vmatpush1.xpose.msra.mxu0 %v1589
        %1595 = vmatprep.subr.mxu0 0.0
        %1596 = vmatpush1.xpose.msra.mxu0 %v1591
        %1597 = vmatprep.subr.mxu0 0.0
        %1598 = vmatpush1.xpose.msra.mxu0 0.0
        %1599 = vmatprep.subr.mxu0 0.0
        %1600 = vmatpush1.xpose.msra.mxu0 0.0
        %1601 = vmatprep.subr.mxu0 0.0
        %1602 = vmatpush1.xpose.msra.mxu0 0.0
        %1603 = vmatprep.subr.mxu0 0.0
        %1604 = vmatpush1.xpose.msra.mxu0 0.0
        %1605 = vmatprep.subr.mxu0 0.0
        %1606 = vmatpush1.xpose.msra.mxu0 0.0
        %1607 = vmatprep.subr.mxu0 0.0
        %1608 = vmatpush1.xpose.msra.mxu0 0.0
        %1609 = vmatprep.subr.mxu0 0.0
        %1610 = vmatpush1.xpose.msra.mxu0 0.0
        %1611 = vmatprep.subr.mxu0 0.0
        %1612 = vmatpush1.xpose.msra.mxu0 0.0
        %1613 = vmatprep.subr.mxu0 0.0
        %1614 = vmatpush1.xpose.msra.mxu0 0.0
        %1615 = vmatprep.subr.mxu0 0.0
        %1616 = vmatpush1.xpose.msra.mxu0 0.0
        %1617 = vmatprep.subr.mxu0 0.0
        %1618 = vmatpush1.xpose.msra.mxu0 0.0
        %1619 = vmatprep.subr.mxu0 0.0
        %1620 = vmatpush1.xpose.msra.mxu0 0.0
        %1621 = vmatprep.subr.mxu0 0.0
        %1622 = vmatpush1.xpose.msra.mxu0 0.0
        %1623 = vmatprep.subr.mxu0 0.0
        %1624 = vmatpush1.xpose.msra.mxu0 0.0
        %1625 = vmatprep.subr.mxu0 0.0
        %1626 = vmatpush1.xpose.msra.mxu0 0.0
        %1627 = vmatprep.subr.mxu0 0.0
        %1628 = vmatpush1.xpose.msra.mxu0 0.0
        %1629 = vmatprep.subr.mxu0 0.0
        %1630 = vmatpush1.xpose.msra.mxu0 0.0
        %1631 = vmatprep.subr.mxu0 0.0
        %1632 = vmatpush1.xpose.msra.mxu0 0.0
        %1633 = vmatprep.subr.mxu0 0.0
        %1634 = vmatpush1.xpose.msra.mxu0 0.0
        %1635 = vmatprep.subr.mxu0 0.0
        %1636 = vmatpush1.xpose.msra.mxu0 0.0
        %1637 = vmatprep.subr.mxu0 0.0
        %1638 = vmatpush1.xpose.msra.mxu0 0.0
        %1639 = vmatprep.subr.mxu0 0.0
        %1640 = vmatpush1.xpose.msra.mxu0 0.0
        %1641 = vmatprep.subr.mxu0 0.0
        %1642 = vmatpush1.xpose.msra.mxu0 0.0
        %1643 = vmatprep.subr.mxu0 0.0
        %1644 = vmatpush1.xpose.msra.mxu0 0.0
        %1645 = vmatprep.subr.mxu0 0.0
        %1646 = vmatpush1.xpose.msra.mxu0 0.0
        %1647 = vmatprep.subr.mxu0 0.0
        %1648 = vmatpush1.xpose.msra.mxu0 0.0
        %1649 = vmatprep.subr.mxu0 0.0
        %1650 = vmatpush1.xpose.msra.mxu0 0.0
        %1651 = vmatprep.subr.mxu0 0.0
        %1652 = vmatpush1.xpose.msra.mxu0 0.0
        %1653 = vmatprep.subr.mxu0 0.0
        %1654 = vmatpush1.xpose.msra.mxu0 0.0
        %1655 = vmatprep.subr.mxu0 0.0
        %1656 = vmatpush1.xpose.msra.mxu0 0.0
        %1657 = vmatprep.mubr.f32.mxu0 0.0
        %1658 = vmatmul.mubr.f32.gmra.mrb[0].mxu0 %v1585
        %v1659 = vpop.f32.mrb[0].mxu0
        %v1660 = vadd.f32 0.0, %v1659
        %v1661 = vpop.f32.mrb[0].mxu0
        %1662 = vmatprep.mubr.f32.mxu0 0.0
        %1663 = vmatmul.mubr.f32.gmra.mrb[0].mxu0 %v1587
        %v1664 = vpop.f32.mrb[0].mxu0
        %v1665 = vadd.f32 0.0, %v1664
        %v1666 = vpop.f32.mrb[0].mxu0
        %1667 = vdwg.mxu0
        %1668 = vrot.lane.b32.xlu0 %v1300, 96
        %v1669 = vpop.permute.xlu0 %1668
        %1670 = vrot.lane.b32.xlu0 %v1302, 96
        %v1671 = vpop.permute.xlu0 %1670
        %v1672 = vsel %vm1323, %v1300, 0
        %v1674 = vsel %vm1323, %v1302, 0
        %v1676 = vsel %vm1323, %v1669, 0
        %v1678 = vsel %vm1323, %v1671, 0
        %1680 = vmatprep.subr.mxu0 0.0
        %1681 = vmatpush1.xpose.msra.mxu0 %v1676
        %1682 = vmatprep.subr.mxu0 0.0
        %1683 = vmatpush1.xpose.msra.mxu0 %v1678
        %1684 = vmatprep.subr.mxu0 0.0
        %1685 = vmatpush1.xpose.msra.mxu0 0.0
        %1686 = vmatprep.subr.mxu0 0.0
        %1687 = vmatpush1.xpose.msra.mxu0 0.0
        %1688 = vmatprep.subr.mxu0 0.0
        %1689 = vmatpush1.xpose.msra.mxu0 0.0
        %1690 = vmatprep.subr.mxu0 0.0
        %1691 = vmatpush1.xpose.msra.mxu0 0.0
        %1692 = vmatprep.subr.mxu0 0.0
        %1693 = vmatpush1.xpose.msra.mxu0 0.0
        %1694 = vmatprep.subr.mxu0 0.0
        %1695 = vmatpush1.xpose.msra.mxu0 0.0
        %1696 = vmatprep.subr.mxu0 0.0
        %1697 = vmatpush1.xpose.msra.mxu0 0.0
        %1698 = vmatprep.subr.mxu0 0.0
        %1699 = vmatpush1.xpose.msra.mxu0 0.0
        %1700 = vmatprep.subr.mxu0 0.0
        %1701 = vmatpush1.xpose.msra.mxu0 0.0
        %1702 = vmatprep.subr.mxu0 0.0
        %1703 = vmatpush1.xpose.msra.mxu0 0.0
        %1704 = vmatprep.subr.mxu0 0.0
        %1705 = vmatpush1.xpose.msra.mxu0 0.0
        %1706 = vmatprep.subr.mxu0 0.0
        %1707 = vmatpush1.xpose.msra.mxu0 0.0
        %1708 = vmatprep.subr.mxu0 0.0
        %1709 = vmatpush1.xpose.msra.mxu0 0.0
        %1710 = vmatprep.subr.mxu0 0.0
        %1711 = vmatpush1.xpose.msra.mxu0 0.0
        %1712 = vmatprep.subr.mxu0 0.0
        %1713 = vmatpush1.xpose.msra.mxu0 0.0
        %1714 = vmatprep.subr.mxu0 0.0
        %1715 = vmatpush1.xpose.msra.mxu0 0.0
        %1716 = vmatprep.subr.mxu0 0.0
        %1717 = vmatpush1.xpose.msra.mxu0 0.0
        %1718 = vmatprep.subr.mxu0 0.0
        %1719 = vmatpush1.xpose.msra.mxu0 0.0
        %1720 = vmatprep.subr.mxu0 0.0
        %1721 = vmatpush1.xpose.msra.mxu0 0.0
        %1722 = vmatprep.subr.mxu0 0.0
        %1723 = vmatpush1.xpose.msra.mxu0 0.0
        %1724 = vmatprep.subr.mxu0 0.0
        %1725 = vmatpush1.xpose.msra.mxu0 0.0
        %1726 = vmatprep.subr.mxu0 0.0
        %1727 = vmatpush1.xpose.msra.mxu0 0.0
        %1728 = vmatprep.subr.mxu0 0.0
        %1729 = vmatpush1.xpose.msra.mxu0 0.0
        %1730 = vmatprep.subr.mxu0 0.0
        %1731 = vmatpush1.xpose.msra.mxu0 0.0
        %1732 = vmatprep.subr.mxu0 0.0
        %1733 = vmatpush1.xpose.msra.mxu0 0.0
        %1734 = vmatprep.subr.mxu0 0.0
        %1735 = vmatpush1.xpose.msra.mxu0 0.0
        %1736 = vmatprep.subr.mxu0 0.0
        %1737 = vmatpush1.xpose.msra.mxu0 0.0
        %1738 = vmatprep.subr.mxu0 0.0
        %1739 = vmatpush1.xpose.msra.mxu0 0.0
        %1740 = vmatprep.subr.mxu0 0.0
        %1741 = vmatpush1.xpose.msra.mxu0 0.0
        %1742 = vmatprep.subr.mxu0 0.0
        %1743 = vmatpush1.xpose.msra.mxu0 0.0
        %1744 = vmatprep.mubr.f32.mxu0 0.0
        %1745 = vmatmul.mubr.f32.gmra.mrb[0].mxu0 %v1672
        %v1746 = vpop.f32.mrb[0].mxu0
        %v1747 = vadd.f32 0.0, %v1746
        %v1748 = vpop.f32.mrb[0].mxu0
        %1749 = vmatprep.mubr.f32.mxu0 0.0
        %1750 = vmatmul.mubr.f32.gmra.mrb[0].mxu0 %v1674
        %v1751 = vpop.f32.mrb[0].mxu0
        %v1752 = vadd.f32 0.0, %v1751
        %v1753 = vpop.f32.mrb[0].mxu0
        %1754 = vdwg.mxu0
        %1755 = vrot.lane.b32.xlu0 %v1304, 96
        %v1756 = vpop.permute.xlu0 %1755
        %1757 = vrot.lane.b32.xlu0 %v1306, 96
        %v1758 = vpop.permute.xlu0 %1757
        %v1759 = vsel %vm1323, %v1304, 0
        %v1761 = vsel %vm1323, %v1306, 0
        %v1763 = vsel %vm1323, %v1756, 0
        %v1765 = vsel %vm1323, %v1758, 0
        %1767 = vmatprep.subr.mxu0 0.0
        %1768 = vmatpush1.xpose.msra.mxu0 %v1763
        %1769 = vmatprep.subr.mxu0 0.0
        %1770 = vmatpush1.xpose.msra.mxu0 %v1765
        %1771 = vmatprep.subr.mxu0 0.0
        %1772 = vmatpush1.xpose.msra.mxu0 0.0
        %1773 = vmatprep.subr.mxu0 0.0
        %1774 = vmatpush1.xpose.msra.mxu0 0.0
        %1775 = vmatprep.subr.mxu0 0.0
        %1776 = vmatpush1.xpose.msra.mxu0 0.0
        %1777 = vmatprep.subr.mxu0 0.0
        %1778 = vmatpush1.xpose.msra.mxu0 0.0
        %1779 = vmatprep.subr.mxu0 0.0
        %1780 = vmatpush1.xpose.msra.mxu0 0.0
        %1781 = vmatprep.subr.mxu0 0.0
        %1782 = vmatpush1.xpose.msra.mxu0 0.0
        %1783 = vmatprep.subr.mxu0 0.0
        %1784 = vmatpush1.xpose.msra.mxu0 0.0
        %1785 = vmatprep.subr.mxu0 0.0
        %1786 = vmatpush1.xpose.msra.mxu0 0.0
        %1787 = vmatprep.subr.mxu0 0.0
        %1788 = vmatpush1.xpose.msra.mxu0 0.0
        %1789 = vmatprep.subr.mxu0 0.0
        %1790 = vmatpush1.xpose.msra.mxu0 0.0
        %1791 = vmatprep.subr.mxu0 0.0
        %1792 = vmatpush1.xpose.msra.mxu0 0.0
        %1793 = vmatprep.subr.mxu0 0.0
        %1794 = vmatpush1.xpose.msra.mxu0 0.0
        %1795 = vmatprep.subr.mxu0 0.0
        %1796 = vmatpush1.xpose.msra.mxu0 0.0
        %1797 = vmatprep.subr.mxu0 0.0
        %1798 = vmatpush1.xpose.msra.mxu0 0.0
        %1799 = vmatprep.subr.mxu0 0.0
        %1800 = vmatpush1.xpose.msra.mxu0 0.0
        %1801 = vmatprep.subr.mxu0 0.0
        %1802 = vmatpush1.xpose.msra.mxu0 0.0
        %1803 = vmatprep.subr.mxu0 0.0
        %1804 = vmatpush1.xpose.msra.mxu0 0.0
        %1805 = vmatprep.subr.mxu0 0.0
        %1806 = vmatpush1.xpose.msra.mxu0 0.0
        %1807 = vmatprep.subr.mxu0 0.0
        %1808 = vmatpush1.xpose.msra.mxu0 0.0
        %1809 = vmatprep.subr.mxu0 0.0
        %1810 = vmatpush1.xpose.msra.mxu0 0.0
        %1811 = vmatprep.subr.mxu0 0.0
        %1812 = vmatpush1.xpose.msra.mxu0 0.0
        %1813 = vmatprep.subr.mxu0 0.0
        %1814 = vmatpush1.xpose.msra.mxu0 0.0
        %1815 = vmatprep.subr.mxu0 0.0
        %1816 = vmatpush1.xpose.msra.mxu0 0.0
        %1817 = vmatprep.subr.mxu0 0.0
        %1818 = vmatpush1.xpose.msra.mxu0 0.0
        %1819 = vmatprep.subr.mxu0 0.0
        %1820 = vmatpush1.xpose.msra.mxu0 0.0
        %1821 = vmatprep.subr.mxu0 0.0
        %1822 = vmatpush1.xpose.msra.mxu0 0.0
        %1823 = vmatprep.subr.mxu0 0.0
        %1824 = vmatpush1.xpose.msra.mxu0 0.0
        %1825 = vmatprep.subr.mxu0 0.0
        %1826 = vmatpush1.xpose.msra.mxu0 0.0
        %1827 = vmatprep.subr.mxu0 0.0
        %1828 = vmatpush1.xpose.msra.mxu0 0.0
        %1829 = vmatprep.subr.mxu0 0.0
        %1830 = vmatpush1.xpose.msra.mxu0 0.0
        %1831 = vmatprep.mubr.f32.mxu0 0.0
        %1832 = vmatmul.mubr.f32.gmra.mrb[0].mxu0 %v1759
        %v1833 = vpop.f32.mrb[0].mxu0
        %v1834 = vadd.f32 0.0, %v1833
        %v1835 = vpop.f32.mrb[0].mxu0
        %1836 = vmatprep.mubr.f32.mxu0 0.0
        %1837 = vmatmul.mubr.f32.gmra.mrb[0].mxu0 %v1761
        %v1838 = vpop.f32.mrb[0].mxu0
        %v1839 = vadd.f32 0.0, %v1838
        %v1840 = vpop.f32.mrb[0].mxu0
        %1841 = vdwg.mxu0
        %1842 = vrot.lane.b32.xlu0 %v1308, 96
        %v1843 = vpop.permute.xlu0 %1842
        %1844 = vrot.lane.b32.xlu0 %v1310, 96
        %v1845 = vpop.permute.xlu0 %1844
        %v1846 = vsel %vm1323, %v1308, 0
        %v1848 = vsel %vm1323, %v1310, 0
        %v1850 = vsel %vm1323, %v1843, 0
        %v1852 = vsel %vm1323, %v1845, 0
        %1854 = vmatprep.subr.mxu0 0.0
        %1855 = vmatpush1.xpose.msra.mxu0 %v1850
        %1856 = vmatprep.subr.mxu0 0.0
        %1857 = vmatpush1.xpose.msra.mxu0 %v1852
        %1858 = vmatprep.subr.mxu0 0.0
        %1859 = vmatpush1.xpose.msra.mxu0 0.0
        %1860 = vmatprep.subr.mxu0 0.0
        %1861 = vmatpush1.xpose.msra.mxu0 0.0
        %1862 = vmatprep.subr.mxu0 0.0
        %1863 = vmatpush1.xpose.msra.mxu0 0.0
        %1864 = vmatprep.subr.mxu0 0.0
        %1865 = vmatpush1.xpose.msra.mxu0 0.0
        %1866 = vmatprep.subr.mxu0 0.0
        %1867 = vmatpush1.xpose.msra.mxu0 0.0
        %1868 = vmatprep.subr.mxu0 0.0
        %1869 = vmatpush1.xpose.msra.mxu0 0.0
        %1870 = vmatprep.subr.mxu0 0.0
        %1871 = vmatpush1.xpose.msra.mxu0 0.0
        %1872 = vmatprep.subr.mxu0 0.0
        %1873 = vmatpush1.xpose.msra.mxu0 0.0
        %1874 = vmatprep.subr.mxu0 0.0
        %1875 = vmatpush1.xpose.msra.mxu0 0.0
        %1876 = vmatprep.subr.mxu0 0.0
        %1877 = vmatpush1.xpose.msra.mxu0 0.0
        %1878 = vmatprep.subr.mxu0 0.0
        %1879 = vmatpush1.xpose.msra.mxu0 0.0
        %1880 = vmatprep.subr.mxu0 0.0
        %1881 = vmatpush1.xpose.msra.mxu0 0.0
        %1882 = vmatprep.subr.mxu0 0.0
        %1883 = vmatpush1.xpose.msra.mxu0 0.0
        %1884 = vmatprep.subr.mxu0 0.0
        %1885 = vmatpush1.xpose.msra.mxu0 0.0
        %1886 = vmatprep.subr.mxu0 0.0
        %1887 = vmatpush1.xpose.msra.mxu0 0.0
        %1888 = vmatprep.subr.mxu0 0.0
        %1889 = vmatpush1.xpose.msra.mxu0 0.0
        %1890 = vmatprep.subr.mxu0 0.0
        %1891 = vmatpush1.xpose.msra.mxu0 0.0
        %1892 = vmatprep.subr.mxu0 0.0
        %1893 = vmatpush1.xpose.msra.mxu0 0.0
        %1894 = vmatprep.subr.mxu0 0.0
        %1895 = vmatpush1.xpose.msra.mxu0 0.0
        %1896 = vmatprep.subr.mxu0 0.0
        %1897 = vmatpush1.xpose.msra.mxu0 0.0
        %1898 = vmatprep.subr.mxu0 0.0
        %1899 = vmatpush1.xpose.msra.mxu0 0.0
        %1900 = vmatprep.subr.mxu0 0.0
        %1901 = vmatpush1.xpose.msra.mxu0 0.0
        %1902 = vmatprep.subr.mxu0 0.0
        %1903 = vmatpush1.xpose.msra.mxu0 0.0
        %1904 = vmatprep.subr.mxu0 0.0
        %1905 = vmatpush1.xpose.msra.mxu0 0.0
        %1906 = vmatprep.subr.mxu0 0.0
        %1907 = vmatpush1.xpose.msra.mxu0 0.0
        %1908 = vmatprep.subr.mxu0 0.0
        %1909 = vmatpush1.xpose.msra.mxu0 0.0
        %1910 = vmatprep.subr.mxu0 0.0
        %1911 = vmatpush1.xpose.msra.mxu0 0.0
        %1912 = vmatprep.subr.mxu0 0.0
        %1913 = vmatpush1.xpose.msra.mxu0 0.0
        %1914 = vmatprep.subr.mxu0 0.0
        %1915 = vmatpush1.xpose.msra.mxu0 0.0
        %1916 = vmatprep.subr.mxu0 0.0
        %1917 = vmatpush1.xpose.msra.mxu0 0.0
        %1918 = vmatprep.mubr.f32.mxu0 0.0
        %1919 = vmatmul.mubr.f32.gmra.mrb[0].mxu0 %v1846
        %v1920 = vpop.f32.mrb[0].mxu0
        %v1921 = vadd.f32 0.0, %v1920
        %v1922 = vpop.f32.mrb[0].mxu0
        %1923 = vmatprep.mubr.f32.mxu0 0.0
        %1924 = vmatmul.mubr.f32.gmra.mrb[0].mxu0 %v1848
        %v1925 = vpop.f32.mrb[0].mxu0
        %v1926 = vadd.f32 0.0, %v1925
        %v1927 = vpop.f32.mrb[0].mxu0
        %1928 = vdwg.mxu0
        %1929 = vrot.lane.b32.xlu0 %v1312, 96
        %v1930 = vpop.permute.xlu0 %1929
        %1931 = vrot.lane.b32.xlu0 %v1314, 96
        %v1932 = vpop.permute.xlu0 %1931
        %v1933 = vsel %vm1323, %v1312, 0
        %v1935 = vsel %vm1323, %v1314, 0
        %v1937 = vsel %vm1323, %v1930, 0
        %v1939 = vsel %vm1323, %v1932, 0
        %1941 = vmatprep.subr.mxu0 0.0
        %1942 = vmatpush1.xpose.msra.mxu0 %v1937
        %1943 = vmatprep.subr.mxu0 0.0
        %1944 = vmatpush1.xpose.msra.mxu0 %v1939
        %1945 = vmatprep.subr.mxu0 0.0
        %1946 = vmatpush1.xpose.msra.mxu0 0.0
        %1947 = vmatprep.subr.mxu0 0.0
        %1948 = vmatpush1.xpose.msra.mxu0 0.0
        %1949 = vmatprep.subr.mxu0 0.0
        %1950 = vmatpush1.xpose.msra.mxu0 0.0
        %1951 = vmatprep.subr.mxu0 0.0
        %1952 = vmatpush1.xpose.msra.mxu0 0.0
        %1953 = vmatprep.subr.mxu0 0.0
        %1954 = vmatpush1.xpose.msra.mxu0 0.0
        %1955 = vmatprep.subr.mxu0 0.0
        %1956 = vmatpush1.xpose.msra.mxu0 0.0
        %1957 = vmatprep.subr.mxu0 0.0
        %1958 = vmatpush1.xpose.msra.mxu0 0.0
        %1959 = vmatprep.subr.mxu0 0.0
        %1960 = vmatpush1.xpose.msra.mxu0 0.0
        %1961 = vmatprep.subr.mxu0 0.0
        %1962 = vmatpush1.xpose.msra.mxu0 0.0
        %1963 = vmatprep.subr.mxu0 0.0
        %1964 = vmatpush1.xpose.msra.mxu0 0.0
        %1965 = vmatprep.subr.mxu0 0.0
        %1966 = vmatpush1.xpose.msra.mxu0 0.0
        %1967 = vmatprep.subr.mxu0 0.0
        %1968 = vmatpush1.xpose.msra.mxu0 0.0
        %1969 = vmatprep.subr.mxu0 0.0
        %1970 = vmatpush1.xpose.msra.mxu0 0.0
        %1971 = vmatprep.subr.mxu0 0.0
        %1972 = vmatpush1.xpose.msra.mxu0 0.0
        %1973 = vmatprep.subr.mxu0 0.0
        %1974 = vmatpush1.xpose.msra.mxu0 0.0
        %1975 = vmatprep.subr.mxu0 0.0
        %1976 = vmatpush1.xpose.msra.mxu0 0.0
        %1977 = vmatprep.subr.mxu0 0.0
        %1978 = vmatpush1.xpose.msra.mxu0 0.0
        %1979 = vmatprep.subr.mxu0 0.0
        %1980 = vmatpush1.xpose.msra.mxu0 0.0
        %1981 = vmatprep.subr.mxu0 0.0
        %1982 = vmatpush1.xpose.msra.mxu0 0.0
        %1983 = vmatprep.subr.mxu0 0.0
        %1984 = vmatpush1.xpose.msra.mxu0 0.0
        %1985 = vmatprep.subr.mxu0 0.0
        %1986 = vmatpush1.xpose.msra.mxu0 0.0
        %1987 = vmatprep.subr.mxu0 0.0
        %1988 = vmatpush1.xpose.msra.mxu0 0.0
        %1989 = vmatprep.subr.mxu0 0.0
        %1990 = vmatpush1.xpose.msra.mxu0 0.0
        %1991 = vmatprep.subr.mxu0 0.0
        %1992 = vmatpush1.xpose.msra.mxu0 0.0
        %1993 = vmatprep.subr.mxu0 0.0
        %1994 = vmatpush1.xpose.msra.mxu0 0.0
        %1995 = vmatprep.subr.mxu0 0.0
        %1996 = vmatpush1.xpose.msra.mxu0 0.0
        %1997 = vmatprep.subr.mxu0 0.0
        %1998 = vmatpush1.xpose.msra.mxu0 0.0
        %1999 = vmatprep.subr.mxu0 0.0
        %2000 = vmatpush1.xpose.msra.mxu0 0.0
        %2001 = vmatprep.subr.mxu0 0.0
        %2002 = vmatpush1.xpose.msra.mxu0 0.0
        %2003 = vmatprep.subr.mxu0 0.0
        %2004 = vmatpush1.xpose.msra.mxu0 0.0
        %2005 = vmatprep.mubr.f32.mxu0 0.0
        %2006 = vmatmul.mubr.f32.gmra.mrb[0].mxu0 %v1933
        %v2007 = vpop.f32.mrb[0].mxu0
        %v2008 = vadd.f32 0.0, %v2007
        %v2009 = vpop.f32.mrb[0].mxu0
        %2010 = vmatprep.mubr.f32.mxu0 0.0
        %2011 = vmatmul.mubr.f32.gmra.mrb[0].mxu0 %v1935
        %v2012 = vpop.f32.mrb[0].mxu0
        %v2013 = vadd.f32 0.0, %v2012
        %v2014 = vpop.f32.mrb[0].mxu0
        %2015 = vdwg.mxu0
        %v2016 = vsel %vm1317, 1, 0
        %v2017 = vsel %vm1318, 1, 0
        %v2018 = vlaneseq
        %v2019 = vshrl.u32 %v2018, 7
        %v2020 = vsub.s32 0, %v2019
        %v2021 = vrot.slane %v2016, %v2020
        %v2022 = vlaneseq
        %v2023 = vshrl.u32 %v2022, 7
        %v2024 = vsub.s32 0, %v2023
        %v2025 = vrot.slane %v2017, %v2024
        %vm2026 = vcmp.eq.s32.totalorder %v2021, 1
        %vm2027 = vcmp.eq.s32.totalorder %v2025, 1
        %v2028 = vsel %vm2026, %v1399, -3.4028235e+38
        %v2029 = vsel %vm2026, %v1404, -3.4028235e+38
        %v2030 = vsel %vm2027, %v1486, -3.4028235e+38
        %v2031 = vsel %vm2027, %v1491, -3.4028235e+38
        %v2032 = vsel %vm2026, %v1573, -3.4028235e+38
        %v2033 = vsel %vm2026, %v1578, -3.4028235e+38
        %v2034 = vsel %vm2027, %v1660, -3.4028235e+38
        %v2035 = vsel %vm2027, %v1665, -3.4028235e+38
        %v2036 = vsel %vm2026, %v1747, -3.4028235e+38
        %v2037 = vsel %vm2026, %v1752, -3.4028235e+38
        %v2038 = vsel %vm2027, %v1834, -3.4028235e+38
        %v2039 = vsel %vm2027, %v1839, -3.4028235e+38
        %v2040 = vsel %vm2026, %v1921, -3.4028235e+38
        %v2041 = vsel %vm2026, %v1926, -3.4028235e+38
        %v2042 = vsel %vm2027, %v2008, -3.4028235e+38
        %v2043 = vsel %vm2027, %v2013, -3.4028235e+38
        %vm2044 = vcmask 130048
        %v2045 = vsel %vm2044, %v2028, -inf
        %2046 = vmax.xlane.f32.xlu0 %v2045
        %v2047 = vpop.xlane.xlu0 %2046
        %v2048 = vsel %vm2044, %v2029, -inf
        %2049 = vmax.xlane.f32.xlu0 %v2048
        %v2050 = vpop.xlane.xlu0 %2049
        %v2051 = vsel %vm2044, %v2030, -inf
        %2052 = vmax.xlane.f32.xlu0 %v2051
        %v2053 = vpop.xlane.xlu0 %2052
        %v2054 = vsel %vm2044, %v2031, -inf
        %2055 = vmax.xlane.f32.xlu0 %v2054
        %v2056 = vpop.xlane.xlu0 %2055
        %v2057 = vsel %vm2044, %v2032, -inf
        %2058 = vmax.xlane.f32.xlu0 %v2057
        %v2059 = vpop.xlane.xlu0 %2058
        %v2060 = vsel %vm2044, %v2033, -inf
        %2061 = vmax.xlane.f32.xlu0 %v2060
        %v2062 = vpop.xlane.xlu0 %2061
        %v2063 = vsel %vm2044, %v2034, -inf
        %2064 = vmax.xlane.f32.xlu0 %v2063
        %v2065 = vpop.xlane.xlu0 %2064
        %v2066 = vsel %vm2044, %v2035, -inf
        %2067 = vmax.xlane.f32.xlu0 %v2066
        %v2068 = vpop.xlane.xlu0 %2067
        %v2069 = vsel %vm2044, %v2036, -inf
        %2070 = vmax.xlane.f32.xlu0 %v2069
        %v2071 = vpop.xlane.xlu0 %2070
        %v2072 = vsel %vm2044, %v2037, -inf
        %2073 = vmax.xlane.f32.xlu0 %v2072
        %v2074 = vpop.xlane.xlu0 %2073
        %v2075 = vsel %vm2044, %v2038, -inf
        %2076 = vmax.xlane.f32.xlu0 %v2075
        %v2077 = vpop.xlane.xlu0 %2076
        %v2078 = vsel %vm2044, %v2039, -inf
        %2079 = vmax.xlane.f32.xlu0 %v2078
        %v2080 = vpop.xlane.xlu0 %2079
        %v2081 = vsel %vm2044, %v2040, -inf
        %2082 = vmax.xlane.f32.xlu0 %v2081
        %v2083 = vpop.xlane.xlu0 %2082
        %v2084 = vsel %vm2044, %v2041, -inf
        %2085 = vmax.xlane.f32.xlu0 %v2084
        %v2086 = vpop.xlane.xlu0 %2085
        %v2087 = vsel %vm2044, %v2042, -inf
        %2088 = vmax.xlane.f32.xlu0 %v2087
        %v2089 = vpop.xlane.xlu0 %2088
        %v2090 = vsel %vm2044, %v2043, -inf
        %2091 = vmax.xlane.f32.xlu0 %v2090
        %v2092 = vpop.xlane.xlu0 %2091
        %v2093 = vsub.f32 %v2028, %v2047
        %v2094 = vsub.f32 %v2029, %v2050
        %v2095 = vsub.f32 %v2030, %v2053
        %v2096 = vsub.f32 %v2031, %v2056
        %v2097 = vsub.f32 %v2032, %v2059
        %v2098 = vsub.f32 %v2033, %v2062
        %v2099 = vsub.f32 %v2034, %v2065
        %v2100 = vsub.f32 %v2035, %v2068
        %v2101 = vsub.f32 %v2036, %v2071
        %v2102 = vsub.f32 %v2037, %v2074
        %v2103 = vsub.f32 %v2038, %v2077
        %v2104 = vsub.f32 %v2039, %v2080
        %v2105 = vsub.f32 %v2040, %v2083
        %v2106 = vsub.f32 %v2041, %v2086
        %v2107 = vsub.f32 %v2042, %v2089
        %v2108 = vsub.f32 %v2043, %v2092
        %v2109 = vmul.f32 %v2093, 1.442695
        %v2110 = vpow.pop %v2109
        %v2111 = vmul.f32 %v2094, 1.442695
        %v2112 = vpow.pop %v2111
        %v2113 = vmul.f32 %v2095, 1.442695
        %v2114 = vpow.pop %v2113
        %v2115 = vmul.f32 %v2096, 1.442695
        %v2116 = vpow.pop %v2115
        %v2117 = vmul.f32 %v2097, 1.442695
        %v2118 = vpow.pop %v2117
        %v2119 = vmul.f32 %v2098, 1.442695
        %v2120 = vpow.pop %v2119
        %v2121 = vmul.f32 %v2099, 1.442695
        %v2122 = vpow.pop %v2121
        %v2123 = vmul.f32 %v2100, 1.442695
        %v2124 = vpow.pop %v2123
        %v2125 = vmul.f32 %v2101, 1.442695
        %v2126 = vpow.pop %v2125
        %v2127 = vmul.f32 %v2102, 1.442695
        %v2128 = vpow.pop %v2127
        %v2129 = vmul.f32 %v2103, 1.442695
        %v2130 = vpow.pop %v2129
        %v2131 = vmul.f32 %v2104, 1.442695
        %v2132 = vpow.pop %v2131
        %v2133 = vmul.f32 %v2105, 1.442695
        %v2134 = vpow.pop %v2133
        %v2135 = vmul.f32 %v2106, 1.442695
        %v2136 = vpow.pop %v2135
        %v2137 = vmul.f32 %v2107, 1.442695
        %v2138 = vpow.pop %v2137
        %v2139 = vmul.f32 %v2108, 1.442695
        %v2140 = vpow.pop %v2139
        %v2141 = vsel %vm2044, %v2110, 0.0
        %2142 = vadd.xlane.f32.xlu0 %v2141
        %v2143 = vpop.xlane.xlu0 %2142
        %v2144 = vsel %vm2044, %v2112, 0.0
        %2145 = vadd.xlane.f32.xlu0 %v2144
        %v2146 = vpop.xlane.xlu0 %2145
        %v2147 = vsel %vm2044, %v2114, 0.0
        %2148 = vadd.xlane.f32.xlu0 %v2147
        %v2149 = vpop.xlane.xlu0 %2148
        %v2150 = vsel %vm2044, %v2116, 0.0
        %2151 = vadd.xlane.f32.xlu0 %v2150
        %v2152 = vpop.xlane.xlu0 %2151
        %v2153 = vsel %vm2044, %v2118, 0.0
        %2154 = vadd.xlane.f32.xlu0 %v2153
        %v2155 = vpop.xlane.xlu0 %2154
        %v2156 = vsel %vm2044, %v2120, 0.0
        %2157 = vadd.xlane.f32.xlu0 %v2156
        %v2158 = vpop.xlane.xlu0 %2157
        %v2159 = vsel %vm2044, %v2122, 0.0
        %2160 = vadd.xlane.f32.xlu0 %v2159
        %v2161 = vpop.xlane.xlu0 %2160
        %v2162 = vsel %vm2044, %v2124, 0.0
        %2163 = vadd.xlane.f32.xlu0 %v2162
        %v2164 = vpop.xlane.xlu0 %2163
        %v2165 = vsel %vm2044, %v2126, 0.0
        %2166 = vadd.xlane.f32.xlu0 %v2165
        %v2167 = vpop.xlane.xlu0 %2166
        %v2168 = vsel %vm2044, %v2128, 0.0
        %2169 = vadd.xlane.f32.xlu0 %v2168
        %v2170 = vpop.xlane.xlu0 %2169
        %v2171 = vsel %vm2044, %v2130, 0.0
        %2172 = vadd.xlane.f32.xlu0 %v2171
        %v2173 = vpop.xlane.xlu0 %2172
        %v2174 = vsel %vm2044, %v2132, 0.0
        %2175 = vadd.xlane.f32.xlu0 %v2174
        %v2176 = vpop.xlane.xlu0 %2175
        %v2177 = vsel %vm2044, %v2134, 0.0
        %2178 = vadd.xlane.f32.xlu0 %v2177
        %v2179 = vpop.xlane.xlu0 %2178
        %v2180 = vsel %vm2044, %v2136, 0.0
        %2181 = vadd.xlane.f32.xlu0 %v2180
        %v2182 = vpop.xlane.xlu0 %2181
        %v2183 = vsel %vm2044, %v2138, 0.0
        %2184 = vadd.xlane.f32.xlu0 %v2183
        %v2185 = vpop.xlane.xlu0 %2184
        %v2186 = vsel %vm2044, %v2140, 0.0
        %2187 = vadd.xlane.f32.xlu0 %v2186
        %v2188 = vpop.xlane.xlu0 %2187
        %v2189 = vrcp.pop %v2143
        %v2190 = vrcp.pop %v2146
        %v2191 = vrcp.pop %v2149
        %v2192 = vrcp.pop %v2152
        %v2193 = vrcp.pop %v2155
        %v2194 = vrcp.pop %v2158
        %v2195 = vrcp.pop %v2161
        %v2196 = vrcp.pop %v2164
        %v2197 = vrcp.pop %v2167
        %v2198 = vrcp.pop %v2170
        %v2199 = vrcp.pop %v2173
        %v2200 = vrcp.pop %v2176
        %v2201 = vrcp.pop %v2179
        %v2202 = vrcp.pop %v2182
        %v2203 = vrcp.pop %v2185
        %v2204 = vrcp.pop %v2188
        %v2205 = vmul.f32 %v2110, %v2189
        %v2206 = vmul.f32 %v2112, %v2190
        %v2207 = vmul.f32 %v2114, %v2191
        %v2208 = vmul.f32 %v2116, %v2192
        %v2209 = vmul.f32 %v2118, %v2193
        %v2210 = vmul.f32 %v2120, %v2194
        %v2211 = vmul.f32 %v2122, %v2195
        %v2212 = vmul.f32 %v2124, %v2196
        %v2213 = vmul.f32 %v2126, %v2197
        %v2214 = vmul.f32 %v2128, %v2198
        %v2215 = vmul.f32 %v2130, %v2199
        %v2216 = vmul.f32 %v2132, %v2200
        %v2217 = vmul.f32 %v2134, %v2201
        %v2218 = vmul.f32 %v2136, %v2202
        %v2219 = vmul.f32 %v2138, %v2203
        %v2220 = vmul.f32 %v2140, %v2204
        %v2221 = vsel %vm2026, %v2205, 0.0
        %v2222 = vsel %vm2026, %v2206, 0.0
        %v2223 = vsel %vm2027, %v2207, 0.0
        %v2224 = vsel %vm2027, %v2208, 0.0
        %v2225 = vsel %vm2026, %v2209, 0.0
        %v2226 = vsel %vm2026, %v2210, 0.0
        %v2227 = vsel %vm2027, %v2211, 0.0
        %v2228 = vsel %vm2027, %v2212, 0.0
        %v2229 = vsel %vm2026, %v2213, 0.0
        %v2230 = vsel %vm2026, %v2214, 0.0
        %v2231 = vsel %vm2027, %v2215, 0.0
        %v2232 = vsel %vm2027, %v2216, 0.0
        %v2233 = vsel %vm2026, %v2217, 0.0
        %v2234 = vsel %vm2026, %v2218, 0.0
        %v2235 = vsel %vm2027, %v2219, 0.0
        %v2236 = vsel %vm2027, %v2220, 0.0
        %2237 = vrot.lane.b32.xlu0 %v1273, 64
        %v2238 = vpop.permute.xlu0 %2237
        %2239 = vrot.lane.b32.xlu0 %v1276, 64
        %v2240 = vpop.permute.xlu0 %2239
        %v2244 = vsel %vm2044, %v2221, 0
        %v2247 = vsel %vm2044, %v2222, 0
        %2249 = vmatprep.subr.mxu0 0.0
        %2250 = vmatpush1.msra.mxu0 %v2238
        %2251 = vmatprep.subr.mxu0 0.0
        %2252 = vmatpush1.msra.mxu0 %v2240
        %2253 = vmatprep.subr.mxu0 0.0
        %2254 = vmatpush1.msra.mxu0 0.0
        %2255 = vmatprep.subr.mxu0 0.0
        %2256 = vmatpush1.msra.mxu0 0.0
        %2257 = vmatprep.subr.mxu0 0.0
        %2258 = vmatpush1.msra.mxu0 0.0
        %2259 = vmatprep.subr.mxu0 0.0
        %2260 = vmatpush1.msra.mxu0 0.0
        %2261 = vmatprep.subr.mxu0 0.0
        %2262 = vmatpush1.msra.mxu0 0.0
        %2263 = vmatprep.subr.mxu0 0.0
        %2264 = vmatpush1.msra.mxu0 0.0
        %2265 = vmatprep.subr.mxu0 0.0
        %2266 = vmatpush1.msra.mxu0 0.0
        %2267 = vmatprep.subr.mxu0 0.0
        %2268 = vmatpush1.msra.mxu0 0.0
        %2269 = vmatprep.subr.mxu0 0.0
        %2270 = vmatpush1.msra.mxu0 0.0
        %2271 = vmatprep.subr.mxu0 0.0
        %2272 = vmatpush1.msra.mxu0 0.0
        %2273 = vmatprep.subr.mxu0 0.0
        %2274 = vmatpush1.msra.mxu0 0.0
        %2275 = vmatprep.subr.mxu0 0.0
        %2276 = vmatpush1.msra.mxu0 0.0
        %2277 = vmatprep.subr.mxu0 0.0
        %2278 = vmatpush1.msra.mxu0 0.0
        %2279 = vmatprep.subr.mxu0 0.0
        %2280 = vmatpush1.msra.mxu0 0.0
        %2281 = vmatprep.subr.mxu0 0.0
        %2282 = vmatpush1.msra.mxu0 0.0
        %2283 = vmatprep.subr.mxu0 0.0
        %2284 = vmatpush1.msra.mxu0 0.0
        %2285 = vmatprep.subr.mxu0 0.0
        %2286 = vmatpush1.msra.mxu0 0.0
        %2287 = vmatprep.subr.mxu0 0.0
        %2288 = vmatpush1.msra.mxu0 0.0
        %2289 = vmatprep.subr.mxu0 0.0
        %2290 = vmatpush1.msra.mxu0 0.0
        %2291 = vmatprep.subr.mxu0 0.0
        %2292 = vmatpush1.msra.mxu0 0.0
        %2293 = vmatprep.subr.mxu0 0.0
        %2294 = vmatpush1.msra.mxu0 0.0
        %2295 = vmatprep.subr.mxu0 0.0
        %2296 = vmatpush1.msra.mxu0 0.0
        %2297 = vmatprep.subr.mxu0 0.0
        %2298 = vmatpush1.msra.mxu0 0.0
        %2299 = vmatprep.subr.mxu0 0.0
        %2300 = vmatpush1.msra.mxu0 0.0
        %2301 = vmatprep.subr.mxu0 0.0
        %2302 = vmatpush1.msra.mxu0 0.0
        %2303 = vmatprep.subr.mxu0 0.0
        %2304 = vmatpush1.msra.mxu0 0.0
        %2305 = vmatprep.subr.mxu0 0.0
        %2306 = vmatpush1.msra.mxu0 0.0
        %2307 = vmatprep.subr.mxu0 0.0
        %2308 = vmatpush1.msra.mxu0 0.0
        %2309 = vmatprep.subr.mxu0 0.0
        %2310 = vmatpush1.msra.mxu0 0.0
        %2311 = vmatprep.subr.mxu0 0.0
        %2312 = vmatpush1.msra.mxu0 0.0
        %2313 = vmatprep.mubr.f32.mxu0 0.0
        %2314 = vmatmul.mubr.f32.gmra.mrb[0].mxu0 %v2244
        %v2315 = vpop.f32.mrb[0].mxu0
        %v2316 = vadd.f32 0.0, %v2315
        %v2317 = vpop.f32.mrb[0].mxu0
        %2318 = vmatprep.mubr.f32.mxu0 0.0
        %2319 = vmatmul.mubr.f32.gmra.mrb[0].mxu0 %v2247
        %v2320 = vpop.f32.mrb[0].mxu0
        %v2321 = vadd.f32 0.0, %v2320
        %v2322 = vpop.f32.mrb[0].mxu0
        %2323 = vdwg.mxu0
        %2324 = vrot.lane.b32.xlu0 %v1281, 64
        %v2325 = vpop.permute.xlu0 %2324
        %2326 = vrot.lane.b32.xlu0 %v1284, 64
        %v2327 = vpop.permute.xlu0 %2326
        %v2331 = vsel %vm2044, %v2223, 0
        %v2334 = vsel %vm2044, %v2224, 0
        %2336 = vmatprep.subr.mxu0 0.0
        %2337 = vmatpush1.msra.mxu0 %v2325
        %2338 = vmatprep.subr.mxu0 0.0
        %2339 = vmatpush1.msra.mxu0 %v2327
        %2340 = vmatprep.subr.mxu0 0.0
        %2341 = vmatpush1.msra.mxu0 0.0
        %2342 = vmatprep.subr.mxu0 0.0
        %2343 = vmatpush1.msra.mxu0 0.0
        %2344 = vmatprep.subr.mxu0 0.0
        %2345 = vmatpush1.msra.mxu0 0.0
        %2346 = vmatprep.subr.mxu0 0.0
        %2347 = vmatpush1.msra.mxu0 0.0
        %2348 = vmatprep.subr.mxu0 0.0
        %2349 = vmatpush1.msra.mxu0 0.0
        %2350 = vmatprep.subr.mxu0 0.0
        %2351 = vmatpush1.msra.mxu0 0.0
        %2352 = vmatprep.subr.mxu0 0.0
        %2353 = vmatpush1.msra.mxu0 0.0
        %2354 = vmatprep.subr.mxu0 0.0
        %2355 = vmatpush1.msra.mxu0 0.0
        %2356 = vmatprep.subr.mxu0 0.0
        %2357 = vmatpush1.msra.mxu0 0.0
        %2358 = vmatprep.subr.mxu0 0.0
        %2359 = vmatpush1.msra.mxu0 0.0
        %2360 = vmatprep.subr.mxu0 0.0
        %2361 = vmatpush1.msra.mxu0 0.0
        %2362 = vmatprep.subr.mxu0 0.0
        %2363 = vmatpush1.msra.mxu0 0.0
        %2364 = vmatprep.subr.mxu0 0.0
        %2365 = vmatpush1.msra.mxu0 0.0
        %2366 = vmatprep.subr.mxu0 0.0
        %2367 = vmatpush1.msra.mxu0 0.0
        %2368 = vmatprep.subr.mxu0 0.0
        %2369 = vmatpush1.msra.mxu0 0.0
        %2370 = vmatprep.subr.mxu0 0.0
        %2371 = vmatpush1.msra.mxu0 0.0
        %2372 = vmatprep.subr.mxu0 0.0
        %2373 = vmatpush1.msra.mxu0 0.0
        %2374 = vmatprep.subr.mxu0 0.0
        %2375 = vmatpush1.msra.mxu0 0.0
        %2376 = vmatprep.subr.mxu0 0.0
        %2377 = vmatpush1.msra.mxu0 0.0
        %2378 = vmatprep.subr.mxu0 0.0
        %2379 = vmatpush1.msra.mxu0 0.0
        %2380 = vmatprep.subr.mxu0 0.0
        %2381 = vmatpush1.msra.mxu0 0.0
        %2382 = vmatprep.subr.mxu0 0.0
        %2383 = vmatpush1.msra.mxu0 0.0
        %2384 = vmatprep.subr.mxu0 0.0
        %2385 = vmatpush1.msra.mxu0 0.0
        %2386 = vmatprep.subr.mxu0 0.0
        %2387 = vmatpush1.msra.mxu0 0.0
        %2388 = vmatprep.subr.mxu0 0.0
        %2389 = vmatpush1.msra.mxu0 0.0
        %2390 = vmatprep.subr.mxu0 0.0
        %2391 = vmatpush1.msra.mxu0 0.0
        %2392 = vmatprep.subr.mxu0 0.0
        %2393 = vmatpush1.msra.mxu0 0.0
        %2394 = vmatprep.subr.mxu0 0.0
        %2395 = vmatpush1.msra.mxu0 0.0
        %2396 = vmatprep.subr.mxu0 0.0
        %2397 = vmatpush1.msra.mxu0 0.0
        %2398 = vmatprep.subr.mxu0 0.0
        %2399 = vmatpush1.msra.mxu0 0.0
        %2400 = vmatprep.mubr.f32.mxu0 0.0
        %2401 = vmatmul.mubr.f32.gmra.mrb[0].mxu0 %v2331
        %v2402 = vpop.f32.mrb[0].mxu0
        %v2403 = vadd.f32 0.0, %v2402
        %v2404 = vpop.f32.mrb[0].mxu0
        %2405 = vmatprep.mubr.f32.mxu0 0.0
        %2406 = vmatmul.mubr.f32.gmra.mrb[0].mxu0 %v2334
        %v2407 = vpop.f32.mrb[0].mxu0
        %v2408 = vadd.f32 0.0, %v2407
        %v2409 = vpop.f32.mrb[0].mxu0
        %2410 = vdwg.mxu0
        %2411 = vrot.lane.b32.xlu0 %v1292, 64
        %v2412 = vpop.permute.xlu0 %2411
        %2413 = vrot.lane.b32.xlu0 %v1294, 64
        %v2414 = vpop.permute.xlu0 %2413
        %v2418 = vsel %vm2044, %v2225, 0
        %v2421 = vsel %vm2044, %v2226, 0
        %2423 = vmatprep.subr.mxu0 0.0
        %2424 = vmatpush1.msra.mxu0 %v2412
        %2425 = vmatprep.subr.mxu0 0.0
        %2426 = vmatpush1.msra.mxu0 %v2414
        %2427 = vmatprep.subr.mxu0 0.0
        %2428 = vmatpush1.msra.mxu0 0.0
        %2429 = vmatprep.subr.mxu0 0.0
        %2430 = vmatpush1.msra.mxu0 0.0
        %2431 = vmatprep.subr.mxu0 0.0
        %2432 = vmatpush1.msra.mxu0 0.0
        %2433 = vmatprep.subr.mxu0 0.0
        %2434 = vmatpush1.msra.mxu0 0.0
        %2435 = vmatprep.subr.mxu0 0.0
        %2436 = vmatpush1.msra.mxu0 0.0
        %2437 = vmatprep.subr.mxu0 0.0
        %2438 = vmatpush1.msra.mxu0 0.0
        %2439 = vmatprep.subr.mxu0 0.0
        %2440 = vmatpush1.msra.mxu0 0.0
        %2441 = vmatprep.subr.mxu0 0.0
        %2442 = vmatpush1.msra.mxu0 0.0
        %2443 = vmatprep.subr.mxu0 0.0
        %2444 = vmatpush1.msra.mxu0 0.0
        %2445 = vmatprep.subr.mxu0 0.0
        %2446 = vmatpush1.msra.mxu0 0.0
        %2447 = vmatprep.subr.mxu0 0.0
        %2448 = vmatpush1.msra.mxu0 0.0
        %2449 = vmatprep.subr.mxu0 0.0
        %2450 = vmatpush1.msra.mxu0 0.0
        %2451 = vmatprep.subr.mxu0 0.0
        %2452 = vmatpush1.msra.mxu0 0.0
        %2453 = vmatprep.subr.mxu0 0.0
        %2454 = vmatpush1.msra.mxu0 0.0
        %2455 = vmatprep.subr.mxu0 0.0
        %2456 = vmatpush1.msra.mxu0 0.0
        %2457 = vmatprep.subr.mxu0 0.0
        %2458 = vmatpush1.msra.mxu0 0.0
        %2459 = vmatprep.subr.mxu0 0.0
        %2460 = vmatpush1.msra.mxu0 0.0
        %2461 = vmatprep.subr.mxu0 0.0
        %2462 = vmatpush1.msra.mxu0 0.0
        %2463 = vmatprep.subr.mxu0 0.0
        %2464 = vmatpush1.msra.mxu0 0.0
        %2465 = vmatprep.subr.mxu0 0.0
        %2466 = vmatpush1.msra.mxu0 0.0
        %2467 = vmatprep.subr.mxu0 0.0
        %2468 = vmatpush1.msra.mxu0 0.0
        %2469 = vmatprep.subr.mxu0 0.0
        %2470 = vmatpush1.msra.mxu0 0.0
        %2471 = vmatprep.subr.mxu0 0.0
        %2472 = vmatpush1.msra.mxu0 0.0
        %2473 = vmatprep.subr.mxu0 0.0
        %2474 = vmatpush1.msra.mxu0 0.0
        %2475 = vmatprep.subr.mxu0 0.0
        %2476 = vmatpush1.msra.mxu0 0.0
        %2477 = vmatprep.subr.mxu0 0.0
        %2478 = vmatpush1.msra.mxu0 0.0
        %2479 = vmatprep.subr.mxu0 0.0
        %2480 = vmatpush1.msra.mxu0 0.0
        %2481 = vmatprep.subr.mxu0 0.0
        %2482 = vmatpush1.msra.mxu0 0.0
        %2483 = vmatprep.subr.mxu0 0.0
        %2484 = vmatpush1.msra.mxu0 0.0
        %2485 = vmatprep.subr.mxu0 0.0
        %2486 = vmatpush1.msra.mxu0 0.0
        %2487 = vmatprep.mubr.f32.mxu0 0.0
        %2488 = vmatmul.mubr.f32.gmra.mrb[0].mxu0 %v2418
        %v2489 = vpop.f32.mrb[0].mxu0
        %v2490 = vadd.f32 0.0, %v2489
        %v2491 = vpop.f32.mrb[0].mxu0
        %2492 = vmatprep.mubr.f32.mxu0 0.0
        %2493 = vmatmul.mubr.f32.gmra.mrb[0].mxu0 %v2421
        %v2494 = vpop.f32.mrb[0].mxu0
        %v2495 = vadd.f32 0.0, %v2494
        %v2496 = vpop.f32.mrb[0].mxu0
        %2497 = vdwg.mxu0
        %2498 = vrot.lane.b32.xlu0 %v1296, 64
        %v2499 = vpop.permute.xlu0 %2498
        %2500 = vrot.lane.b32.xlu0 %v1298, 64
        %v2501 = vpop.permute.xlu0 %2500
        %v2505 = vsel %vm2044, %v2227, 0
        %v2508 = vsel %vm2044, %v2228, 0
        %2510 = vmatprep.subr.mxu0 0.0
        %2511 = vmatpush1.msra.mxu0 %v2499
        %2512 = vmatprep.subr.mxu0 0.0
        %2513 = vmatpush1.msra.mxu0 %v2501
        %2514 = vmatprep.subr.mxu0 0.0
        %2515 = vmatpush1.msra.mxu0 0.0
        %2516 = vmatprep.subr.mxu0 0.0
        %2517 = vmatpush1.msra.mxu0 0.0
        %2518 = vmatprep.subr.mxu0 0.0
        %2519 = vmatpush1.msra.mxu0 0.0
        %2520 = vmatprep.subr.mxu0 0.0
        %2521 = vmatpush1.msra.mxu0 0.0
        %2522 = vmatprep.subr.mxu0 0.0
        %2523 = vmatpush1.msra.mxu0 0.0
        %2524 = vmatprep.subr.mxu0 0.0
        %2525 = vmatpush1.msra.mxu0 0.0
        %2526 = vmatprep.subr.mxu0 0.0
        %2527 = vmatpush1.msra.mxu0 0.0
        %2528 = vmatprep.subr.mxu0 0.0
        %2529 = vmatpush1.msra.mxu0 0.0
        %2530 = vmatprep.subr.mxu0 0.0
        %2531 = vmatpush1.msra.mxu0 0.0
        %2532 = vmatprep.subr.mxu0 0.0
        %2533 = vmatpush1.msra.mxu0 0.0
        %2534 = vmatprep.subr.mxu0 0.0
        %2535 = vmatpush1.msra.mxu0 0.0
        %2536 = vmatprep.subr.mxu0 0.0
        %2537 = vmatpush1.msra.mxu0 0.0
        %2538 = vmatprep.subr.mxu0 0.0
        %2539 = vmatpush1.msra.mxu0 0.0
        %2540 = vmatprep.subr.mxu0 0.0
        %2541 = vmatpush1.msra.mxu0 0.0
        %2542 = vmatprep.subr.mxu0 0.0
        %2543 = vmatpush1.msra.mxu0 0.0
        %2544 = vmatprep.subr.mxu0 0.0
        %2545 = vmatpush1.msra.mxu0 0.0
        %2546 = vmatprep.subr.mxu0 0.0
        %2547 = vmatpush1.msra.mxu0 0.0
        %2548 = vmatprep.subr.mxu0 0.0
        %2549 = vmatpush1.msra.mxu0 0.0
        %2550 = vmatprep.subr.mxu0 0.0
        %2551 = vmatpush1.msra.mxu0 0.0
        %2552 = vmatprep.subr.mxu0 0.0
        %2553 = vmatpush1.msra.mxu0 0.0
        %2554 = vmatprep.subr.mxu0 0.0
        %2555 = vmatpush1.msra.mxu0 0.0
        %2556 = vmatprep.subr.mxu0 0.0
        %2557 = vmatpush1.msra.mxu0 0.0
        %2558 = vmatprep.subr.mxu0 0.0
        %2559 = vmatpush1.msra.mxu0 0.0
        %2560 = vmatprep.subr.mxu0 0.0
        %2561 = vmatpush1.msra.mxu0 0.0
        %2562 = vmatprep.subr.mxu0 0.0
        %2563 = vmatpush1.msra.mxu0 0.0
        %2564 = vmatprep.subr.mxu0 0.0
        %2565 = vmatpush1.msra.mxu0 0.0
        %2566 = vmatprep.subr.mxu0 0.0
        %2567 = vmatpush1.msra.mxu0 0.0
        %2568 = vmatprep.subr.mxu0 0.0
        %2569 = vmatpush1.msra.mxu0 0.0
        %2570 = vmatprep.subr.mxu0 0.0
        %2571 = vmatpush1.msra.mxu0 0.0
        %2572 = vmatprep.subr.mxu0 0.0
        %2573 = vmatpush1.msra.mxu0 0.0
        %2574 = vmatprep.mubr.f32.mxu0 0.0
        %2575 = vmatmul.mubr.f32.gmra.mrb[0].mxu0 %v2505
        %v2576 = vpop.f32.mrb[0].mxu0
        %v2577 = vadd.f32 0.0, %v2576
        %v2578 = vpop.f32.mrb[0].mxu0
        %2579 = vmatprep.mubr.f32.mxu0 0.0
        %2580 = vmatmul.mubr.f32.gmra.mrb[0].mxu0 %v2508
        %v2581 = vpop.f32.mrb[0].mxu0
        %v2582 = vadd.f32 0.0, %v2581
        %v2583 = vpop.f32.mrb[0].mxu0
        %2584 = vdwg.mxu0
        %2585 = vrot.lane.b32.xlu0 %v1300, 64
        %v2586 = vpop.permute.xlu0 %2585
        %2587 = vrot.lane.b32.xlu0 %v1302, 64
        %v2588 = vpop.permute.xlu0 %2587
        %v2592 = vsel %vm2044, %v2229, 0
        %v2595 = vsel %vm2044, %v2230, 0
        %2597 = vmatprep.subr.mxu0 0.0
        %2598 = vmatpush1.msra.mxu0 %v2586
        %2599 = vmatprep.subr.mxu0 0.0
        %2600 = vmatpush1.msra.mxu0 %v2588
        %2601 = vmatprep.subr.mxu0 0.0
        %2602 = vmatpush1.msra.mxu0 0.0
        %2603 = vmatprep.subr.mxu0 0.0
        %2604 = vmatpush1.msra.mxu0 0.0
        %2605 = vmatprep.subr.mxu0 0.0
        %2606 = vmatpush1.msra.mxu0 0.0
        %2607 = vmatprep.subr.mxu0 0.0
        %2608 = vmatpush1.msra.mxu0 0.0
        %2609 = vmatprep.subr.mxu0 0.0
        %2610 = vmatpush1.msra.mxu0 0.0
        %2611 = vmatprep.subr.mxu0 0.0
        %2612 = vmatpush1.msra.mxu0 0.0
        %2613 = vmatprep.subr.mxu0 0.0
        %2614 = vmatpush1.msra.mxu0 0.0
        %2615 = vmatprep.subr.mxu0 0.0
        %2616 = vmatpush1.msra.mxu0 0.0
        %2617 = vmatprep.subr.mxu0 0.0
        %2618 = vmatpush1.msra.mxu0 0.0
        %2619 = vmatprep.subr.mxu0 0.0
        %2620 = vmatpush1.msra.mxu0 0.0
        %2621 = vmatprep.subr.mxu0 0.0
        %2622 = vmatpush1.msra.mxu0 0.0
        %2623 = vmatprep.subr.mxu0 0.0
        %2624 = vmatpush1.msra.mxu0 0.0
        %2625 = vmatprep.subr.mxu0 0.0
        %2626 = vmatpush1.msra.mxu0 0.0
        %2627 = vmatprep.subr.mxu0 0.0
        %2628 = vmatpush1.msra.mxu0 0.0
        %2629 = vmatprep.subr.mxu0 0.0
        %2630 = vmatpush1.msra.mxu0 0.0
        %2631 = vmatprep.subr.mxu0 0.0
        %2632 = vmatpush1.msra.mxu0 0.0
        %2633 = vmatprep.subr.mxu0 0.0
        %2634 = vmatpush1.msra.mxu0 0.0
        %2635 = vmatprep.subr.mxu0 0.0
        %2636 = vmatpush1.msra.mxu0 0.0
        %2637 = vmatprep.subr.mxu0 0.0
        %2638 = vmatpush1.msra.mxu0 0.0
        %2639 = vmatprep.subr.mxu0 0.0
        %2640 = vmatpush1.msra.mxu0 0.0
        %2641 = vmatprep.subr.mxu0 0.0
        %2642 = vmatpush1.msra.mxu0 0.0
        %2643 = vmatprep.subr.mxu0 0.0
        %2644 = vmatpush1.msra.mxu0 0.0
        %2645 = vmatprep.subr.mxu0 0.0
        %2646 = vmatpush1.msra.mxu0 0.0
        %2647 = vmatprep.subr.mxu0 0.0
        %2648 = vmatpush1.msra.mxu0 0.0
        %2649 = vmatprep.subr.mxu0 0.0
        %2650 = vmatpush1.msra.mxu0 0.0
        %2651 = vmatprep.subr.mxu0 0.0
        %2652 = vmatpush1.msra.mxu0 0.0
        %2653 = vmatprep.subr.mxu0 0.0
        %2654 = vmatpush1.msra.mxu0 0.0
        %2655 = vmatprep.subr.mxu0 0.0
        %2656 = vmatpush1.msra.mxu0 0.0
        %2657 = vmatprep.subr.mxu0 0.0
        %2658 = vmatpush1.msra.mxu0 0.0
        %2659 = vmatprep.subr.mxu0 0.0
        %2660 = vmatpush1.msra.mxu0 0.0
        %2661 = vmatprep.mubr.f32.mxu0 0.0
        %2662 = vmatmul.mubr.f32.gmra.mrb[0].mxu0 %v2592
        %v2663 = vpop.f32.mrb[0].mxu0
        %v2664 = vadd.f32 0.0, %v2663
        %v2665 = vpop.f32.mrb[0].mxu0
        %2666 = vmatprep.mubr.f32.mxu0 0.0
        %2667 = vmatmul.mubr.f32.gmra.mrb[0].mxu0 %v2595
        %v2668 = vpop.f32.mrb[0].mxu0
        %v2669 = vadd.f32 0.0, %v2668
        %v2670 = vpop.f32.mrb[0].mxu0
        %2671 = vdwg.mxu0
        %2672 = vrot.lane.b32.xlu0 %v1304, 64
        %v2673 = vpop.permute.xlu0 %2672
        %2674 = vrot.lane.b32.xlu0 %v1306, 64
        %v2675 = vpop.permute.xlu0 %2674
        %v2679 = vsel %vm2044, %v2231, 0
        %v2682 = vsel %vm2044, %v2232, 0
        %2684 = vmatprep.subr.mxu0 0.0
        %2685 = vmatpush1.msra.mxu0 %v2673
        %2686 = vmatprep.subr.mxu0 0.0
        %2687 = vmatpush1.msra.mxu0 %v2675
        %2688 = vmatprep.subr.mxu0 0.0
        %2689 = vmatpush1.msra.mxu0 0.0
        %2690 = vmatprep.subr.mxu0 0.0
        %2691 = vmatpush1.msra.mxu0 0.0
        %2692 = vmatprep.subr.mxu0 0.0
        %2693 = vmatpush1.msra.mxu0 0.0
        %2694 = vmatprep.subr.mxu0 0.0
        %2695 = vmatpush1.msra.mxu0 0.0
        %2696 = vmatprep.subr.mxu0 0.0
        %2697 = vmatpush1.msra.mxu0 0.0
        %2698 = vmatprep.subr.mxu0 0.0
        %2699 = vmatpush1.msra.mxu0 0.0
        %2700 = vmatprep.subr.mxu0 0.0
        %2701 = vmatpush1.msra.mxu0 0.0
        %2702 = vmatprep.subr.mxu0 0.0
        %2703 = vmatpush1.msra.mxu0 0.0
        %2704 = vmatprep.subr.mxu0 0.0
        %2705 = vmatpush1.msra.mxu0 0.0
        %2706 = vmatprep.subr.mxu0 0.0
        %2707 = vmatpush1.msra.mxu0 0.0
        %2708 = vmatprep.subr.mxu0 0.0
        %2709 = vmatpush1.msra.mxu0 0.0
        %2710 = vmatprep.subr.mxu0 0.0
        %2711 = vmatpush1.msra.mxu0 0.0
        %2712 = vmatprep.subr.mxu0 0.0
        %2713 = vmatpush1.msra.mxu0 0.0
        %2714 = vmatprep.subr.mxu0 0.0
        %2715 = vmatpush1.msra.mxu0 0.0
        %2716 = vmatprep.subr.mxu0 0.0
        %2717 = vmatpush1.msra.mxu0 0.0
        %2718 = vmatprep.subr.mxu0 0.0
        %2719 = vmatpush1.msra.mxu0 0.0
        %2720 = vmatprep.subr.mxu0 0.0
        %2721 = vmatpush1.msra.mxu0 0.0
        %2722 = vmatprep.subr.mxu0 0.0
        %2723 = vmatpush1.msra.mxu0 0.0
        %2724 = vmatprep.subr.mxu0 0.0
        %2725 = vmatpush1.msra.mxu0 0.0
        %2726 = vmatprep.subr.mxu0 0.0
        %2727 = vmatpush1.msra.mxu0 0.0
        %2728 = vmatprep.subr.mxu0 0.0
        %2729 = vmatpush1.msra.mxu0 0.0
        %2730 = vmatprep.subr.mxu0 0.0
        %2731 = vmatpush1.msra.mxu0 0.0
        %2732 = vmatprep.subr.mxu0 0.0
        %2733 = vmatpush1.msra.mxu0 0.0
        %2734 = vmatprep.subr.mxu0 0.0
        %2735 = vmatpush1.msra.mxu0 0.0
        %2736 = vmatprep.subr.mxu0 0.0
        %2737 = vmatpush1.msra.mxu0 0.0
        %2738 = vmatprep.subr.mxu0 0.0
        %2739 = vmatpush1.msra.mxu0 0.0
        %2740 = vmatprep.subr.mxu0 0.0
        %2741 = vmatpush1.msra.mxu0 0.0
        %2742 = vmatprep.subr.mxu0 0.0
        %2743 = vmatpush1.msra.mxu0 0.0
        %2744 = vmatprep.subr.mxu0 0.0
        %2745 = vmatpush1.msra.mxu0 0.0
        %2746 = vmatprep.subr.mxu0 0.0
        %2747 = vmatpush1.msra.mxu0 0.0
        %2748 = vmatprep.mubr.f32.mxu0 0.0
        %2749 = vmatmul.mubr.f32.gmra.mrb[0].mxu0 %v2679
        %v2750 = vpop.f32.mrb[0].mxu0
        %v2751 = vadd.f32 0.0, %v2750
        %v2752 = vpop.f32.mrb[0].mxu0
        %2753 = vmatprep.mubr.f32.mxu0 0.0
        %2754 = vmatmul.mubr.f32.gmra.mrb[0].mxu0 %v2682
        %v2755 = vpop.f32.mrb[0].mxu0
        %v2756 = vadd.f32 0.0, %v2755
        %v2757 = vpop.f32.mrb[0].mxu0
        %2758 = vdwg.mxu0
        %2759 = vrot.lane.b32.xlu0 %v1308, 64
        %v2760 = vpop.permute.xlu0 %2759
        %2761 = vrot.lane.b32.xlu0 %v1310, 64
        %v2762 = vpop.permute.xlu0 %2761
        %v2766 = vsel %vm2044, %v2233, 0
        %v2769 = vsel %vm2044, %v2234, 0
        %2771 = vmatprep.subr.mxu0 0.0
        %2772 = vmatpush1.msra.mxu0 %v2760
        %2773 = vmatprep.subr.mxu0 0.0
        %2774 = vmatpush1.msra.mxu0 %v2762
        %2775 = vmatprep.subr.mxu0 0.0
        %2776 = vmatpush1.msra.mxu0 0.0
        %2777 = vmatprep.subr.mxu0 0.0
        %2778 = vmatpush1.msra.mxu0 0.0
        %2779 = vmatprep.subr.mxu0 0.0
        %2780 = vmatpush1.msra.mxu0 0.0
        %2781 = vmatprep.subr.mxu0 0.0
        %2782 = vmatpush1.msra.mxu0 0.0
        %2783 = vmatprep.subr.mxu0 0.0
        %2784 = vmatpush1.msra.mxu0 0.0
        %2785 = vmatprep.subr.mxu0 0.0
        %2786 = vmatpush1.msra.mxu0 0.0
        %2787 = vmatprep.subr.mxu0 0.0
        %2788 = vmatpush1.msra.mxu0 0.0
        %2789 = vmatprep.subr.mxu0 0.0
        %2790 = vmatpush1.msra.mxu0 0.0
        %2791 = vmatprep.subr.mxu0 0.0
        %2792 = vmatpush1.msra.mxu0 0.0
        %2793 = vmatprep.subr.mxu0 0.0
        %2794 = vmatpush1.msra.mxu0 0.0
        %2795 = vmatprep.subr.mxu0 0.0
        %2796 = vmatpush1.msra.mxu0 0.0
        %2797 = vmatprep.subr.mxu0 0.0
        %2798 = vmatpush1.msra.mxu0 0.0
        %2799 = vmatprep.subr.mxu0 0.0
        %2800 = vmatpush1.msra.mxu0 0.0
        %2801 = vmatprep.subr.mxu0 0.0
        %2802 = vmatpush1.msra.mxu0 0.0
        %2803 = vmatprep.subr.mxu0 0.0
        %2804 = vmatpush1.msra.mxu0 0.0
        %2805 = vmatprep.subr.mxu0 0.0
        %2806 = vmatpush1.msra.mxu0 0.0
        %2807 = vmatprep.subr.mxu0 0.0
        %2808 = vmatpush1.msra.mxu0 0.0
        %2809 = vmatprep.subr.mxu0 0.0
        %2810 = vmatpush1.msra.mxu0 0.0
        %2811 = vmatprep.subr.mxu0 0.0
        %2812 = vmatpush1.msra.mxu0 0.0
        %2813 = vmatprep.subr.mxu0 0.0
        %2814 = vmatpush1.msra.mxu0 0.0
        %2815 = vmatprep.subr.mxu0 0.0
        %2816 = vmatpush1.msra.mxu0 0.0
        %2817 = vmatprep.subr.mxu0 0.0
        %2818 = vmatpush1.msra.mxu0 0.0
        %2819 = vmatprep.subr.mxu0 0.0
        %2820 = vmatpush1.msra.mxu0 0.0
        %2821 = vmatprep.subr.mxu0 0.0
        %2822 = vmatpush1.msra.mxu0 0.0
        %2823 = vmatprep.subr.mxu0 0.0
        %2824 = vmatpush1.msra.mxu0 0.0
        %2825 = vmatprep.subr.mxu0 0.0
        %2826 = vmatpush1.msra.mxu0 0.0
        %2827 = vmatprep.subr.mxu0 0.0
        %2828 = vmatpush1.msra.mxu0 0.0
        %2829 = vmatprep.subr.mxu0 0.0
        %2830 = vmatpush1.msra.mxu0 0.0
        %2831 = vmatprep.subr.mxu0 0.0
        %2832 = vmatpush1.msra.mxu0 0.0
        %2833 = vmatprep.subr.mxu0 0.0
        %2834 = vmatpush1.msra.mxu0 0.0
        %2835 = vmatprep.mubr.f32.mxu0 0.0
        %2836 = vmatmul.mubr.f32.gmra.mrb[0].mxu0 %v2766
        %v2837 = vpop.f32.mrb[0].mxu0
        %v2838 = vadd.f32 0.0, %v2837
        %v2839 = vpop.f32.mrb[0].mxu0
        %2840 = vmatprep.mubr.f32.mxu0 0.0
        %2841 = vmatmul.mubr.f32.gmra.mrb[0].mxu0 %v2769
        %v2842 = vpop.f32.mrb[0].mxu0
        %v2843 = vadd.f32 0.0, %v2842
        %v2844 = vpop.f32.mrb[0].mxu0
        %2845 = vdwg.mxu0
        %2846 = vrot.lane.b32.xlu0 %v1312, 64
        %v2847 = vpop.permute.xlu0 %2846
        %2848 = vrot.lane.b32.xlu0 %v1314, 64
        %v2849 = vpop.permute.xlu0 %2848
        %v2853 = vsel %vm2044, %v2235, 0
        %v2856 = vsel %vm2044, %v2236, 0
        %2858 = vmatprep.subr.mxu0 0.0
        %2859 = vmatpush1.msra.mxu0 %v2847
        %2860 = vmatprep.subr.mxu0 0.0
        %2861 = vmatpush1.msra.mxu0 %v2849
        %2862 = vmatprep.subr.mxu0 0.0
        %2863 = vmatpush1.msra.mxu0 0.0
        %2864 = vmatprep.subr.mxu0 0.0
        %2865 = vmatpush1.msra.mxu0 0.0
        %2866 = vmatprep.subr.mxu0 0.0
        %2867 = vmatpush1.msra.mxu0 0.0
        %2868 = vmatprep.subr.mxu0 0.0
        %2869 = vmatpush1.msra.mxu0 0.0
        %2870 = vmatprep.subr.mxu0 0.0
        %2871 = vmatpush1.msra.mxu0 0.0
        %2872 = vmatprep.subr.mxu0 0.0
        %2873 = vmatpush1.msra.mxu0 0.0
        %2874 = vmatprep.subr.mxu0 0.0
        %2875 = vmatpush1.msra.mxu0 0.0
        %2876 = vmatprep.subr.mxu0 0.0
        %2877 = vmatpush1.msra.mxu0 0.0
        %2878 = vmatprep.subr.mxu0 0.0
        %2879 = vmatpush1.msra.mxu0 0.0
        %2880 = vmatprep.subr.mxu0 0.0
        %2881 = vmatpush1.msra.mxu0 0.0
        %2882 = vmatprep.subr.mxu0 0.0
        %2883 = vmatpush1.msra.mxu0 0.0
        %2884 = vmatprep.subr.mxu0 0.0
        %2885 = vmatpush1.msra.mxu0 0.0
        %2886 = vmatprep.subr.mxu0 0.0
        %2887 = vmatpush1.msra.mxu0 0.0
        %2888 = vmatprep.subr.mxu0 0.0
        %2889 = vmatpush1.msra.mxu0 0.0
        %2890 = vmatprep.subr.mxu0 0.0
        %2891 = vmatpush1.msra.mxu0 0.0
        %2892 = vmatprep.subr.mxu0 0.0
        %2893 = vmatpush1.msra.mxu0 0.0
        %2894 = vmatprep.subr.mxu0 0.0
        %2895 = vmatpush1.msra.mxu0 0.0
        %2896 = vmatprep.subr.mxu0 0.0
        %2897 = vmatpush1.msra.mxu0 0.0
        %2898 = vmatprep.subr.mxu0 0.0
        %2899 = vmatpush1.msra.mxu0 0.0
        %2900 = vmatprep.subr.mxu0 0.0
        %2901 = vmatpush1.msra.mxu0 0.0
        %2902 = vmatprep.subr.mxu0 0.0
        %2903 = vmatpush1.msra.mxu0 0.0
        %2904 = vmatprep.subr.mxu0 0.0
        %2905 = vmatpush1.msra.mxu0 0.0
        %2906 = vmatprep.subr.mxu0 0.0
        %2907 = vmatpush1.msra.mxu0 0.0
        %2908 = vmatprep.subr.mxu0 0.0
        %2909 = vmatpush1.msra.mxu0 0.0
        %2910 = vmatprep.subr.mxu0 0.0
        %2911 = vmatpush1.msra.mxu0 0.0
        %2912 = vmatprep.subr.mxu0 0.0
        %2913 = vmatpush1.msra.mxu0 0.0
        %2914 = vmatprep.subr.mxu0 0.0
        %2915 = vmatpush1.msra.mxu0 0.0
        %2916 = vmatprep.subr.mxu0 0.0
        %2917 = vmatpush1.msra.mxu0 0.0
        %2918 = vmatprep.subr.mxu0 0.0
        %2919 = vmatpush1.msra.mxu0 0.0
        %2920 = vmatprep.subr.mxu0 0.0
        %2921 = vmatpush1.msra.mxu0 0.0
        %2922 = vmatprep.mubr.f32.mxu0 0.0
        %2923 = vmatmul.mubr.f32.gmra.mrb[0].mxu0 %v2853
        %v2924 = vpop.f32.mrb[0].mxu0
        %v2925 = vadd.f32 0.0, %v2924
        %v2926 = vpop.f32.mrb[0].mxu0
        %2927 = vmatprep.mubr.f32.mxu0 0.0
        %2928 = vmatmul.mubr.f32.gmra.mrb[0].mxu0 %v2856
        %v2929 = vpop.f32.mrb[0].mxu0
        %v2930 = vadd.f32 0.0, %v2929
        %v2931 = vpop.f32.mrb[0].mxu0
        %2932 = vdwg.mxu0
        %2937 = vrot.lane.b32.xlu0 %v2490, 8
        %v2938 = vpop.permute.xlu0 %2937
        %2939 = vrot.lane.b32.xlu0 %v2495, 8
        %v2940 = vpop.permute.xlu0 %2939
        %2941 = vrot.lane.b32.xlu0 %v2577, 8
        %v2942 = vpop.permute.xlu0 %2941
        %2943 = vrot.lane.b32.xlu0 %v2582, 8
        %v2944 = vpop.permute.xlu0 %2943
        %2953 = vrot.lane.b32.xlu0 %v2664, 16
        %v2954 = vpop.permute.xlu0 %2953
        %2955 = vrot.lane.b32.xlu0 %v2669, 16
        %v2956 = vpop.permute.xlu0 %2955
        %2957 = vrot.lane.b32.xlu0 %v2751, 16
        %v2958 = vpop.permute.xlu0 %2957
        %2959 = vrot.lane.b32.xlu0 %v2756, 16
        %v2960 = vpop.permute.xlu0 %2959
        %2969 = vrot.lane.b32.xlu0 %v2838, 24
        %v2970 = vpop.permute.xlu0 %2969
        %2971 = vrot.lane.b32.xlu0 %v2843, 24
        %v2972 = vpop.permute.xlu0 %2971
        %2973 = vrot.lane.b32.xlu0 %v2925, 24
        %v2974 = vpop.permute.xlu0 %2973
        %2975 = vrot.lane.b32.xlu0 %v2930, 24
        %v2976 = vpop.permute.xlu0 %2975
        %v2981 = vsel %vm1323, %v2316, %v2938
        %v2982 = vsel %vm1323, %v2321, %v2940
        %v2983 = vsel %vm1323, %v2403, %v2942
        %v2984 = vsel %vm1323, %v2408, %v2944
        %v2985 = vsel %vm2044, %v2981, %v2954
        %v2986 = vsel %vm2044, %v2982, %v2956
        %v2987 = vsel %vm2044, %v2983, %v2958
        %v2988 = vsel %vm2044, %v2984, %v2960
        %vm2989 = vcmask 195584
        %v2990 = vsel %vm2989, %v2985, %v2970
        %v2991 = vsel %vm2989, %v2986, %v2972
        %v2992 = vsel %vm2989, %v2987, %v2974
        %v2993 = vsel %vm2989, %v2988, %v2976
        %v2994 = vpack.c.bf16 %v2991, %v2990
        %v2995 = vpack.c.bf16 %v2993, %v2992
        %v2996 = vld [vmem:[%s13] sm:$0xf]
        %v2997 = vld [vmem:[%s13 + $0x4] sm:$0xf]
        %v2998 = vld [vmem:[%s13 + $0x8] sm:$0xf]
        %v2999 = vld [vmem:[%s13 + $0xc] sm:$0xf]
        %v3000 = vld [vmem:[#allocation16] sm:$0x1]
        %v3002 = vlaneseq
        %v3003 = vshrl.u32 %v3002, 7
        %v3004 = vsub.s32 0, %v3003
        %v3005 = vrot.slane %v3000, %v3004
        %v3011 = vunpack.c.l.b16 %v2996
        %v3012 = vunpack.c.l.b16 %v2997
        %v3013 = vunpack.c.l.b16 %v2998
        %v3014 = vunpack.c.l.b16 %v2999
        %v3015 = vpack.c.b16 %v3012, %v3011
        %v3016 = vpack.c.b16 %v3014, %v3013
        %v3020 = vsel %vm856, %v2994, 0
        %v3023 = vsel %vm856, %v2995, 0
        %3025 = vmatprep.subr.bf16.mxu0 0
        %3026 = vmatpush1.bf16.msra.mxu0 %v3015
        %3027 = vmatprep.subr.bf16.mxu0 0
        %3028 = vmatpush1.bf16.msra.mxu0 %v3016
        %3029 = vmatprep.subr.bf16.mxu0 0
        %3030 = vmatpush1.bf16.msra.mxu0 0
        %3031 = vmatprep.subr.bf16.mxu0 0
        %3032 = vmatpush1.bf16.msra.mxu0 0
        %3033 = vmatprep.subr.bf16.mxu0 0
        %3034 = vmatpush1.bf16.msra.mxu0 0
        %3035 = vmatprep.subr.bf16.mxu0 0
        %3036 = vmatpush1.bf16.msra.mxu0 0
        %3037 = vmatprep.subr.bf16.mxu0 0
        %3038 = vmatpush1.bf16.msra.mxu0 0
        %3039 = vmatprep.subr.bf16.mxu0 0
        %3040 = vmatpush1.bf16.msra.mxu0 0
        %3041 = vmatprep.subr.bf16.mxu0 0
        %3042 = vmatpush1.bf16.msra.mxu0 0
        %3043 = vmatprep.subr.bf16.mxu0 0
        %3044 = vmatpush1.bf16.msra.mxu0 0
        %3045 = vmatprep.subr.bf16.mxu0 0
        %3046 = vmatpush1.bf16.msra.mxu0 0
        %3047 = vmatprep.subr.bf16.mxu0 0
        %3048 = vmatpush1.bf16.msra.mxu0 0
        %3049 = vmatprep.subr.bf16.mxu0 0
        %3050 = vmatpush1.bf16.msra.mxu0 0
        %3051 = vmatprep.subr.bf16.mxu0 0
        %3052 = vmatpush1.bf16.msra.mxu0 0
        %3053 = vmatprep.subr.bf16.mxu0 0
        %3054 = vmatpush1.bf16.msra.mxu0 0
        %3055 = vmatprep.subr.bf16.mxu0 0
        %3056 = vmatpush1.bf16.msra.mxu0 0
        %3057 = vmatprep.mubr.bf16.mxu0 0
        %3058 = vmatmul.mubr.bf16.gmra.mrb[0].mxu0 %v3020
        %v3059 = vpop.f32.mrb[0].mxu0
        %v3060 = vadd.f32 %v3005, %v3059
        %v3061 = vpop.f32.mrb[0].mxu0
        %v3062 = vpop.f32.mrb[0].mxu0
        %v3063 = vadd.f32 %v3005, %v3062
        %v3064 = vpop.f32.mrb[0].mxu0
        %3065 = vmatprep.mubr.bf16.mxu0 0
        %3066 = vmatmul.mubr.bf16.gmra.mrb[0].mxu0 %v3023
        %v3067 = vpop.f32.mrb[0].mxu0
        %v3068 = vadd.f32 %v3005, %v3067
        %v3069 = vpop.f32.mrb[0].mxu0
        %v3070 = vpop.f32.mrb[0].mxu0
        %v3071 = vadd.f32 %v3005, %v3070
        %v3072 = vpop.f32.mrb[0].mxu0
        %3073 = vdwg.mxu0
        %v3074 = vadd.f32 %v1135, %v3060
        %v3075 = vadd.f32 %v1136, %v3063
        %v3076 = vadd.f32 %v1137, %v3068
        %v3077 = vadd.f32 %v1138, %v3071
        %v3078 = vsel %vm856, %v3074, 0.0
        %3079 = vadd.xlane.f32.xlu0 %v3078
        %v3080 = vpop.xlane.xlu0 %3079
        %v3081 = vsel %vm856, %v3075, 0.0
        %3082 = vadd.xlane.f32.xlu0 %v3081
        %v3083 = vpop.xlane.xlu0 %3082
        %v3084 = vsel %vm856, %v3076, 0.0
        %3085 = vadd.xlane.f32.xlu0 %v3084
        %v3086 = vpop.xlane.xlu0 %3085
        %v3087 = vsel %vm856, %v3077, 0.0
        %3088 = vadd.xlane.f32.xlu0 %v3087
        %v3089 = vpop.xlane.xlu0 %3088
        %v3090 = vmul.f32 %v3080, %v869
        %v3091 = vmul.f32 %v3083, %v869
        %v3092 = vmul.f32 %v3086, %v869
        %v3093 = vmul.f32 %v3089, %v869
        %v3094 = vsub.f32 %v3074, %v3090
        %v3095 = vsub.f32 %v3075, %v3091
        %v3096 = vsub.f32 %v3076, %v3092
        %v3097 = vsub.f32 %v3077, %v3093
        %v3098 = vmul.f32 %v3094, %v3094
        %v3099 = vmul.f32 %v3095, %v3095
        %v3100 = vmul.f32 %v3096, %v3096
        %v3101 = vmul.f32 %v3097, %v3097
        %v3102 = vsel %vm856, %v3098, 0.0
        %3103 = vadd.xlane.f32.xlu0 %v3102
        %v3104 = vpop.xlane.xlu0 %3103
        %v3105 = vsel %vm856, %v3099, 0.0
        %3106 = vadd.xlane.f32.xlu0 %v3105
        %v3107 = vpop.xlane.xlu0 %3106
        %v3108 = vsel %vm856, %v3100, 0.0
        %3109 = vadd.xlane.f32.xlu0 %v3108
        %v3110 = vpop.xlane.xlu0 %3109
        %v3111 = vsel %vm856, %v3101, 0.0
        %3112 = vadd.xlane.f32.xlu0 %v3111
        %v3113 = vpop.xlane.xlu0 %3112
        %v3114 = vmul.f32 %v3104, %v869
        %v3115 = vmul.f32 %v3107, %v869
        %v3116 = vmul.f32 %v3110, %v869
        %v3117 = vmul.f32 %v3113, %v869
        %v3118 = vadd.f32 %v3114, 1e-12
        %v3119 = vadd.f32 %v3115, 1e-12
        %v3120 = vadd.f32 %v3116, 1e-12
        %v3121 = vadd.f32 %v3117, 1e-12
        %v3122 = vrsqrt.pop %v3118
        %v3123 = vrsqrt.pop %v3119
        %v3124 = vrsqrt.pop %v3120
        %v3125 = vrsqrt.pop %v3121
        %v3126 = vmul.f32 %v3094, %v3122
        %v3127 = vmul.f32 %v3095, %v3123
        %v3128 = vmul.f32 %v3096, %v3124
        %v3129 = vmul.f32 %v3097, %v3125
        %v3130 = vlaneseq
        %v3131 = vshrl.u32 %v3130, 7
        %v3132 = vsub.s32 0, %v3131
        %v3133 = vrot.slane %v853, %v3132
        %v3134 = vmul.f32 %v3126, %v3133
        %v3135 = vmul.f32 %v3127, %v3133
        %v3136 = vmul.f32 %v3128, %v3133
        %v3137 = vmul.f32 %v3129, %v3133
        %v3138 = vlaneseq
        %v3139 = vshrl.u32 %v3138, 7
        %v3140 = vsub.s32 1, %v3139
        %v3141 = vrot.slane %v853, %v3140
        %v3142 = vadd.f32 %v3134, %v3141
        %v3143 = vadd.f32 %v3135, %v3141
        %v3144 = vadd.f32 %v3136, %v3141
        %v3145 = vadd.f32 %v3137, %v3141
        %v3146 = vpack.c.bf16 %v3143, %v3142
        %v3147 = vpack.c.bf16 %v3145, %v3144
        %v3148 = vld [vmem:[#allocation17] sm:$0xf]
        %v3149 = vld [vmem:[#allocation17 + $0x4] sm:$0xf]
        %v3150 = vld [vmem:[#allocation17 + $0x8] sm:$0xf]
        %v3151 = vld [vmem:[#allocation17 + $0xc] sm:$0xf]
        %v3152 = vld [vmem:[#allocation19] sm:$0x1]
        %v3154 = vlaneseq
        %v3155 = vshrl.u32 %v3154, 7
        %v3156 = vsub.s32 0, %v3155
        %v3157 = vrot.slane %v3152, %v3156
        %v3163 = vunpack.c.l.b16 %v3148
        %v3164 = vunpack.c.l.b16 %v3149
        %v3165 = vunpack.c.l.b16 %v3150
        %v3166 = vunpack.c.l.b16 %v3151
        %v3167 = vpack.c.b16 %v3164, %v3163
        %v3168 = vpack.c.b16 %v3166, %v3165
        %v3172 = vsel %vm856, %v3146, 0
        %v3175 = vsel %vm856, %v3147, 0
        %3177 = vmatprep.subr.bf16.mxu0 0
        %3178 = vmatpush1.bf16.msra.mxu0 %v3167
        %3179 = vmatprep.subr.bf16.mxu0 0
        %3180 = vmatpush1.bf16.msra.mxu0 %v3168
        %3181 = vmatprep.subr.bf16.mxu0 0
        %3182 = vmatpush1.bf16.msra.mxu0 0
        %3183 = vmatprep.subr.bf16.mxu0 0
        %3184 = vmatpush1.bf16.msra.mxu0 0
        %3185 = vmatprep.subr.bf16.mxu0 0
        %3186 = vmatpush1.bf16.msra.mxu0 0
        %3187 = vmatprep.subr.bf16.mxu0 0
        %3188 = vmatpush1.bf16.msra.mxu0 0
        %3189 = vmatprep.subr.bf16.mxu0 0
        %3190 = vmatpush1.bf16.msra.mxu0 0
        %3191 = vmatprep.subr.bf16.mxu0 0
        %3192 = vmatpush1.bf16.msra.mxu0 0
        %3193 = vmatprep.subr.bf16.mxu0 0
        %3194 = vmatpush1.bf16.msra.mxu0 0
        %3195 = vmatprep.subr.bf16.mxu0 0
        %3196 = vmatpush1.bf16.msra.mxu0 0
        %3197 = vmatprep.subr.bf16.mxu0 0
        %3198 = vmatpush1.bf16.msra.mxu0 0
        %3199 = vmatprep.subr.bf16.mxu0 0
        %3200 = vmatpush1.bf16.msra.mxu0 0
        %3201 = vmatprep.subr.bf16.mxu0 0
        %3202 = vmatpush1.bf16.msra.mxu0 0
        %3203 = vmatprep.subr.bf16.mxu0 0
        %3204 = vmatpush1.bf16.msra.mxu0 0
        %3205 = vmatprep.subr.bf16.mxu0 0
        %3206 = vmatpush1.bf16.msra.mxu0 0
        %3207 = vmatprep.subr.bf16.mxu0 0
        %3208 = vmatpush1.bf16.msra.mxu0 0
        %3209 = vmatprep.mubr.bf16.mxu0 0
        %3210 = vmatmul.mubr.bf16.gmra.mrb[0].mxu0 %v3172
        %v3211 = vpop.f32.mrb[0].mxu0
        %v3212 = vadd.f32 %v3157, %v3211
        %v3213 = vpop.f32.mrb[0].mxu0
        %v3214 = vpop.f32.mrb[0].mxu0
        %v3215 = vadd.f32 %v3157, %v3214
        %v3216 = vpop.f32.mrb[0].mxu0
        %3217 = vmatprep.mubr.bf16.mxu0 0
        %3218 = vmatmul.mubr.bf16.gmra.mrb[0].mxu0 %v3175
        %v3219 = vpop.f32.mrb[0].mxu0
        %v3220 = vadd.f32 %v3157, %v3219
        %v3221 = vpop.f32.mrb[0].mxu0
        %v3222 = vpop.f32.mrb[0].mxu0
        %v3223 = vadd.f32 %v3157, %v3222
        %v3224 = vpop.f32.mrb[0].mxu0
        %3225 = vdwg.mxu0
        %v3226 = vxor.u32 %v3212, 2147483648
        %v3227 = vxor.u32 %v3215, 2147483648
        %v3228 = vxor.u32 %v3220, 2147483648
        %v3229 = vxor.u32 %v3223, 2147483648
        %v3230 = vmul.f32 %v3226, 1.442695
        %v3231 = vpow.pop %v3230
        %v3232 = vmul.f32 %v3227, 1.442695
        %v3233 = vpow.pop %v3232
        %v3234 = vmul.f32 %v3228, 1.442695
        %v3235 = vpow.pop %v3234
        %v3236 = vmul.f32 %v3229, 1.442695
        %v3237 = vpow.pop %v3236
        %v3238 = vadd.f32 %v3231, 1.0
        %v3239 = vadd.f32 %v3233, 1.0
        %v3240 = vadd.f32 %v3235, 1.0
        %v3241 = vadd.f32 %v3237, 1.0
        %v3242 = vrcp.pop %v3238
        %v3243 = vmul.f32 1.0, %v3242
        %v3244 = vrcp.pop %v3239
        %v3245 = vmul.f32 1.0, %v3244
        %v3246 = vrcp.pop %v3240
        %v3247 = vmul.f32 1.0, %v3246
        %v3248 = vrcp.pop %v3241
        %v3249 = vmul.f32 1.0, %v3248
        %3254 = vrot.lane.b32.xlu0 %v3243, 96
        %v3255 = vpop.permute.xlu0 %3254
        %3256 = vrot.lane.b32.xlu0 %v3245, 96
        %v3257 = vpop.permute.xlu0 %3256
        %3258 = vrot.lane.b32.xlu0 %v3247, 96
        %v3259 = vpop.permute.xlu0 %3258
        %3260 = vrot.lane.b32.xlu0 %v3249, 96
        %v3261 = vpop.permute.xlu0 %3260
        %v3266 = vmul.f32 %v3212, %v3255
        %v3267 = vmul.f32 %v3215, %v3257
        %v3268 = vmul.f32 %v3220, %v3259
        %v3269 = vmul.f32 %v3223, %v3261
        %v3270 = vld [vmem:[#allocation20] sm:$0xff]
        %v3271 = vlaneseq
        %v3272 = vshrl.u32 %v3271, 7
        %v3273 = vadd.s32 %v3272, 8
        %v3274 = vlaneseq
        %v3275 = vshrl.u32 %v3274, 7
        %v3276 = vsub.s32 3, %v3275
        %v3277 = vrot.slane %v3270, %v3276
        %v3278 = vmul.f32 %v3266, %v3277
        %v3279 = vmul.f32 %v3267, %v3277
        %v3280 = vmul.f32 %v3268, %v3277
        %v3281 = vmul.f32 %v3269, %v3277
        %v3282 = vrot.slane %v3266, 5
        %v3283 = vrot.slane %v3267, 5
        %v3284 = vrot.slane %v3268, 5
        %v3285 = vrot.slane %v3269, 5
        %vm3286 = vcmp.lt.s32.totalorder %v3272, 3
        %v3287 = vsel %vm3286, %v3284, %v3285
        %v3288 = vsel %vm3286, %v3283, %v3284
        %v3289 = vsel %vm3286, %v3282, %v3283
        %v3290 = vsel %vm3286, %v3285, %v3282
        %v3291 = vadd.s32 %v3272, 4294967293
        %v3292 = vadd.s32 %v3273, 4294967293
        %vm3293 = vcmp.ge.s32.totalorder %v3291, 0
        %vm3294 = vcmp.ge.s32.totalorder %v3292, 0
        %vm3295 = vcmp.lt.s32.totalorder %v3291, 16
        %vm3296 = vcmp.lt.s32.totalorder %v3292, 16
        %vm3297 = vmand %vm3293, %vm3295
        %vm3298 = vmand %vm3294, %vm3296
        %v3299 = vsel %vm3297, 1, 0
        %v3300 = vsel %vm3298, 1, 0
        %vm3301 = vcmp.eq.s32.totalorder %v3299, 1
        %vm3302 = vcmp.eq.s32.totalorder %v3300, 1
        %v3303 = vsel %vm3301, %v3290, 0.0
        %v3304 = vsel %vm3302, %v3289, 0.0
        %v3305 = vsel %vm3301, %v3288, 0.0
        %v3306 = vsel %vm3302, %v3287, 0.0
        %v3307 = vlaneseq
        %v3308 = vshrl.u32 %v3307, 7
        %v3309 = vsub.s32 0, %v3308
        %v3310 = vrot.slane %v3270, %v3309
        %v3311 = vmul.f32 %v3303, %v3310
        %v3312 = vmul.f32 %v3304, %v3310
        %v3313 = vmul.f32 %v3305, %v3310
        %v3314 = vmul.f32 %v3306, %v3310
        %v3315 = vadd.f32 %v3278, %v3311
        %v3316 = vadd.f32 %v3279, %v3312
        %v3317 = vadd.f32 %v3280, %v3313
        %v3318 = vadd.f32 %v3281, %v3314
        %v3319 = vrot.slane %v3266, 6
        %v3320 = vrot.slane %v3267, 6
        %v3321 = vrot.slane %v3268, 6
        %v3322 = vrot.slane %v3269, 6
        %vm3323 = vcmp.lt.s32.totalorder %v3272, 2
        %v3324 = vsel %vm3323, %v3321, %v3322
        %v3325 = vsel %vm3323, %v3320, %v3321
        %v3326 = vsel %vm3323, %v3319, %v3320
        %v3327 = vsel %vm3323, %v3322, %v3319
        %v3328 = vadd.s32 %v3272, 4294967294
        %v3329 = vadd.s32 %v3273, 4294967294
        %vm3330 = vcmp.ge.s32.totalorder %v3328, 0
        %vm3331 = vcmp.ge.s32.totalorder %v3329, 0
        %vm3332 = vcmp.lt.s32.totalorder %v3328, 16
        %vm3333 = vcmp.lt.s32.totalorder %v3329, 16
        %vm3334 = vmand %vm3330, %vm3332
        %vm3335 = vmand %vm3331, %vm3333
        %v3336 = vsel %vm3334, 1, 0
        %v3337 = vsel %vm3335, 1, 0
        %vm3338 = vcmp.eq.s32.totalorder %v3336, 1
        %vm3339 = vcmp.eq.s32.totalorder %v3337, 1
        %v3340 = vsel %vm3338, %v3327, 0.0
        %v3341 = vsel %vm3339, %v3326, 0.0
        %v3342 = vsel %vm3338, %v3325, 0.0
        %v3343 = vsel %vm3339, %v3324, 0.0
        %v3344 = vlaneseq
        %v3345 = vshrl.u32 %v3344, 7
        %v3346 = vsub.s32 1, %v3345
        %v3347 = vrot.slane %v3270, %v3346
        %v3348 = vmul.f32 %v3340, %v3347
        %v3349 = vmul.f32 %v3341, %v3347
        %v3350 = vmul.f32 %v3342, %v3347
        %v3351 = vmul.f32 %v3343, %v3347
        %v3352 = vadd.f32 %v3315, %v3348
        %v3353 = vadd.f32 %v3316, %v3349
        %v3354 = vadd.f32 %v3317, %v3350
        %v3355 = vadd.f32 %v3318, %v3351
        %v3356 = vrot.slane %v3266, 7
        %v3357 = vrot.slane %v3267, 7
        %v3358 = vrot.slane %v3268, 7
        %v3359 = vrot.slane %v3269, 7
        %vm3360 = vcmp.lt.s32.totalorder %v3272, 1
        %v3361 = vsel %vm3360, %v3358, %v3359
        %v3362 = vsel %vm3360, %v3357, %v3358
        %v3363 = vsel %vm3360, %v3356, %v3357
        %v3364 = vsel %vm3360, %v3359, %v3356
        %v3365 = vadd.s32 %v3272, 4294967295
        %v3366 = vadd.s32 %v3273, 4294967295
        %vm3367 = vcmp.ge.s32.totalorder %v3365, 0
        %vm3368 = vcmp.ge.s32.totalorder %v3366, 0
        %vm3369 = vcmp.lt.s32.totalorder %v3365, 16
        %vm3370 = vcmp.lt.s32.totalorder %v3366, 16
        %vm3371 = vmand %vm3367, %vm3369
        %vm3372 = vmand %vm3368, %vm3370
        %v3373 = vsel %vm3371, 1, 0
        %v3374 = vsel %vm3372, 1, 0
        %vm3375 = vcmp.eq.s32.totalorder %v3373, 1
        %vm3376 = vcmp.eq.s32.totalorder %v3374, 1
        %v3377 = vsel %vm3375, %v3364, 0.0
        %v3378 = vsel %vm3376, %v3363, 0.0
        %v3379 = vsel %vm3375, %v3362, 0.0
        %v3380 = vsel %vm3376, %v3361, 0.0
        %v3381 = vlaneseq
        %v3382 = vshrl.u32 %v3381, 7
        %v3383 = vsub.s32 2, %v3382
        %v3384 = vrot.slane %v3270, %v3383
        %v3385 = vmul.f32 %v3377, %v3384
        %v3386 = vmul.f32 %v3378, %v3384
        %v3387 = vmul.f32 %v3379, %v3384
        %v3388 = vmul.f32 %v3380, %v3384
        %v3389 = vadd.f32 %v3352, %v3385
        %v3390 = vadd.f32 %v3353, %v3386
        %v3391 = vadd.f32 %v3354, %v3387
        %v3392 = vadd.f32 %v3355, %v3388
        %v3393 = vrot.slane %v3266, 1
        %v3394 = vrot.slane %v3267, 1
        %v3395 = vrot.slane %v3268, 1
        %v3396 = vrot.slane %v3269, 1
        %vm3397 = vcmp.lt.s32.totalorder %v3272, 7
        %v3398 = vsel %vm3397, %v3395, %v3396
        %v3399 = vsel %vm3397, %v3394, %v3395
        %v3400 = vsel %vm3397, %v3393, %v3394
        %v3401 = vsel %vm3397, %v3396, %v3393
        %v3402 = vadd.s32 %v3272, 1
        %v3403 = vadd.s32 %v3273, 1
        %vm3404 = vcmp.ge.s32.totalorder %v3402, 0
        %vm3405 = vcmp.ge.s32.totalorder %v3403, 0
        %vm3406 = vcmp.lt.s32.totalorder %v3402, 16
        %vm3407 = vcmp.lt.s32.totalorder %v3403, 16
        %vm3408 = vmand %vm3404, %vm3406
        %vm3409 = vmand %vm3405, %vm3407
        %v3410 = vsel %vm3408, 1, 0
        %v3411 = vsel %vm3409, 1, 0
        %vm3412 = vcmp.eq.s32.totalorder %v3410, 1
        %vm3413 = vcmp.eq.s32.totalorder %v3411, 1
        %v3414 = vsel %vm3412, %v3400, 0.0
        %v3415 = vsel %vm3413, %v3399, 0.0
        %v3416 = vsel %vm3412, %v3398, 0.0
        %v3417 = vsel %vm3413, %v3401, 0.0
        %v3418 = vlaneseq
        %v3419 = vshrl.u32 %v3418, 7
        %v3420 = vsub.s32 4, %v3419
        %v3421 = vrot.slane %v3270, %v3420
        %v3422 = vmul.f32 %v3414, %v3421
        %v3423 = vmul.f32 %v3415, %v3421
        %v3424 = vmul.f32 %v3416, %v3421
        %v3425 = vmul.f32 %v3417, %v3421
        %v3426 = vadd.f32 %v3389, %v3422
        %v3427 = vadd.f32 %v3390, %v3423
        %v3428 = vadd.f32 %v3391, %v3424
        %v3429 = vadd.f32 %v3392, %v3425
        %v3430 = vrot.slane %v3266, 2
        %v3431 = vrot.slane %v3267, 2
        %v3432 = vrot.slane %v3268, 2
        %v3433 = vrot.slane %v3269, 2
        %vm3434 = vcmp.lt.s32.totalorder %v3272, 6
        %v3435 = vsel %vm3434, %v3432, %v3433
        %v3436 = vsel %vm3434, %v3431, %v3432
        %v3437 = vsel %vm3434, %v3430, %v3431
        %v3438 = vsel %vm3434, %v3433, %v3430
        %v3439 = vadd.s32 %v3272, 2
        %v3440 = vadd.s32 %v3273, 2
        %vm3441 = vcmp.ge.s32.totalorder %v3439, 0
        %vm3442 = vcmp.ge.s32.totalorder %v3440, 0
        %vm3443 = vcmp.lt.s32.totalorder %v3439, 16
        %vm3444 = vcmp.lt.s32.totalorder %v3440, 16
        %vm3445 = vmand %vm3441, %vm3443
        %vm3446 = vmand %vm3442, %vm3444
        %v3447 = vsel %vm3445, 1, 0
        %v3448 = vsel %vm3446, 1, 0
        %vm3449 = vcmp.eq.s32.totalorder %v3447, 1
        %vm3450 = vcmp.eq.s32.totalorder %v3448, 1
        %v3451 = vsel %vm3449, %v3437, 0.0
        %v3452 = vsel %vm3450, %v3436, 0.0
        %v3453 = vsel %vm3449, %v3435, 0.0
        %v3454 = vsel %vm3450, %v3438, 0.0
        %v3455 = vlaneseq
        %v3456 = vshrl.u32 %v3455, 7
        %v3457 = vsub.s32 5, %v3456
        %v3458 = vrot.slane %v3270, %v3457
        %v3459 = vmul.f32 %v3451, %v3458
        %v3460 = vmul.f32 %v3452, %v3458
        %v3461 = vmul.f32 %v3453, %v3458
        %v3462 = vmul.f32 %v3454, %v3458
        %v3463 = vadd.f32 %v3426, %v3459
        %v3464 = vadd.f32 %v3427, %v3460
        %v3465 = vadd.f32 %v3428, %v3461
        %v3466 = vadd.f32 %v3429, %v3462
        %v3467 = vrot.slane %v3266, 3
        %v3468 = vrot.slane %v3267, 3
        %v3469 = vrot.slane %v3268, 3
        %v3470 = vrot.slane %v3269, 3
        %vm3471 = vcmp.lt.s32.totalorder %v3272, 5
        %v3472 = vsel %vm3471, %v3469, %v3470
        %v3473 = vsel %vm3471, %v3468, %v3469
        %v3474 = vsel %vm3471, %v3467, %v3468
        %v3475 = vsel %vm3471, %v3470, %v3467
        %v3476 = vadd.s32 %v3272, 3
        %v3477 = vadd.s32 %v3273, 3
        %vm3478 = vcmp.ge.s32.totalorder %v3476, 0
        %vm3479 = vcmp.ge.s32.totalorder %v3477, 0
        %vm3480 = vcmp.lt.s32.totalorder %v3476, 16
        %vm3481 = vcmp.lt.s32.totalorder %v3477, 16
        %vm3482 = vmand %vm3478, %vm3480
        %vm3483 = vmand %vm3479, %vm3481
        %v3484 = vsel %vm3482, 1, 0
        %v3485 = vsel %vm3483, 1, 0
        %vm3486 = vcmp.eq.s32.totalorder %v3484, 1
        %vm3487 = vcmp.eq.s32.totalorder %v3485, 1
        %v3488 = vsel %vm3486, %v3474, 0.0
        %v3489 = vsel %vm3487, %v3473, 0.0
        %v3490 = vsel %vm3486, %v3472, 0.0
        %v3491 = vsel %vm3487, %v3475, 0.0
        %v3492 = vlaneseq
        %v3493 = vshrl.u32 %v3492, 7
        %v3494 = vsub.s32 6, %v3493
        %v3495 = vrot.slane %v3270, %v3494
        %v3496 = vmul.f32 %v3488, %v3495
        %v3497 = vmul.f32 %v3489, %v3495
        %v3498 = vmul.f32 %v3490, %v3495
        %v3499 = vmul.f32 %v3491, %v3495
        %v3500 = vadd.f32 %v3463, %v3496
        %v3501 = vadd.f32 %v3464, %v3497
        %v3502 = vadd.f32 %v3465, %v3498
        %v3503 = vadd.f32 %v3466, %v3499
        %v3504 = vlaneseq
        %v3505 = vshrl.u32 %v3504, 7
        %v3506 = vsub.s32 7, %v3505
        %v3507 = vrot.slane %v3270, %v3506
        %v3508 = vadd.f32 %v3500, %v3507
        %v3509 = vadd.f32 %v3501, %v3507
        %v3510 = vadd.f32 %v3502, %v3507
        %v3511 = vadd.f32 %v3503, %v3507
        %v3512 = vld [vmem:[%s18] sm:$0x3]
        %v3513 = vlaneseq
        %v3514 = vshrl.u32 %v3513, 7
        %v3515 = vsub.s32 0, %v3514
        %v3516 = vrot.slane %v3512, %v3515
        %v3517 = vmul.f32 %v3508, %v3516
        %v3518 = vmul.f32 %v3509, %v3516
        %v3519 = vmul.f32 %v3510, %v3516
        %v3520 = vmul.f32 %v3511, %v3516
        %v3521 = vlaneseq
        %v3522 = vshrl.u32 %v3521, 7
        %v3523 = vsub.s32 1, %v3522
        %v3524 = vrot.slane %v3512, %v3523
        %v3525 = vadd.f32 %v3517, %v3524
        %v3526 = vadd.f32 %v3518, %v3524
        %v3527 = vadd.f32 %v3519, %v3524
        %v3528 = vadd.f32 %v3520, %v3524
        %v3529 = vxor.u32 %v3525, 2147483648
        %v3530 = vxor.u32 %v3526, 2147483648
        %v3531 = vxor.u32 %v3527, 2147483648
        %v3532 = vxor.u32 %v3528, 2147483648
        %v3533 = vmul.f32 %v3529, 1.442695
        %v3534 = vpow.pop %v3533
        %v3535 = vmul.f32 %v3530, 1.442695
        %v3536 = vpow.pop %v3535
        %v3537 = vmul.f32 %v3531, 1.442695
        %v3538 = vpow.pop %v3537
        %v3539 = vmul.f32 %v3532, 1.442695
        %v3540 = vpow.pop %v3539
        %v3541 = vadd.f32 %v3534, 1.0
        %v3542 = vadd.f32 %v3536, 1.0
        %v3543 = vadd.f32 %v3538, 1.0
        %v3544 = vadd.f32 %v3540, 1.0
        %v3545 = vrcp.pop %v3541
        %v3546 = vmul.f32 1.0, %v3545
        %v3547 = vrcp.pop %v3542
        %v3548 = vmul.f32 1.0, %v3547
        %v3549 = vrcp.pop %v3543
        %v3550 = vmul.f32 1.0, %v3549
        %v3551 = vrcp.pop %v3544
        %v3552 = vmul.f32 1.0, %v3551
        %v3553 = vmul.f32 %v3525, %v3546
        %v3554 = vmul.f32 %v3526, %v3548
        %v3555 = vmul.f32 %v3527, %v3550
        %v3556 = vmul.f32 %v3528, %v3552
        %v3557 = vpack.c.bf16 %v3554, %v3553
        %v3558 = vpack.c.bf16 %v3556, %v3555
        %v3559 = vld [vmem:[%s19] sm:$0xf]
        %v3560 = vld [vmem:[%s19 + $0x4] sm:$0xf]
        %v3561 = vld [vmem:[%s19 + $0x8] sm:$0xf]
        %v3562 = vld [vmem:[%s19 + $0xc] sm:$0xf]
        %v3563 = vld [vmem:[%s20] sm:$0x1]
        %v3565 = vlaneseq
        %v3566 = vshrl.u32 %v3565, 7
        %v3567 = vsub.s32 0, %v3566
        %v3568 = vrot.slane %v3563, %v3567
        %v3574 = vunpack.c.l.b16 %v3559
        %v3575 = vunpack.c.l.b16 %v3560
        %v3576 = vunpack.c.l.b16 %v3561
        %v3577 = vunpack.c.l.b16 %v3562
        %v3578 = vpack.c.b16 %v3575, %v3574
        %v3579 = vpack.c.b16 %v3577, %v3576
        %v3583 = vsel %vm856, %v3557, 0
        %v3586 = vsel %vm856, %v3558, 0
        %3588 = vmatprep.subr.bf16.mxu0 0
        %3589 = vmatpush1.bf16.msra.mxu0 %v3578
        %3590 = vmatprep.subr.bf16.mxu0 0
        %3591 = vmatpush1.bf16.msra.mxu0 %v3579
        %3592 = vmatprep.subr.bf16.mxu0 0
        %3593 = vmatpush1.bf16.msra.mxu0 0
        %3594 = vmatprep.subr.bf16.mxu0 0
        %3595 = vmatpush1.bf16.msra.mxu0 0
        %3596 = vmatprep.subr.bf16.mxu0 0
        %3597 = vmatpush1.bf16.msra.mxu0 0
        %3598 = vmatprep.subr.bf16.mxu0 0
        %3599 = vmatpush1.bf16.msra.mxu0 0
        %3600 = vmatprep.subr.bf16.mxu0 0
        %3601 = vmatpush1.bf16.msra.mxu0 0
        %3602 = vmatprep.subr.bf16.mxu0 0
        %3603 = vmatpush1.bf16.msra.mxu0 0
        %3604 = vmatprep.subr.bf16.mxu0 0
        %3605 = vmatpush1.bf16.msra.mxu0 0
        %3606 = vmatprep.subr.bf16.mxu0 0
        %3607 = vmatpush1.bf16.msra.mxu0 0
        %3608 = vmatprep.subr.bf16.mxu0 0
        %3609 = vmatpush1.bf16.msra.mxu0 0
        %3610 = vmatprep.subr.bf16.mxu0 0
        %3611 = vmatpush1.bf16.msra.mxu0 0
        %3612 = vmatprep.subr.bf16.mxu0 0
        %3613 = vmatpush1.bf16.msra.mxu0 0
        %3614 = vmatprep.subr.bf16.mxu0 0
        %3615 = vmatpush1.bf16.msra.mxu0 0
        %3616 = vmatprep.subr.bf16.mxu0 0
        %3617 = vmatpush1.bf16.msra.mxu0 0
        %3618 = vmatprep.subr.bf16.mxu0 0
        %3619 = vmatpush1.bf16.msra.mxu0 0
        %3620 = vmatprep.mubr.bf16.mxu0 0
        %3621 = vmatmul.mubr.bf16.gmra.mrb[0].mxu0 %v3583
        %v3622 = vpop.f32.mrb[0].mxu0
        %v3623 = vadd.f32 %v3568, %v3622
        %v3624 = vpop.f32.mrb[0].mxu0
        %v3625 = vpop.f32.mrb[0].mxu0
        %v3626 = vadd.f32 %v3568, %v3625
        %v3627 = vpop.f32.mrb[0].mxu0
        %3628 = vmatprep.mubr.bf16.mxu0 0
        %3629 = vmatmul.mubr.bf16.gmra.mrb[0].mxu0 %v3586
        %v3630 = vpop.f32.mrb[0].mxu0
        %v3631 = vadd.f32 %v3568, %v3630
        %v3632 = vpop.f32.mrb[0].mxu0
        %v3633 = vpop.f32.mrb[0].mxu0
        %v3634 = vadd.f32 %v3568, %v3633
        %v3635 = vpop.f32.mrb[0].mxu0
        %3636 = vdwg.mxu0
        %v3637 = vadd.f32 %v3074, %v3623
        %v3638 = vadd.f32 %v3075, %v3626
        %v3639 = vadd.f32 %v3076, %v3631
        %v3640 = vadd.f32 %v3077, %v3634
        %v3641 = vsel %vm856, %v3637, 0.0
        %3642 = vadd.xlane.f32.xlu0 %v3641
        %v3643 = vpop.xlane.xlu0 %3642
        %v3644 = vsel %vm856, %v3638, 0.0
        %3645 = vadd.xlane.f32.xlu0 %v3644
        %v3646 = vpop.xlane.xlu0 %3645
        %v3647 = vsel %vm856, %v3639, 0.0
        %3648 = vadd.xlane.f32.xlu0 %v3647
        %v3649 = vpop.xlane.xlu0 %3648
        %v3650 = vsel %vm856, %v3640, 0.0
        %3651 = vadd.xlane.f32.xlu0 %v3650
        %v3652 = vpop.xlane.xlu0 %3651
        %v3653 = vmul.f32 %v3643, %v869
        %v3654 = vmul.f32 %v3646, %v869
        %v3655 = vmul.f32 %v3649, %v869
        %v3656 = vmul.f32 %v3652, %v869
        %v3657 = vsub.f32 %v3637, %v3653
        %v3658 = vsub.f32 %v3638, %v3654
        %v3659 = vsub.f32 %v3639, %v3655
        %v3660 = vsub.f32 %v3640, %v3656
        %v3661 = vmul.f32 %v3657, %v3657
        %v3662 = vmul.f32 %v3658, %v3658
        %v3663 = vmul.f32 %v3659, %v3659
        %v3664 = vmul.f32 %v3660, %v3660
        %v3665 = vsel %vm856, %v3661, 0.0
        %3666 = vadd.xlane.f32.xlu0 %v3665
        %v3667 = vpop.xlane.xlu0 %3666
        %v3668 = vsel %vm856, %v3662, 0.0
        %3669 = vadd.xlane.f32.xlu0 %v3668
        %v3670 = vpop.xlane.xlu0 %3669
        %v3671 = vsel %vm856, %v3663, 0.0
        %3672 = vadd.xlane.f32.xlu0 %v3671
        %v3673 = vpop.xlane.xlu0 %3672
        %v3674 = vsel %vm856, %v3664, 0.0
        %3675 = vadd.xlane.f32.xlu0 %v3674
        %v3676 = vpop.xlane.xlu0 %3675
        %v3677 = vmul.f32 %v3667, %v869
        %v3678 = vmul.f32 %v3670, %v869
        %v3679 = vmul.f32 %v3673, %v869
        %v3680 = vmul.f32 %v3676, %v869
        %v3681 = vadd.f32 %v3677, 1e-12
        %v3682 = vadd.f32 %v3678, 1e-12
        %v3683 = vadd.f32 %v3679, 1e-12
        %v3684 = vadd.f32 %v3680, 1e-12
        %v3685 = vrsqrt.pop %v3681
        %v3686 = vrsqrt.pop %v3682
        %v3687 = vrsqrt.pop %v3683
        %v3688 = vrsqrt.pop %v3684
        %v3689 = vmul.f32 %v3657, %v3685
        %v3690 = vmul.f32 %v3658, %v3686
        %v3691 = vmul.f32 %v3659, %v3687
        %v3692 = vmul.f32 %v3660, %v3688
        %v3693 = vlaneseq
        %v3694 = vshrl.u32 %v3693, 7
        %v3695 = vsub.s32 0, %v3694
        %v3696 = vrot.slane %v854, %v3695
        %v3697 = vmul.f32 %v3689, %v3696
        %v3698 = vmul.f32 %v3690, %v3696
        %v3699 = vmul.f32 %v3691, %v3696
        %v3700 = vmul.f32 %v3692, %v3696
        %v3701 = vlaneseq
        %v3702 = vshrl.u32 %v3701, 7
        %v3703 = vsub.s32 1, %v3702
        %v3704 = vrot.slane %v854, %v3703
        %v3705 = vadd.f32 %v3697, %v3704
        %v3706 = vadd.f32 %v3698, %v3704
        %v3707 = vadd.f32 %v3699, %v3704
        %v3708 = vadd.f32 %v3700, %v3704
        %v3709 = vpack.c.bf16 %v3706, %v3705
        %v3710 = vpack.c.bf16 %v3708, %v3707
        %v3711 = vld [vmem:[#allocation10] sm:$0xf]
        %v3712 = vld [vmem:[#allocation10 + $0x4] sm:$0xf]
        %v3713 = vld [vmem:[#allocation10 + $0x8] sm:$0xf]
        %v3714 = vld [vmem:[#allocation10 + $0xc] sm:$0xf]
        %v3715 = vld [vmem:[#allocation11] sm:$0x1]
        %v3717 = vlaneseq
        %v3718 = vshrl.u32 %v3717, 7
        %v3719 = vsub.s32 0, %v3718
        %v3720 = vrot.slane %v3715, %v3719
        %v3726 = vunpack.c.l.b16 %v3711
        %v3727 = vunpack.c.l.b16 %v3712
        %v3728 = vunpack.c.l.b16 %v3713
        %v3729 = vunpack.c.l.b16 %v3714
        %v3730 = vpack.c.b16 %v3727, %v3726
        %v3731 = vpack.c.b16 %v3729, %v3728
        %v3735 = vsel %vm856, %v3709, 0
        %v3738 = vsel %vm856, %v3710, 0
        %3740 = vmatprep.subr.bf16.mxu0 0
        %3741 = vmatpush1.bf16.msra.mxu0 %v3730
        %3742 = vmatprep.subr.bf16.mxu0 0
        %3743 = vmatpush1.bf16.msra.mxu0 %v3731
        %3744 = vmatprep.subr.bf16.mxu0 0
        %3745 = vmatpush1.bf16.msra.mxu0 0
        %3746 = vmatprep.subr.bf16.mxu0 0
        %3747 = vmatpush1.bf16.msra.mxu0 0
        %3748 = vmatprep.subr.bf16.mxu0 0
        %3749 = vmatpush1.bf16.msra.mxu0 0
        %3750 = vmatprep.subr.bf16.mxu0 0
        %3751 = vmatpush1.bf16.msra.mxu0 0
        %3752 = vmatprep.subr.bf16.mxu0 0
        %3753 = vmatpush1.bf16.msra.mxu0 0
        %3754 = vmatprep.subr.bf16.mxu0 0
        %3755 = vmatpush1.bf16.msra.mxu0 0
        %3756 = vmatprep.subr.bf16.mxu0 0
        %3757 = vmatpush1.bf16.msra.mxu0 0
        %3758 = vmatprep.subr.bf16.mxu0 0
        %3759 = vmatpush1.bf16.msra.mxu0 0
        %3760 = vmatprep.subr.bf16.mxu0 0
        %3761 = vmatpush1.bf16.msra.mxu0 0
        %3762 = vmatprep.subr.bf16.mxu0 0
        %3763 = vmatpush1.bf16.msra.mxu0 0
        %3764 = vmatprep.subr.bf16.mxu0 0
        %3765 = vmatpush1.bf16.msra.mxu0 0
        %3766 = vmatprep.subr.bf16.mxu0 0
        %3767 = vmatpush1.bf16.msra.mxu0 0
        %3768 = vmatprep.subr.bf16.mxu0 0
        %3769 = vmatpush1.bf16.msra.mxu0 0
        %3770 = vmatprep.subr.bf16.mxu0 0
        %3771 = vmatpush1.bf16.msra.mxu0 0
        %3772 = vmatprep.mubr.bf16.mxu0 0
        %3773 = vmatmul.mubr.bf16.gmra.mrb[0].mxu0 %v3735
        %v3774 = vpop.f32.mrb[0].mxu0
        %v3775 = vadd.f32 %v3720, %v3774
        %v3776 = vpop.f32.mrb[0].mxu0
        %v3777 = vpop.f32.mrb[0].mxu0
        %v3778 = vadd.f32 %v3720, %v3777
        %v3779 = vpop.f32.mrb[0].mxu0
        %3780 = vmatprep.mubr.bf16.mxu0 0
        %3781 = vmatmul.mubr.bf16.gmra.mrb[0].mxu0 %v3738
        %v3782 = vpop.f32.mrb[0].mxu0
        %v3783 = vadd.f32 %v3720, %v3782
        %v3784 = vpop.f32.mrb[0].mxu0
        %v3785 = vpop.f32.mrb[0].mxu0
        %v3786 = vadd.f32 %v3720, %v3785
        %v3787 = vpop.f32.mrb[0].mxu0
        %3788 = vdwg.mxu0
        %v3789 = vxor.u32 %v3775, 2147483648
        %v3790 = vxor.u32 %v3778, 2147483648
        %v3791 = vxor.u32 %v3783, 2147483648
        %v3792 = vxor.u32 %v3786, 2147483648
        %v3793 = vmul.f32 %v3789, 1.442695
        %v3794 = vpow.pop %v3793
        %v3795 = vmul.f32 %v3790, 1.442695
        %v3796 = vpow.pop %v3795
        %v3797 = vmul.f32 %v3791, 1.442695
        %v3798 = vpow.pop %v3797
        %v3799 = vmul.f32 %v3792, 1.442695
        %v3800 = vpow.pop %v3799
        %v3801 = vadd.f32 %v3794, 1.0
        %v3802 = vadd.f32 %v3796, 1.0
        %v3803 = vadd.f32 %v3798, 1.0
        %v3804 = vadd.f32 %v3800, 1.0
        %v3805 = vrcp.pop %v3801
        %v3806 = vmul.f32 1.0, %v3805
        %v3807 = vrcp.pop %v3802
        %v3808 = vmul.f32 1.0, %v3807
        %v3809 = vrcp.pop %v3803
        %v3810 = vmul.f32 1.0, %v3809
        %v3811 = vrcp.pop %v3804
        %v3812 = vmul.f32 1.0, %v3811
        %v3813 = vmul.f32 %v3775, %v3806
        %v3814 = vmul.f32 %v3778, %v3808
        %v3815 = vmul.f32 %v3783, %v3810
        %v3816 = vmul.f32 %v3786, %v3812
        %v3817 = vpack.c.bf16 %v3814, %v3813
        %v3818 = vpack.c.bf16 %v3816, %v3815
        %v3819 = vld [vmem:[%s9] sm:$0xf]
        %v3820 = vld [vmem:[%s9 + $0x4] sm:$0xf]
        %v3821 = vld [vmem:[%s9 + $0x8] sm:$0xf]
        %v3822 = vld [vmem:[%s9 + $0xc] sm:$0xf]
        %v3823 = vld [vmem:[%s9 + $0x10] sm:$0xf]
        %v3824 = vld [vmem:[%s9 + $0x14] sm:$0xf]
        %v3825 = vld [vmem:[%s9 + $0x18] sm:$0xf]
        %v3826 = vld [vmem:[%s9 + $0x1c] sm:$0xf]
        %v3827 = vld [vmem:[#allocation13] sm:$0x1]
        %v3829 = vlaneseq
        %v3830 = vshrl.u32 %v3829, 7
        %v3831 = vsub.s32 0, %v3830
        %v3832 = vrot.slane %v3827, %v3831
        %v3842 = vunpack.c.l.b16 %v3819
        %v3843 = vunpack.c.l.b16 %v3820
        %v3844 = vunpack.c.l.b16 %v3821
        %v3845 = vunpack.c.l.b16 %v3822
        %v3846 = vunpack.c.l.b16 %v3823
        %v3847 = vunpack.c.l.b16 %v3824
        %v3848 = vunpack.c.l.b16 %v3825
        %v3849 = vunpack.c.l.b16 %v3826
        %v3850 = vpack.c.b16 %v3843, %v3842
        %v3851 = vpack.c.b16 %v3845, %v3844
        %v3852 = vpack.c.b16 %v3847, %v3846
        %v3853 = vpack.c.b16 %v3849, %v3848
        %v3859 = vsel %vm1075, %v3817, 0
        %v3862 = vsel %vm1075, %v3818, 0
        %3864 = vmatprep.subr.bf16.mxu0 0
        %3865 = vmatpush1.bf16.msra.mxu0 %v3850
        %3866 = vmatprep.subr.bf16.mxu0 0
        %3867 = vmatpush1.bf16.msra.mxu0 %v3851
        %3868 = vmatprep.subr.bf16.mxu0 0
        %3869 = vmatpush1.bf16.msra.mxu0 %v3852
        %3870 = vmatprep.subr.bf16.mxu0 0
        %3871 = vmatpush1.bf16.msra.mxu0 %v3853
        %3872 = vmatprep.subr.bf16.mxu0 0
        %3873 = vmatpush1.bf16.msra.mxu0 0
        %3874 = vmatprep.subr.bf16.mxu0 0
        %3875 = vmatpush1.bf16.msra.mxu0 0
        %3876 = vmatprep.subr.bf16.mxu0 0
        %3877 = vmatpush1.bf16.msra.mxu0 0
        %3878 = vmatprep.subr.bf16.mxu0 0
        %3879 = vmatpush1.bf16.msra.mxu0 0
        %3880 = vmatprep.subr.bf16.mxu0 0
        %3881 = vmatpush1.bf16.msra.mxu0 0
        %3882 = vmatprep.subr.bf16.mxu0 0
        %3883 = vmatpush1.bf16.msra.mxu0 0
        %3884 = vmatprep.subr.bf16.mxu0 0
        %3885 = vmatpush1.bf16.msra.mxu0 0
        %3886 = vmatprep.subr.bf16.mxu0 0
        %3887 = vmatpush1.bf16.msra.mxu0 0
        %3888 = vmatprep.subr.bf16.mxu0 0
        %3889 = vmatpush1.bf16.msra.mxu0 0
        %3890 = vmatprep.subr.bf16.mxu0 0
        %3891 = vmatpush1.bf16.msra.mxu0 0
        %3892 = vmatprep.subr.bf16.mxu0 0
        %3893 = vmatpush1.bf16.msra.mxu0 0
        %3894 = vmatprep.subr.bf16.mxu0 0
        %3895 = vmatpush1.bf16.msra.mxu0 0
        %3896 = vmatprep.mubr.bf16.mxu0 0
        %3897 = vmatmul.mubr.bf16.gmra.mrb[0].mxu0 %v3859
        %v3898 = vpop.f32.mrb[0].mxu0
        %v3899 = vadd.f32 %v3832, %v3898
        %v3900 = vpop.f32.mrb[0].mxu0
        %v3901 = vpop.f32.mrb[0].mxu0
        %v3902 = vadd.f32 %v3832, %v3901
        %v3903 = vpop.f32.mrb[0].mxu0
        %3904 = vmatprep.mubr.bf16.mxu0 0
        %3905 = vmatmul.mubr.bf16.gmra.mrb[0].mxu0 %v3862
        %v3906 = vpop.f32.mrb[0].mxu0
        %v3907 = vadd.f32 %v3832, %v3906
        %v3908 = vpop.f32.mrb[0].mxu0
        %v3909 = vpop.f32.mrb[0].mxu0
        %v3910 = vadd.f32 %v3832, %v3909
        %v3911 = vpop.f32.mrb[0].mxu0
        %3912 = vdwg.mxu0
        %v3913 = vmul.f32 %v3899, 0.5
        %v3914 = vmul.f32 %v3902, 0.5
        %v3915 = vmul.f32 %v3907, 0.5
        %v3916 = vmul.f32 %v3910, 0.5
        %v3917 = vadd.f32 %v3637, %v3913
        %v3918 = vadd.f32 %v3638, %v3914
        %v3919 = vadd.f32 %v3639, %v3915
        %v3920 = vadd.f32 %v3640, %v3916
        %v3921 = vsel %vm856, %v3917, 0.0
        %3922 = vadd.xlane.f32.xlu0 %v3921
        %v3923 = vpop.xlane.xlu0 %3922
        %v3924 = vsel %vm856, %v3918, 0.0
        %3925 = vadd.xlane.f32.xlu0 %v3924
        %v3926 = vpop.xlane.xlu0 %3925
        %v3927 = vsel %vm856, %v3919, 0.0
        %3928 = vadd.xlane.f32.xlu0 %v3927
        %v3929 = vpop.xlane.xlu0 %3928
        %v3930 = vsel %vm856, %v3920, 0.0
        %3931 = vadd.xlane.f32.xlu0 %v3930
        %v3932 = vpop.xlane.xlu0 %3931
        %v3933 = vmul.f32 %v3923, %v869
        %v3934 = vmul.f32 %v3926, %v869
        %v3935 = vmul.f32 %v3929, %v869
        %v3936 = vmul.f32 %v3932, %v869
        %v3937 = vsub.f32 %v3917, %v3933
        %v3938 = vsub.f32 %v3918, %v3934
        %v3939 = vsub.f32 %v3919, %v3935
        %v3940 = vsub.f32 %v3920, %v3936
        %v3941 = vmul.f32 %v3937, %v3937
        %v3942 = vmul.f32 %v3938, %v3938
        %v3943 = vmul.f32 %v3939, %v3939
        %v3944 = vmul.f32 %v3940, %v3940
        %v3945 = vsel %vm856, %v3941, 0.0
        %3946 = vadd.xlane.f32.xlu0 %v3945
        %v3947 = vpop.xlane.xlu0 %3946
        %v3948 = vsel %vm856, %v3942, 0.0
        %3949 = vadd.xlane.f32.xlu0 %v3948
        %v3950 = vpop.xlane.xlu0 %3949
        %v3951 = vsel %vm856, %v3943, 0.0
        %3952 = vadd.xlane.f32.xlu0 %v3951
        %v3953 = vpop.xlane.xlu0 %3952
        %v3954 = vsel %vm856, %v3944, 0.0
        %3955 = vadd.xlane.f32.xlu0 %v3954
        %v3956 = vpop.xlane.xlu0 %3955
        %v3957 = vmul.f32 %v3947, %v869
        %v3958 = vmul.f32 %v3950, %v869
        %v3959 = vmul.f32 %v3953, %v869
        %v3960 = vmul.f32 %v3956, %v869
        %v3961 = vadd.f32 %v3957, 1e-12
        %v3962 = vadd.f32 %v3958, 1e-12
        %v3963 = vadd.f32 %v3959, 1e-12
        %v3964 = vadd.f32 %v3960, 1e-12
        %v3965 = vrsqrt.pop %v3961
        %v3966 = vrsqrt.pop %v3962
        %v3967 = vrsqrt.pop %v3963
        %v3968 = vrsqrt.pop %v3964
        %v3969 = vmul.f32 %v3937, %v3965
        %v3970 = vmul.f32 %v3938, %v3966
        %v3971 = vmul.f32 %v3939, %v3967
        %v3972 = vmul.f32 %v3940, %v3968
        %v3973 = vlaneseq
        %v3974 = vshrl.u32 %v3973, 7
        %v3975 = vsub.s32 0, %v3974
        %v3976 = vrot.slane %v855, %v3975
        %v3977 = vmul.f32 %v3969, %v3976
        %v3978 = vmul.f32 %v3970, %v3976
        %v3979 = vmul.f32 %v3971, %v3976
        %v3980 = vmul.f32 %v3972, %v3976
        %v3981 = vlaneseq
        %v3982 = vshrl.u32 %v3981, 7
        %v3983 = vsub.s32 1, %v3982
        %v3984 = vrot.slane %v855, %v3983
        %v3985 = vadd.f32 %v3977, %v3984
        %v3986 = vadd.f32 %v3978, %v3984
        %v3987 = vadd.f32 %v3979, %v3984
        %v3988 = vadd.f32 %v3980, %v3984
        %3989 = vst.msk [vmem:[%s836] sm:$0xff] %vm856, %v3985
        %3990 = vst.msk [vmem:[%s836 + $0x8] sm:$0xff] %vm856, %v3986
        %3991 = vst.msk [vmem:[%s836 + $0x10] sm:$0xff] %vm856, %v3987
        %3992 = vst.msk [vmem:[%s836 + $0x18] sm:$0xff] %vm856, %v3988
        %s3993 = sand.u32 %s503, 1
        %s3994 = scalar_lea.sflag [#allocation4], %s3993
        %s3995 = sand.u32 %s503, 1
        %s3996 = smul.addr %s3995, 32
        %s3997 = scalar_lea.vmem [#allocation22], %s3996
        // Predicated region
        $region153: #{tpu_custom_call.1} parent=103 // pred_check
          %p3998 = pneg %p513
        $region154: #{tpu_custom_call.1} parent=103 // pred_check_branch
          %4000 = sbr.rel (%p3998) target = $region156
        $region155: #{tpu_custom_call.1} parent=103 // pred_region
          %s4001 = smul.u32 2, %s44
          %s4003 = ssub.s32 512, 512
          %4004 = vsyncadd %s3994, %s4003
          %s4005 = smul.addr %s4001, 2
          %s4006 = smul.addr %s4005, 128
          %s4007 = scalar_lea.hbm %s21, %s4006
          %s4008 = sshll.u32 %s3997, 4
          %s4009 = int_to_ptr.vmem [resolvable:$true] %s4008
          %4014 = dma.vmem_to_hbm [thread:$0]  %s4009, 512, %s4007, %s3994, 128, 128, 8
        $region156: #{tpu_custom_call.1} parent=103 // pred_fallthru
          _
      $region104: #{tpu_custom_call.1} parent=5 // pred_fallthru
        _
      %p4015 = scmp.le.s32.totalorder 2, %s39
      // Predicated region
      $region157: #{tpu_custom_call.1} parent=5 // pred_check
        %p4016 = pneg %p4015
      $region158: #{tpu_custom_call.1} parent=5 // pred_check_branch
        %4018 = sbr.rel (%p4016) target = $region160
      $region159: #{tpu_custom_call.1} parent=5 // pred_region
        %s4019 = ssub.s32 %s39, 2
        // Predicated region
        $region161: #{tpu_custom_call.1} parent=159 // pred_check
          %p4020 = pneg %p519
        $region162: #{tpu_custom_call.1} parent=159 // pred_check_branch
          %4022 = sbr.rel (%p4020) target = $region164
        $region163: #{tpu_custom_call.1} parent=159 // pred_region
          %s4023 = sand.u32 %s504, 1
          %s4024 = scalar_lea.sflag [#allocation4], %s4023
          %s4025 = sand.u32 %s504, 1
          %s4026 = smul.addr %s4025, 32
          %s4027 = scalar_lea.vmem [#allocation22], %s4026
          %4028 = dma.done %s4024, 512
        $region164: #{tpu_custom_call.1} parent=159 // pred_fallthru
          _
      $region160: #{tpu_custom_call.1} parent=5 // pred_fallthru
        _
    $region6: #{tpu_custom_call.1} parent=1 // loop_footer
      %s43 = sadd.s32 1, %s39
    $region7: #{tpu_custom_call.1} parent=1 // loop_footer_branch
      %38 = sbr.rel target = $region3
    $region8: #{tpu_custom_call.1} parent=1 // loop_exit
      _
    %4029 = vsyncpa [#allocation3], 1
    %s4030 = scalar_lea.sflag [#allocation3], 1
    %4031 = vsyncpa %s4030, 1
    %4032 = vsyncpa [#allocation6], 1
    %4033 = vsyncpa [#allocation9], 1
    %4034 = vsyncpa [#allocation12], 1
    %4035 = vsyncpa [#allocation15], 1
    %4036 = vsyncpa [#allocation18], 1
    %4037 = vsyncpa [#allocation21], 1
    %4038 = vsyncpa [#allocation4], 1
    %s4039 = scalar_lea.sflag [#allocation4], 1
    %4040 = vsyncpa %s4039, 1

</llo_original>
